<compile_context>
chip_gen: v5e
topology: v5e:2x2
jax: 0.10.0
libtpu: 0.0.40
codegen_flags: <defaults>
</compile_context>

<pallas_src>
import jax
import jax.numpy as jnp
from jax import lax
from jax.experimental import pallas as pl
from jax.experimental.pallas import tpu as pltpu

F_PAD = 128  # lane-dense padded feature width (all GAE dims are <= 64)


def _sigmoid(x):
    # Explicit form so kernel and reference use identical arithmetic (EUP exp).
    return 1.0 / (1.0 + jnp.exp(-x))


# ----------------------------------------------------------------------------
# Kernel 1: fused 8-layer GNN stack (encoder + decoder), grid=()
# ----------------------------------------------------------------------------
def _gae_stack_kernel(x_ref, adj_ref, w_ref, z_gae_ref, z_hat_ref):
    adj = adj_ref[...]          # (N, N)   bf16
    h = x_ref[...]              # (N, 128) bf16 (zero-padded lanes)
    for layer in range(8):
        w = w_ref[layer]        # (128, 128) bf16 (zero-padded)
        # PyTorch order: support = h @ W ; out = adj @ support
        proj = jnp.dot(h, w, preferred_element_type=jnp.float32)
        out = jnp.dot(adj, proj.astype(jnp.bfloat16),
                      preferred_element_type=jnp.float32)
        if layer != 3:                       # layer 4 (bottleneck): active=False
            out = jnp.maximum(out, 0.0)      # ReLU (non-'hhar' branch)
        if layer == 3:
            z_gae_ref[...] = out.astype(z_gae_ref.dtype)   # lane-dense (N,128)
        if layer == 7:
            z_hat_ref[...] = out.astype(z_hat_ref.dtype)   # lane-dense (N,128)
        h = out.astype(jnp.bfloat16)


# ----------------------------------------------------------------------------
# Kernel 2: adjacency reconstruction, 2-D parallel grid over (row, col) tiles
#   adj_hat[i,j] = sigmoid(z_gae_i @ z_gae_j^T) + sigmoid(z_hat_i @ z_hat_j^T)
# ----------------------------------------------------------------------------
def _adj_recon_kernel(zg_i_ref, zh_i_ref, zg_j_ref, zh_j_ref, adj_hat_ref):
    dn = (((1,), (1,)), ((), ()))   # contract last axis of both (no transpose)
    g = lax.dot_general(zg_i_ref[...].astype(jnp.bfloat16),
                        zg_j_ref[...].astype(jnp.bfloat16),
                        dn, preferred_element_type=jnp.float32)
    adj_hat_ref[...] = _sigmoid(g)                       # streamed epilogue:
    g = lax.dot_general(zh_i_ref[...].astype(jnp.bfloat16),
                        zh_j_ref[...].astype(jnp.bfloat16),
                        dn, preferred_element_type=jnp.float32)
    adj_hat_ref[...] += _sigmoid(g)                      # accumulate in place


def _pick_tile(n):
    for t in (256, 128):
        if n % t == 0 and n // t >= 2:
            return t
    return n


# ----------------------------------------------------------------------------
# Wrapper: two pallas_calls for the whole forward pass
# ----------------------------------------------------------------------------
@jax.jit
def gae_forward(x, adj, weights):
    n, n_input = x.shape
    n_z = weights[3].shape[1]
    f = F_PAD
    assert n_input <= f and n_z <= f and all(w.shape[1] <= f for w in weights)

    # Pad operands to lane-dense 128 width and cast MXU operands to bf16.
    w_stack = jnp.stack([
        jnp.pad(w, ((0, f - w.shape[0]), (0, f - w.shape[1]))) for w in weights
    ]).astype(jnp.bfloat16)                                  # (8, 128, 128)
    x_pad = jnp.pad(x, ((0, 0), (0, f - n_input))).astype(jnp.bfloat16)
    adj_bf = adj.astype(jnp.bfloat16)

    # ---- call 1: fused GNN stack -------------------------------------------
    vmem1 = 2 * n * n * 2 + 4 * n * f * 2 + 2 * 8 * f * f * 2 + 4 * n * f * 4
    cp1_kwargs = {}
    if vmem1 > 30 * 1024 * 1024:
        cp1_kwargs["vmem_limit_bytes"] = min(vmem1 + (8 << 20), 100 * 1024 * 1024)

    z_gae_pad, z_hat_pad = pl.pallas_call(
        _gae_stack_kernel,
        out_shape=(jax.ShapeDtypeStruct((n, f), jnp.float32),
                   jax.ShapeDtypeStruct((n, f), jnp.float32)),
        in_specs=[pl.BlockSpec((n, f), lambda: (0, 0)),
                  pl.BlockSpec((n, n), lambda: (0, 0)),
                  pl.BlockSpec((8, f, f), lambda: (0, 0, 0))],
        out_specs=(pl.BlockSpec((n, f), lambda: (0, 0)),
                   pl.BlockSpec((n, f), lambda: (0, 0))),
        cost_estimate=pl.CostEstimate(
            flops=8 * (2 * n * f * f + 2 * n * n * f),
            transcendentals=0,
            bytes_accessed=n * n * 2 + n * f * 2 + 8 * f * f * 2 + 2 * n * f * 4),
        compiler_params=pltpu.CompilerParams(**cp1_kwargs),
    )(x_pad, adj_bf, w_stack)

    # ---- call 2: adjacency reconstruction (row/col tiled, megacore) ---------
    tm = _pick_tile(n)
    tn = tm
    adj_hat = pl.pallas_call(
        _adj_recon_kernel,
        out_shape=jax.ShapeDtypeStruct((n, n), jnp.float32),
        grid=(n // tm, n // tn),
        in_specs=[pl.BlockSpec((tm, f), lambda i, j: (i, 0)),   # z_gae row tile
                  pl.BlockSpec((tm, f), lambda i, j: (i, 0)),   # z_hat row tile
                  pl.BlockSpec((tn, f), lambda i, j: (j, 0)),   # z_gae col tile
                  pl.BlockSpec((tn, f), lambda i, j: (j, 0))],  # z_hat col tile
        out_specs=pl.BlockSpec((tm, tn), lambda i, j: (i, j)),
        cost_estimate=pl.CostEstimate(
            flops=2 * (2 * n * n * f),
            transcendentals=2 * n * n,
            bytes_accessed=4 * n * f * 4 + n * n * 4),
        compiler_params=pltpu.CompilerParams(
            dimension_semantics=("parallel", "parallel")),
    )(z_gae_pad, z_hat_pad, z_gae_pad, z_hat_pad)

    # Slice the lane-padded slabs back to the module's output widths.
    return z_gae_pad[:, :n_z], z_hat_pad[:, :n_input], adj_hat


# ----------------------------------------------------------------------------
# Parameter init (xavier_uniform_, deterministic)
# ----------------------------------------------------------------------------
def xavier_uniform(key, in_f, out_f):
    bound = jnp.sqrt(6.0 / (in_f + out_f))
    return jax.random.uniform(key, (in_f, out_f), jnp.float32, -bound, bound)


def init_gae_params(key, gae_n_enc_1, gae_n_enc_2, gae_n_enc_3,
                    gae_n_dec_1, gae_n_dec_2, gae_n_dec_3, n_input, n_z):
    dims = [
        (n_input, gae_n_enc_1), (gae_n_enc_1, gae_n_enc_2),
        (gae_n_enc_2, gae_n_enc_3), (gae_n_enc_3, n_z),
        (n_z, gae_n_dec_1), (gae_n_dec_1, gae_n_dec_2),
        (gae_n_dec_2, gae_n_dec_3), (gae_n_dec_3, n_input),
    ]
    keys = jax.random.split(key, len(dims))
    return [xavier_uniform(k, i, o) for k, (i, o) in zip(keys, dims)]


# ----------------------------------------------------------------------------
# Pure-JAX reference with the SAME arithmetic (bf16 MXU operands, f32 accum)
# ----------------------------------------------------------------------------
def gae_forward_ref(x, adj, weights):
    adj_bf = adj.astype(jnp.bfloat16)
    h = x.astype(jnp.bfloat16)
    z_gae = None
    for layer, w in enumerate(weights):
        proj = jnp.dot(h, w.astype(jnp.bfloat16),
                       preferred_element_type=jnp.float32)
        out = jnp.dot(adj_bf, proj.astype(jnp.bfloat16),
                      preferred_element_type=jnp.float32)
        if layer != 3:
            out = jnp.maximum(out, 0.0)
        if layer == 3:
            z_gae = out
        h = out.astype(jnp.bfloat16)
    z_hat = out

    def gram_sig(z):
        zb = z.astype(jnp.bfloat16)
        return _sigmoid(jnp.dot(zb, zb.T, preferred_element_type=jnp.float32))

    adj_hat = gram_sig(z_gae) + gram_sig(z_hat)
    return z_gae, z_hat, adj_hat


if __name__ == "__main__":
    N = 256
    n_input = 32
    dims = dict(gae_n_enc_1=64, gae_n_enc_2=64, gae_n_enc_3=32,
                gae_n_dec_1=32, gae_n_dec_2=64, gae_n_dec_3=64,
                n_input=n_input, n_z=16)

    key = jax.random.PRNGKey(0)
    k_x, k_adj, k_w = jax.random.split(key, 3)

    x = jax.random.normal(k_x, (N, n_input), jnp.float32)

    # Symmetric, row-normalized dense adjacency (stand-in for the sparse adj).
    a = (jax.random.uniform(k_adj, (N, N)) > 0.95).astype(jnp.float32)
    a = jnp.maximum(a, a.T) + jnp.eye(N, dtype=jnp.float32)
    adj = a / jnp.sum(a, axis=1, keepdims=True)

    weights = init_gae_params(k_w, **dims)

    z_gae, z_hat, adj_hat = gae_forward(x, adj, weights)
    jax.block_until_ready((z_gae, z_hat, adj_hat))

    assert z_gae.shape == (N, dims["n_z"])
    assert z_hat.shape == (N, n_input)
    assert adj_hat.shape == (N, N)

    # Compare against a pure-JAX reference that uses the identical bf16-operand
    # / f32-accumulation arithmetic (both run the same MXU ops on TPU).
    r_gae, r_hat, r_adj = gae_forward_ref(x, adj, weights)
    assert jnp.allclose(z_gae, r_gae, atol=2e-2, rtol=2e-2)
    assert jnp.allclose(z_hat, r_hat, atol=2e-2, rtol=2e-2)
    assert jnp.allclose(adj_hat, r_adj, atol=2e-2, rtol=2e-2)

    print("KERNEL_OK")
</pallas_src>

<mosaic_0001>
module attributes {stable_mosaic.version = 11 : i64} {
  func.func @_gae_stack_kernel(%arg0: memref<256x128xbf16, #tpu.memory_space<vmem>>, %arg1: memref<256x256xbf16, #tpu.memory_space<vmem>>, %arg2: memref<8x128x128xbf16, #tpu.memory_space<vmem>>, %arg3: memref<256x128xf32, #tpu.memory_space<vmem>>, %arg4: memref<256x128xf32, #tpu.memory_space<vmem>>) attributes {dimension_semantics = [], scalar_prefetch = 0 : i64, scratch_operands = 0 : i64, tpu.core_type = #tpu.core_type<tc>} {
    %c0 = arith.constant 0 : index
    %c0_0 = arith.constant 0 : index
    %0 = vector.load %arg1[%c0, %c0_0] : memref<256x256xbf16, #tpu.memory_space<vmem>>, vector<256x256xbf16>
    %c0_1 = arith.constant 0 : index
    %c0_2 = arith.constant 0 : index
    %1 = vector.load %arg0[%c0_1, %c0_2] : memref<256x128xbf16, #tpu.memory_space<vmem>>, vector<256x128xbf16>
    %c0_3 = arith.constant 0 : index
    %c0_4 = arith.constant 0 : index
    %c0_5 = arith.constant 0 : index
    %2 = vector.load %arg2[%c0_3, %c0_4, %c0_5] : memref<8x128x128xbf16, #tpu.memory_space<vmem>>, vector<1x128x128xbf16>
    %3 = vector.shape_cast %2 : vector<1x128x128xbf16> to vector<128x128xbf16>
    %cst = arith.constant dense<0.000000e+00> : vector<256x128xf32>
    %4 = tpu.matmul %1, %3, %cst {dimension_numbers = #tpu.dot_dimension_numbers<[1], [0], [0], [1], [0, 0, 1, 1], [], []>} : vector<256x128xbf16>, vector<128x128xbf16>, vector<256x128xf32> -> vector<256x128xf32>
    %5 = arith.truncf %4 : vector<256x128xf32> to vector<256x128xbf16>
    %cst_6 = arith.constant dense<0.000000e+00> : vector<256x128xf32>
    %6 = tpu.matmul %0, %5, %cst_6 {dimension_numbers = #tpu.dot_dimension_numbers<[1], [0], [0], [1], [0, 0, 1, 1], [], []>} : vector<256x256xbf16>, vector<256x128xbf16>, vector<256x128xf32> -> vector<256x128xf32>
    %cst_7 = arith.constant 0.000000e+00 : f32
    %7 = vector.broadcast %cst_7 : f32 to vector<256x128xf32>
    %8 = arith.maximumf %6, %7 : vector<256x128xf32>
    %9 = arith.truncf %8 : vector<256x128xf32> to vector<256x128xbf16>
    %c1 = arith.constant 1 : index
    %c0_8 = arith.constant 0 : index
    %c0_9 = arith.constant 0 : index
    %10 = vector.load %arg2[%c1, %c0_8, %c0_9] : memref<8x128x128xbf16, #tpu.memory_space<vmem>>, vector<1x128x128xbf16>
    %11 = vector.shape_cast %10 : vector<1x128x128xbf16> to vector<128x128xbf16>
    %cst_10 = arith.constant dense<0.000000e+00> : vector<256x128xf32>
    %12 = tpu.matmul %9, %11, %cst_10 {dimension_numbers = #tpu.dot_dimension_numbers<[1], [0], [0], [1], [0, 0, 1, 1], [], []>} : vector<256x128xbf16>, vector<128x128xbf16>, vector<256x128xf32> -> vector<256x128xf32>
    %13 = arith.truncf %12 : vector<256x128xf32> to vector<256x128xbf16>
    %cst_11 = arith.constant dense<0.000000e+00> : vector<256x128xf32>
    %14 = tpu.matmul %0, %13, %cst_11 {dimension_numbers = #tpu.dot_dimension_numbers<[1], [0], [0], [1], [0, 0, 1, 1], [], []>} : vector<256x256xbf16>, vector<256x128xbf16>, vector<256x128xf32> -> vector<256x128xf32>
    %cst_12 = arith.constant 0.000000e+00 : f32
    %15 = vector.broadcast %cst_12 : f32 to vector<256x128xf32>
    %16 = arith.maximumf %14, %15 : vector<256x128xf32>
    %17 = arith.truncf %16 : vector<256x128xf32> to vector<256x128xbf16>
    %c2 = arith.constant 2 : index
    %c0_13 = arith.constant 0 : index
    %c0_14 = arith.constant 0 : index
    %18 = vector.load %arg2[%c2, %c0_13, %c0_14] : memref<8x128x128xbf16, #tpu.memory_space<vmem>>, vector<1x128x128xbf16>
    %19 = vector.shape_cast %18 : vector<1x128x128xbf16> to vector<128x128xbf16>
    %cst_15 = arith.constant dense<0.000000e+00> : vector<256x128xf32>
    %20 = tpu.matmul %17, %19, %cst_15 {dimension_numbers = #tpu.dot_dimension_numbers<[1], [0], [0], [1], [0, 0, 1, 1], [], []>} : vector<256x128xbf16>, vector<128x128xbf16>, vector<256x128xf32> -> vector<256x128xf32>
    %21 = arith.truncf %20 : vector<256x128xf32> to vector<256x128xbf16>
    %cst_16 = arith.constant dense<0.000000e+00> : vector<256x128xf32>
    %22 = tpu.matmul %0, %21, %cst_16 {dimension_numbers = #tpu.dot_dimension_numbers<[1], [0], [0], [1], [0, 0, 1, 1], [], []>} : vector<256x256xbf16>, vector<256x128xbf16>, vector<256x128xf32> -> vector<256x128xf32>
    %cst_17 = arith.constant 0.000000e+00 : f32
    %23 = vector.broadcast %cst_17 : f32 to vector<256x128xf32>
    %24 = arith.maximumf %22, %23 : vector<256x128xf32>
    %25 = arith.truncf %24 : vector<256x128xf32> to vector<256x128xbf16>
    %c3 = arith.constant 3 : index
    %c0_18 = arith.constant 0 : index
    %c0_19 = arith.constant 0 : index
    %26 = vector.load %arg2[%c3, %c0_18, %c0_19] : memref<8x128x128xbf16, #tpu.memory_space<vmem>>, vector<1x128x128xbf16>
    %27 = vector.shape_cast %26 : vector<1x128x128xbf16> to vector<128x128xbf16>
    %cst_20 = arith.constant dense<0.000000e+00> : vector<256x128xf32>
    %28 = tpu.matmul %25, %27, %cst_20 {dimension_numbers = #tpu.dot_dimension_numbers<[1], [0], [0], [1], [0, 0, 1, 1], [], []>} : vector<256x128xbf16>, vector<128x128xbf16>, vector<256x128xf32> -> vector<256x128xf32>
    %29 = arith.truncf %28 : vector<256x128xf32> to vector<256x128xbf16>
    %cst_21 = arith.constant dense<0.000000e+00> : vector<256x128xf32>
    %30 = tpu.matmul %0, %29, %cst_21 {dimension_numbers = #tpu.dot_dimension_numbers<[1], [0], [0], [1], [0, 0, 1, 1], [], []>} : vector<256x256xbf16>, vector<256x128xbf16>, vector<256x128xf32> -> vector<256x128xf32>
    %c0_22 = arith.constant 0 : index
    %c0_23 = arith.constant 0 : index
    %31 = vector.load %arg3[%c0_22, %c0_23] : memref<256x128xf32, #tpu.memory_space<vmem>>, vector<256x128xf32>
    tpu.vector_store %arg3[%c0_22, %c0_23], %30 {strides = array<i32>} : memref<256x128xf32, #tpu.memory_space<vmem>>, vector<256x128xf32>,
    %32 = arith.truncf %30 : vector<256x128xf32> to vector<256x128xbf16>
    %c4 = arith.constant 4 : index
    %c0_24 = arith.constant 0 : index
    %c0_25 = arith.constant 0 : index
    %33 = vector.load %arg2[%c4, %c0_24, %c0_25] : memref<8x128x128xbf16, #tpu.memory_space<vmem>>, vector<1x128x128xbf16>
    %34 = vector.shape_cast %33 : vector<1x128x128xbf16> to vector<128x128xbf16>
    %cst_26 = arith.constant dense<0.000000e+00> : vector<256x128xf32>
    %35 = tpu.matmul %32, %34, %cst_26 {dimension_numbers = #tpu.dot_dimension_numbers<[1], [0], [0], [1], [0, 0, 1, 1], [], []>} : vector<256x128xbf16>, vector<128x128xbf16>, vector<256x128xf32> -> vector<256x128xf32>
    %36 = arith.truncf %35 : vector<256x128xf32> to vector<256x128xbf16>
    %cst_27 = arith.constant dense<0.000000e+00> : vector<256x128xf32>
    %37 = tpu.matmul %0, %36, %cst_27 {dimension_numbers = #tpu.dot_dimension_numbers<[1], [0], [0], [1], [0, 0, 1, 1], [], []>} : vector<256x256xbf16>, vector<256x128xbf16>, vector<256x128xf32> -> vector<256x128xf32>
    %cst_28 = arith.constant 0.000000e+00 : f32
    %38 = vector.broadcast %cst_28 : f32 to vector<256x128xf32>
    %39 = arith.maximumf %37, %38 : vector<256x128xf32>
    %40 = arith.truncf %39 : vector<256x128xf32> to vector<256x128xbf16>
    %c5 = arith.constant 5 : index
    %c0_29 = arith.constant 0 : index
    %c0_30 = arith.constant 0 : index
    %41 = vector.load %arg2[%c5, %c0_29, %c0_30] : memref<8x128x128xbf16, #tpu.memory_space<vmem>>, vector<1x128x128xbf16>
    %42 = vector.shape_cast %41 : vector<1x128x128xbf16> to vector<128x128xbf16>
    %cst_31 = arith.constant dense<0.000000e+00> : vector<256x128xf32>
    %43 = tpu.matmul %40, %42, %cst_31 {dimension_numbers = #tpu.dot_dimension_numbers<[1], [0], [0], [1], [0, 0, 1, 1], [], []>} : vector<256x128xbf16>, vector<128x128xbf16>, vector<256x128xf32> -> vector<256x128xf32>
    %44 = arith.truncf %43 : vector<256x128xf32> to vector<256x128xbf16>
    %cst_32 = arith.constant dense<0.000000e+00> : vector<256x128xf32>
    %45 = tpu.matmul %0, %44, %cst_32 {dimension_numbers = #tpu.dot_dimension_numbers<[1], [0], [0], [1], [0, 0, 1, 1], [], []>} : vector<256x256xbf16>, vector<256x128xbf16>, vector<256x128xf32> -> vector<256x128xf32>
    %cst_33 = arith.constant 0.000000e+00 : f32
    %46 = vector.broadcast %cst_33 : f32 to vector<256x128xf32>
    %47 = arith.maximumf %45, %46 : vector<256x128xf32>
    %48 = arith.truncf %47 : vector<256x128xf32> to vector<256x128xbf16>
    %c6 = arith.constant 6 : index
    %c0_34 = arith.constant 0 : index
    %c0_35 = arith.constant 0 : index
    %49 = vector.load %arg2[%c6, %c0_34, %c0_35] : memref<8x128x128xbf16, #tpu.memory_space<vmem>>, vector<1x128x128xbf16>
    %50 = vector.shape_cast %49 : vector<1x128x128xbf16> to vector<128x128xbf16>
    %cst_36 = arith.constant dense<0.000000e+00> : vector<256x128xf32>
    %51 = tpu.matmul %48, %50, %cst_36 {dimension_numbers = #tpu.dot_dimension_numbers<[1], [0], [0], [1], [0, 0, 1, 1], [], []>} : vector<256x128xbf16>, vector<128x128xbf16>, vector<256x128xf32> -> vector<256x128xf32>
    %52 = arith.truncf %51 : vector<256x128xf32> to vector<256x128xbf16>
    %cst_37 = arith.constant dense<0.000000e+00> : vector<256x128xf32>
    %53 = tpu.matmul %0, %52, %cst_37 {dimension_numbers = #tpu.dot_dimension_numbers<[1], [0], [0], [1], [0, 0, 1, 1], [], []>} : vector<256x256xbf16>, vector<256x128xbf16>, vector<256x128xf32> -> vector<256x128xf32>
    %cst_38 = arith.constant 0.000000e+00 : f32
    %54 = vector.broadcast %cst_38 : f32 to vector<256x128xf32>
    %55 = arith.maximumf %53, %54 : vector<256x128xf32>
    %56 = arith.truncf %55 : vector<256x128xf32> to vector<256x128xbf16>
    %c7 = arith.constant 7 : index
    %c0_39 = arith.constant 0 : index
    %c0_40 = arith.constant 0 : index
    %57 = vector.load %arg2[%c7, %c0_39, %c0_40] : memref<8x128x128xbf16, #tpu.memory_space<vmem>>, vector<1x128x128xbf16>
    %58 = vector.shape_cast %57 : vector<1x128x128xbf16> to vector<128x128xbf16>
    %cst_41 = arith.constant dense<0.000000e+00> : vector<256x128xf32>
    %59 = tpu.matmul %56, %58, %cst_41 {dimension_numbers = #tpu.dot_dimension_numbers<[1], [0], [0], [1], [0, 0, 1, 1], [], []>} : vector<256x128xbf16>, vector<128x128xbf16>, vector<256x128xf32> -> vector<256x128xf32>
    %60 = arith.truncf %59 : vector<256x128xf32> to vector<256x128xbf16>
    %cst_42 = arith.constant dense<0.000000e+00> : vector<256x128xf32>
    %61 = tpu.matmul %0, %60, %cst_42 {dimension_numbers = #tpu.dot_dimension_numbers<[1], [0], [0], [1], [0, 0, 1, 1], [], []>} : vector<256x256xbf16>, vector<256x128xbf16>, vector<256x128xf32> -> vector<256x128xf32>
    %cst_43 = arith.constant 0.000000e+00 : f32
    %62 = vector.broadcast %cst_43 : f32 to vector<256x128xf32>
    %63 = arith.maximumf %61, %62 : vector<256x128xf32>
    %c0_44 = arith.constant 0 : index
    %c0_45 = arith.constant 0 : index
    %64 = vector.load %arg4[%c0_44, %c0_45] : memref<256x128xf32, #tpu.memory_space<vmem>>, vector<256x128xf32>
    tpu.vector_store %arg4[%c0_44, %c0_45], %63 {strides = array<i32>} : memref<256x128xf32, #tpu.memory_space<vmem>>, vector<256x128xf32>,
    return
  }
}

module attributes {stable_mosaic.version = 11 : i64} {
  func.func @_adj_recon_kernel(%arg0: i32, %arg1: i32, %arg2: memref<128x128xf32, #tpu.memory_space<vmem>>, %arg3: memref<128x128xf32, #tpu.memory_space<vmem>>, %arg4: memref<128x128xf32, #tpu.memory_space<vmem>>, %arg5: memref<128x128xf32, #tpu.memory_space<vmem>>, %arg6: memref<128x128xf32, #tpu.memory_space<vmem>>) attributes {dimension_semantics = [#tpu.dimension_semantics<parallel>, #tpu.dimension_semantics<parallel>], iteration_bounds = array<i64: 2, 2>, scalar_prefetch = 0 : i64, scratch_operands = 0 : i64, tpu.core_type = #tpu.core_type<tc>, window_params = [{transform_indices = @transform_0, window_bounds = array<i64: 128, 128>}, {transform_indices = @transform_1, window_bounds = array<i64: 128, 128>}, {transform_indices = @transform_2, window_bounds = array<i64: 128, 128>}, {transform_indices = @transform_3, window_bounds = array<i64: 128, 128>}, {transform_indices = @transform_4, window_bounds = array<i64: 128, 128>}]} {
    %c0 = arith.constant 0 : index
    %c0_0 = arith.constant 0 : index
    %0 = vector.load %arg2[%c0, %c0_0] : memref<128x128xf32, #tpu.memory_space<vmem>>, vector<128x128xf32>
    %1 = arith.truncf %0 : vector<128x128xf32> to vector<128x128xbf16>
    %c0_1 = arith.constant 0 : index
    %c0_2 = arith.constant 0 : index
    %2 = vector.load %arg4[%c0_1, %c0_2] : memref<128x128xf32, #tpu.memory_space<vmem>>, vector<128x128xf32>
    %3 = arith.truncf %2 : vector<128x128xf32> to vector<128x128xbf16>
    %cst = arith.constant dense<0.000000e+00> : vector<128x128xf32>
    %4 = tpu.matmul %1, %3, %cst {dimension_numbers = #tpu.dot_dimension_numbers<[1], [1], [0], [0], [0, 0, 1, 0], [], []>} : vector<128x128xbf16>, vector<128x128xbf16>, vector<128x128xf32> -> vector<128x128xf32>
    %cst_3 = arith.constant 0.000000e+00 : f32
    %5 = vector.broadcast %cst_3 : f32 to vector<128x128xf32>
    %6 = arith.subf %5, %4 : vector<128x128xf32>
    %7 = math.exp %6 : vector<128x128xf32>
    %cst_4 = arith.constant 1.000000e+00 : f32
    %8 = vector.broadcast %cst_4 : f32 to vector<128x128xf32>
    %9 = arith.addf %8, %7 : vector<128x128xf32>
    %cst_5 = arith.constant 1.000000e+00 : f32
    %10 = vector.broadcast %cst_5 : f32 to vector<128x128xf32>
    %11 = arith.divf %10, %9 : vector<128x128xf32>
    %c0_6 = arith.constant 0 : index
    %c0_7 = arith.constant 0 : index
    %12 = vector.load %arg6[%c0_6, %c0_7] : memref<128x128xf32, #tpu.memory_space<vmem>>, vector<128x128xf32>
    tpu.vector_store %arg6[%c0_6, %c0_7], %11 {strides = array<i32>} : memref<128x128xf32, #tpu.memory_space<vmem>>, vector<128x128xf32>,
    %c0_8 = arith.constant 0 : index
    %c0_9 = arith.constant 0 : index
    %13 = vector.load %arg3[%c0_8, %c0_9] : memref<128x128xf32, #tpu.memory_space<vmem>>, vector<128x128xf32>
    %14 = arith.truncf %13 : vector<128x128xf32> to vector<128x128xbf16>
    %c0_10 = arith.constant 0 : index
    %c0_11 = arith.constant 0 : index
    %15 = vector.load %arg5[%c0_10, %c0_11] : memref<128x128xf32, #tpu.memory_space<vmem>>, vector<128x128xf32>
    %16 = arith.truncf %15 : vector<128x128xf32> to vector<128x128xbf16>
    %cst_12 = arith.constant dense<0.000000e+00> : vector<128x128xf32>
    %17 = tpu.matmul %14, %16, %cst_12 {dimension_numbers = #tpu.dot_dimension_numbers<[1], [1], [0], [0], [0, 0, 1, 0], [], []>} : vector<128x128xbf16>, vector<128x128xbf16>, vector<128x128xf32> -> vector<128x128xf32>
    %c0_13 = arith.constant 0 : index
    %c0_14 = arith.constant 0 : index
    %18 = vector.load %arg6[%c0_13, %c0_14] : memref<128x128xf32, #tpu.memory_space<vmem>>, vector<128x128xf32>
    %cst_15 = arith.constant 0.000000e+00 : f32
    %19 = vector.broadcast %cst_15 : f32 to vector<128x128xf32>
    %20 = arith.subf %19, %17 : vector<128x128xf32>
    %21 = math.exp %20 : vector<128x128xf32>
    %cst_16 = arith.constant 1.000000e+00 : f32
    %22 = vector.broadcast %cst_16 : f32 to vector<128x128xf32>
    %23 = arith.addf %22, %21 : vector<128x128xf32>
    %cst_17 = arith.constant 1.000000e+00 : f32
    %24 = vector.broadcast %cst_17 : f32 to vector<128x128xf32>
    %25 = arith.divf %24, %23 : vector<128x128xf32>
    %26 = arith.addf %18, %25 : vector<128x128xf32>
    %c0_18 = arith.constant 0 : index
    %c0_19 = arith.constant 0 : index
    %27 = vector.load %arg6[%c0_18, %c0_19] : memref<128x128xf32, #tpu.memory_space<vmem>>, vector<128x128xf32>
    tpu.vector_store %arg6[%c0_18, %c0_19], %26 {strides = array<i32>} : memref<128x128xf32, #tpu.memory_space<vmem>>, vector<128x128xf32>,
    return
  }
  func.func @transform_0(%arg0: i32, %arg1: i32) -> (i32, i32) {
    %c0_i32 = arith.constant 0 : i32
    %c0_i32_0 = arith.constant 0 : i32
    return %arg0, %c0_i32 : i32, i32
  }
  func.func @transform_1(%arg0: i32, %arg1: i32) -> (i32, i32) {
    %c0_i32 = arith.constant 0 : i32
    %c0_i32_0 = arith.constant 0 : i32
    return %arg0, %c0_i32 : i32, i32
  }
  func.func @transform_2(%arg0: i32, %arg1: i32) -> (i32, i32) {
    %c0_i32 = arith.constant 0 : i32
    %c0_i32_0 = arith.constant 0 : i32
    return %arg1, %c0_i32 : i32, i32
  }
  func.func @transform_3(%arg0: i32, %arg1: i32) -> (i32, i32) {
    %c0_i32 = arith.constant 0 : i32
    %c0_i32_0 = arith.constant 0 : i32
    return %arg1, %c0_i32 : i32, i32
  }
  func.func @transform_4(%arg0: i32, %arg1: i32) -> (i32, i32) {
    %c0_i32 = arith.constant 0 : i32
    return %arg0, %arg1 : i32, i32
  }
}

</mosaic_0001>

<llo_original>
// kernel: gae_forward.3
$region0: #{gae_forward.3}
  #allocation0 [shape = 'u32[]', space=smem, size = 0x4, offset = 0x4, fixed_abs, tag = 'smem constant byte address 0x4 - core index']
  #allocation1 [shape = 'u32[72,128]{1,0:T(1,128)}', space=vmem, size = 0x9000, scoped, tag = 'internal scratch']
  %s0 = inlined_call_operand.vmem [shape: f32[256,128], index: 0, kind: input, shape index: {}, may-alias: {0,2}]
  %s1 = inlined_call_operand.vmem [shape: f32[256,128], index: 1, kind: input, shape index: {}, may-alias: {1,3}]
  %s2 = inlined_call_operand.vmem [shape: f32[256,128], index: 2, kind: input, shape index: {}, may-alias: {0,2}]
  %s3 = inlined_call_operand.vmem [shape: f32[256,128], index: 3, kind: input, shape index: {}, may-alias: {1,3}]
  %s4 = inlined_call_operand.hbm [shape: f32[256,256], index: 4, kind: output, shape index: {}]
  %s5 = sld [smem:[#allocation0]]
  $region49: #{gae_forward.3} parent=0
    _
  %s7 = ssub.s32 1, %s5
  %s8 = scalar_select 0, %s7, %s5
  $region1: #{gae_forward.3} parent=0
    #allocation2 [shape = 'u8[131072]{0}', space=vmem, size = 0x20000, scoped, tag = 'output window, operand 0']
    #allocation3 [shape = 's32[2]{0}', space=sflag, size = 0x8, scoped, tag = 'scoped memory for gae_forward.3']
    %9 = vsyncpa [#allocation3], 0
    %s10 = scalar_lea.sflag [#allocation3], 1
    %11 = vsyncpa %s10, 0
    loop: start=0, step=1, limit=6
    $region2: #{gae_forward.3} parent=1 // loop_pre_header
      _
    $region3: #{gae_forward.3} parent=1 // loop_header
      %s13 = sphi 0, %s17
      %p14 = scmp.ge.s32.totalorder %s13, 6
      %s20 = sphi 0, %s32
      %s21 = sphi 0, %s28
      %s22 = sphi 0, %s20
      %s23 = sphi 0, %s21
      %s24 = sphi 0, %s22
      %s25 = sphi 0, %s23
      %s35 = sphi 0, %s37
      %s38 = sphi 0, %s35
      %s39 = sphi 0, %s38
      %s55 = sphi 0, %s39
      %s61 = sphi 0, %s63
      %s64 = sphi 0, %s61
      %s65 = sphi 0, %s64
      %s81 = sphi 0, %s65
      %s87 = sphi 0, %s89
      %s90 = sphi 0, %s87
      %s91 = sphi 0, %s90
      %s107 = sphi 0, %s91
      %s113 = sphi 0, %s115
      %s116 = sphi 0, %s113
      %s117 = sphi 0, %s116
      %s133 = sphi 0, %s117
      %s141 = sphi 0, %s143
      %s144 = sphi 0, %s141
      %s145 = sphi 0, %s144
      %s161 = sphi 0, %s145
    $region4: #{gae_forward.3} parent=1 // loop_header_branch
      %16 = sbr.rel (%p14) target = $region8
    $region5: #{gae_forward.3} parent=1 // loop_body
      %s18 = ssub.s32 %s13, 1
      %s19 = ssub.s32 %s13, 2
      %s26 = sadd.s32 1, %s21
      %p27 = scmp.ge.s32.totalorder %s26, 2
      %s28 = scalar_select %p27, 0, %s26
      %s29 = sadd.s32 1, %s20
      %s30 = scalar_select %p27, %s29, %s20
      %p31 = scmp.ge.s32.totalorder %s30, 2
      %s32 = scalar_select %p31, 0, %s30
      %s33 = ssub.s32 %s20, %s32
      %p34 = scmp.eq.s32.totalorder %s33, 0
      %s36 = sadd.s32 %s35, 1
      %s37 = scalar_select %p34, %s35, %s36
      %p40 = pneg %p34
      %p41 = scmp.eq.s32.totalorder %s13, 3
      %p42 = por %p40, %p41
      %p43 = scmp.ne.s32.totalorder %s35, %s38
      %p44 = scmp.eq.s32.totalorder %s13, 0
      %p45 = por %p43, %p44
      %p46 = scmp.ne.s32.totalorder %s35, %s38
      %p47 = scmp.eq.s32.totalorder %s18, 3
      %p48 = por %p46, %p47
      %p49 = scmp.ne.s32.totalorder %s38, %s39
      %p50 = scmp.eq.s32.totalorder %s18, 0
      %p51 = por %p49, %p50
      %p52 = scmp.ne.s32.totalorder %s38, %s39
      %p53 = scmp.eq.s32.totalorder %s19, 3
      %p54 = por %p52, %p53
      %p56 = scmp.ne.s32.totalorder %s39, %s55
      %p57 = scmp.eq.s32.totalorder %s19, 0
      %p58 = por %p56, %p57
      %s59 = ssub.s32 %s20, %s32
      %p60 = scmp.eq.s32.totalorder %s59, 0
      %s62 = sadd.s32 %s61, 1
      %s63 = scalar_select %p60, %s61, %s62
      %p66 = pneg %p60
      %p67 = scmp.eq.s32.totalorder %s13, 3
      %p68 = por %p66, %p67
      %p69 = scmp.ne.s32.totalorder %s61, %s64
      %p70 = scmp.eq.s32.totalorder %s13, 0
      %p71 = por %p69, %p70
      %p72 = scmp.ne.s32.totalorder %s61, %s64
      %p73 = scmp.eq.s32.totalorder %s18, 3
      %p74 = por %p72, %p73
      %p75 = scmp.ne.s32.totalorder %s64, %s65
      %p76 = scmp.eq.s32.totalorder %s18, 0
      %p77 = por %p75, %p76
      %p78 = scmp.ne.s32.totalorder %s64, %s65
      %p79 = scmp.eq.s32.totalorder %s19, 3
      %p80 = por %p78, %p79
      %p82 = scmp.ne.s32.totalorder %s65, %s81
      %p83 = scmp.eq.s32.totalorder %s19, 0
      %p84 = por %p82, %p83
      %s85 = ssub.s32 %s21, %s28
      %p86 = scmp.eq.s32.totalorder %s85, 0
      %s88 = sadd.s32 %s87, 1
      %s89 = scalar_select %p86, %s87, %s88
      %p92 = pneg %p86
      %p93 = scmp.eq.s32.totalorder %s13, 3
      %p94 = por %p92, %p93
      %p95 = scmp.ne.s32.totalorder %s87, %s90
      %p96 = scmp.eq.s32.totalorder %s13, 0
      %p97 = por %p95, %p96
      %p98 = scmp.ne.s32.totalorder %s87, %s90
      %p99 = scmp.eq.s32.totalorder %s18, 3
      %p100 = por %p98, %p99
      %p101 = scmp.ne.s32.totalorder %s90, %s91
      %p102 = scmp.eq.s32.totalorder %s18, 0
      %p103 = por %p101, %p102
      %p104 = scmp.ne.s32.totalorder %s90, %s91
      %p105 = scmp.eq.s32.totalorder %s19, 3
      %p106 = por %p104, %p105
      %p108 = scmp.ne.s32.totalorder %s91, %s107
      %p109 = scmp.eq.s32.totalorder %s19, 0
      %p110 = por %p108, %p109
      %s111 = ssub.s32 %s21, %s28
      %p112 = scmp.eq.s32.totalorder %s111, 0
      %s114 = sadd.s32 %s113, 1
      %s115 = scalar_select %p112, %s113, %s114
      %p118 = pneg %p112
      %p119 = scmp.eq.s32.totalorder %s13, 3
      %p120 = por %p118, %p119
      %p121 = scmp.ne.s32.totalorder %s113, %s116
      %p122 = scmp.eq.s32.totalorder %s13, 0
      %p123 = por %p121, %p122
      %p124 = scmp.ne.s32.totalorder %s113, %s116
      %p125 = scmp.eq.s32.totalorder %s18, 3
      %p126 = por %p124, %p125
      %p127 = scmp.ne.s32.totalorder %s116, %s117
      %p128 = scmp.eq.s32.totalorder %s18, 0
      %p129 = por %p127, %p128
      %p130 = scmp.ne.s32.totalorder %s116, %s117
      %p131 = scmp.eq.s32.totalorder %s19, 3
      %p132 = por %p130, %p131
      %p134 = scmp.ne.s32.totalorder %s117, %s133
      %p135 = scmp.eq.s32.totalorder %s19, 0
      %p136 = por %p134, %p135
      %s137 = ssub.s32 %s20, %s32
      %s138 = ssub.s32 %s21, %s28
      %s139 = sor.u32 %s137, %s138
      %p140 = scmp.eq.s32.totalorder %s139, 0
      %s142 = sadd.s32 %s141, 1
      %s143 = scalar_select %p140, %s141, %s142
      %p146 = pneg %p140
      %p147 = scmp.eq.s32.totalorder %s13, 3
      %p148 = por %p146, %p147
      %p149 = scmp.ne.s32.totalorder %s141, %s144
      %p150 = scmp.eq.s32.totalorder %s13, 0
      %p151 = por %p149, %p150
      %p152 = scmp.ne.s32.totalorder %s141, %s144
      %p153 = scmp.eq.s32.totalorder %s18, 3
      %p154 = por %p152, %p153
      %p155 = scmp.ne.s32.totalorder %s144, %s145
      %p156 = scmp.eq.s32.totalorder %s18, 0
      %p157 = por %p155, %p156
      %p158 = scmp.ne.s32.totalorder %s144, %s145
      %p159 = scmp.eq.s32.totalorder %s19, 3
      %p160 = por %p158, %p159
      %p162 = scmp.ne.s32.totalorder %s145, %s161
      %p163 = scmp.eq.s32.totalorder %s19, 0
      %p164 = por %p162, %p163
      %p165 = scmp.le.s32.totalorder 1, %s13
      %p166 = scmp.lt.s32.totalorder %s13, 5
      %p167 = pnand %p165, %p166
      %p168 = pneg %p167
      // Predicated region
      $region9: #{gae_forward.3} parent=5 // pred_check
        _
      $region10: #{gae_forward.3} parent=5 // pred_check_branch
        %170 = sbr.rel (%p167) target = $region12
      $region11: #{gae_forward.3} parent=5 // pred_region
        %s171 = ssub.s32 %s13, 1
      $region12: #{gae_forward.3} parent=5 // pred_fallthru
        _
      %p172 = scmp.lt.s32.totalorder %s13, 4
      // Predicated region
      $region13: #{gae_forward.3} parent=5 // pred_check
        %p173 = pneg %p172
      $region14: #{gae_forward.3} parent=5 // pred_check_branch
        %175 = sbr.rel (%p173) target = $region16
      $region15: #{gae_forward.3} parent=5 // pred_region
        // Predicated region
        $region17: #{gae_forward.3} parent=15 // pred_check
          %p176 = pneg %p45
        $region18: #{gae_forward.3} parent=15 // pred_check_branch
          %178 = sbr.rel (%p176) target = $region20
        $region19: #{gae_forward.3} parent=15 // pred_region
          %s179 = smul.u32 16, %s20
          %p180 = scmp.lt.s32.totalorder %s179, 31
          %s181 = scalar_select %p180, %s179, 31
          %s182 = smul.addr %s181, 8
          %s183 = scalar_lea.vmem %s0, %s182
          %s184 = smul.u32 16, %s20
        $region20: #{gae_forward.3} parent=15 // pred_fallthru
          _
        // Predicated region
        $region21: #{gae_forward.3} parent=15 // pred_check
          %p185 = pneg %p71
        $region22: #{gae_forward.3} parent=15 // pred_check_branch
          %187 = sbr.rel (%p185) target = $region24
        $region23: #{gae_forward.3} parent=15 // pred_region
          %s188 = smul.u32 16, %s20
          %p189 = scmp.lt.s32.totalorder %s188, 31
          %s190 = scalar_select %p189, %s188, 31
          %s191 = smul.addr %s190, 8
          %s192 = scalar_lea.vmem %s1, %s191
          %s193 = smul.u32 16, %s20
        $region24: #{gae_forward.3} parent=15 // pred_fallthru
          _
        // Predicated region
        $region25: #{gae_forward.3} parent=15 // pred_check
          %p194 = pneg %p97
        $region26: #{gae_forward.3} parent=15 // pred_check_branch
          %196 = sbr.rel (%p194) target = $region28
        $region27: #{gae_forward.3} parent=15 // pred_region
          %s197 = smul.u32 16, %s21
          %p198 = scmp.lt.s32.totalorder %s197, 31
          %s199 = scalar_select %p198, %s197, 31
          %s200 = smul.addr %s199, 8
          %s201 = scalar_lea.vmem %s2, %s200
          %s202 = smul.u32 16, %s21
        $region28: #{gae_forward.3} parent=15 // pred_fallthru
          _
        // Predicated region
        $region29: #{gae_forward.3} parent=15 // pred_check
          %p203 = pneg %p123
        $region30: #{gae_forward.3} parent=15 // pred_check_branch
          %205 = sbr.rel (%p203) target = $region32
        $region31: #{gae_forward.3} parent=15 // pred_region
          %s206 = smul.u32 16, %s21
          %p207 = scmp.lt.s32.totalorder %s206, 31
          %s208 = scalar_select %p207, %s206, 31
          %s209 = smul.addr %s208, 8
          %s210 = scalar_lea.vmem %s3, %s209
          %s211 = smul.u32 16, %s21
        $region32: #{gae_forward.3} parent=15 // pred_fallthru
          _
      $region16: #{gae_forward.3} parent=5 // pred_fallthru
        _
      %p212 = scmp.le.s32.totalorder 1, %s13
      %p213 = scmp.lt.s32.totalorder %s13, 5
      %p214 = pnand %p212, %p213
      %p215 = pneg %p214
      // Predicated region
      $region33: #{gae_forward.3} parent=5 // pred_check
        _
      $region34: #{gae_forward.3} parent=5 // pred_check_branch
        %217 = sbr.rel (%p214) target = $region36
      $region35: #{gae_forward.3} parent=5 // pred_region
        %s218 = ssub.s32 %s13, 1
        %s219 = smul.u32 16, %s22
        %p220 = scmp.lt.s32.totalorder %s219, 31
        %s221 = scalar_select %p220, %s219, 31
        %s222 = smul.addr %s221, 8
        %s223 = scalar_lea.vmem %s0, %s222
        %p224 = pneg %p51
        %p225 = pneg %p48
        %s226 = smul.u32 16, %s22
        %p227 = scmp.lt.s32.totalorder %s226, 31
        %s228 = scalar_select %p227, %s226, 31
        %s229 = smul.addr %s228, 8
        %s230 = scalar_lea.vmem %s1, %s229
        %p231 = pneg %p77
        %p232 = pneg %p74
        %s233 = smul.u32 16, %s23
        %p234 = scmp.lt.s32.totalorder %s233, 31
        %s235 = scalar_select %p234, %s233, 31
        %s236 = smul.addr %s235, 8
        %s237 = scalar_lea.vmem %s2, %s236
        %p238 = pneg %p103
        %p239 = pneg %p100
        %s240 = smul.u32 16, %s23
        %p241 = scmp.lt.s32.totalorder %s240, 31
        %s242 = scalar_select %p241, %s240, 31
        %s243 = smul.addr %s242, 8
        %s244 = scalar_lea.vmem %s3, %s243
        %p245 = pneg %p129
        %p246 = pneg %p126
        %p247 = pneg %p157
        %p248 = pneg %p154
        %s249 = sand.u32 %s144, 1
        %s250 = scalar_lea.sflag [#allocation3], %s249
        %s251 = sand.u32 %s144, 1
        %s252 = smul.addr %s251, 128
        %s253 = scalar_lea.vmem [#allocation2], %s252
        %s254 = smul.u32 16, %s22
        %p255 = scmp.lt.s32.totalorder %s254, 31
        %s256 = scalar_select %p255, %s254, 31
        %s257 = smul.addr %s256, 8
        %s258 = scalar_lea.vmem %s0, %s257
        %s259 = smul.u32 16, %s22
        %s260 = smul.u32 16, %s22
        %p261 = scmp.lt.s32.totalorder %s260, 31
        %s262 = scalar_select %p261, %s260, 31
        %s263 = smul.addr %s262, 8
        %s264 = scalar_lea.vmem %s1, %s263
        %s265 = smul.u32 16, %s22
        %s266 = smul.u32 16, %s23
        %p267 = scmp.lt.s32.totalorder %s266, 31
        %s268 = scalar_select %p267, %s266, 31
        %s269 = smul.addr %s268, 8
        %s270 = scalar_lea.vmem %s2, %s269
        %s271 = smul.u32 16, %s23
        %s272 = smul.u32 16, %s23
        %p273 = scmp.lt.s32.totalorder %s272, 31
        %s274 = scalar_select %p273, %s272, 31
        %s275 = smul.addr %s274, 8
        %s276 = scalar_lea.vmem %s3, %s275
        %s277 = smul.u32 16, %s23
        %s278 = smul.u32 16, %s22
        %v279 = vld [vmem:[%s258] sm:$0xff]
        %v280 = vld [vmem:[%s258 + $0x8] sm:$0xff]
        %v281 = vld [vmem:[%s258 + $0x10] sm:$0xff]
        %v282 = vld [vmem:[%s258 + $0x18] sm:$0xff]
        %v283 = vld [vmem:[%s258 + $0x20] sm:$0xff]
        %v284 = vld [vmem:[%s258 + $0x28] sm:$0xff]
        %v285 = vld [vmem:[%s258 + $0x30] sm:$0xff]
        %v286 = vld [vmem:[%s258 + $0x38] sm:$0xff]
        %v287 = vld [vmem:[%s258 + $0x40] sm:$0xff]
        %v288 = vld [vmem:[%s258 + $0x48] sm:$0xff]
        %v289 = vld [vmem:[%s258 + $0x50] sm:$0xff]
        %v290 = vld [vmem:[%s258 + $0x58] sm:$0xff]
        %v291 = vld [vmem:[%s258 + $0x60] sm:$0xff]
        %v292 = vld [vmem:[%s258 + $0x68] sm:$0xff]
        %v293 = vld [vmem:[%s258 + $0x70] sm:$0xff]
        %v294 = vld [vmem:[%s258 + $0x78] sm:$0xff]
        %v295 = vpack.c.bf16 %v280, %v279
        %v296 = vpack.c.bf16 %v282, %v281
        %v297 = vpack.c.bf16 %v284, %v283
        %v298 = vpack.c.bf16 %v286, %v285
        %v299 = vpack.c.bf16 %v288, %v287
        %v300 = vpack.c.bf16 %v290, %v289
        %v301 = vpack.c.bf16 %v292, %v291
        %v302 = vpack.c.bf16 %v294, %v293
        %v303 = vld [vmem:[%s270] sm:$0xff]
        %v304 = vld [vmem:[%s270 + $0x8] sm:$0xff]
        %v305 = vld [vmem:[%s270 + $0x10] sm:$0xff]
        %v306 = vld [vmem:[%s270 + $0x18] sm:$0xff]
        %v307 = vld [vmem:[%s270 + $0x20] sm:$0xff]
        %v308 = vld [vmem:[%s270 + $0x28] sm:$0xff]
        %v309 = vld [vmem:[%s270 + $0x30] sm:$0xff]
        %v310 = vld [vmem:[%s270 + $0x38] sm:$0xff]
        %v311 = vld [vmem:[%s270 + $0x40] sm:$0xff]
        %v312 = vld [vmem:[%s270 + $0x48] sm:$0xff]
        %v313 = vld [vmem:[%s270 + $0x50] sm:$0xff]
        %v314 = vld [vmem:[%s270 + $0x58] sm:$0xff]
        %v315 = vld [vmem:[%s270 + $0x60] sm:$0xff]
        %v316 = vld [vmem:[%s270 + $0x68] sm:$0xff]
        %v317 = vld [vmem:[%s270 + $0x70] sm:$0xff]
        %v318 = vld [vmem:[%s270 + $0x78] sm:$0xff]
        %v319 = vpack.c.bf16 %v304, %v303
        %v320 = vpack.c.bf16 %v306, %v305
        %v321 = vpack.c.bf16 %v308, %v307
        %v322 = vpack.c.bf16 %v310, %v309
        %v323 = vpack.c.bf16 %v312, %v311
        %v324 = vpack.c.bf16 %v314, %v313
        %v325 = vpack.c.bf16 %v316, %v315
        %v326 = vpack.c.bf16 %v318, %v317
        %327 = vmatpush.bf16.xpose.msra.mxu0 %v326
        %328 = vmatpush.bf16.xpose.msra.mxu0 %v325
        %329 = vmatpush.bf16.xpose.msra.mxu0 %v324
        %330 = vmatpush.bf16.xpose.msra.mxu0 %v323
        %331 = vmatpush.bf16.xpose.msra.mxu0 %v322
        %332 = vmatpush.bf16.xpose.msra.mxu0 %v321
        %333 = vmatpush.bf16.xpose.msra.mxu0 %v320
        %334 = vmatpush.bf16.xpose.msra.mxu0 %v319
        %335 = vmatmul.bf16.gmra.mxu0 %v295
        %v336 = vpop.f32.mrf.mxu0
        %v337 = vadd.f32 0.0, %v336
        %v338 = vpop.f32.mrf.mxu0
        %v339 = vadd.f32 0.0, %v338
        %340 = vmatmul.bf16.gmra.mxu0 %v296
        %v341 = vpop.f32.mrf.mxu0
        %v342 = vadd.f32 0.0, %v341
        %v343 = vpop.f32.mrf.mxu0
        %v344 = vadd.f32 0.0, %v343
        %345 = vmatmul.bf16.gmra.mxu0 %v297
        %v346 = vpop.f32.mrf.mxu0
        %v347 = vadd.f32 0.0, %v346
        %v348 = vpop.f32.mrf.mxu0
        %v349 = vadd.f32 0.0, %v348
        %350 = vmatmul.bf16.gmra.mxu0 %v298
        %v351 = vpop.f32.mrf.mxu0
        %v352 = vadd.f32 0.0, %v351
        %v353 = vpop.f32.mrf.mxu0
        %v354 = vadd.f32 0.0, %v353
        %355 = vmatmul.bf16.gmra.mxu0 %v299
        %v356 = vpop.f32.mrf.mxu0
        %v357 = vadd.f32 0.0, %v356
        %v358 = vpop.f32.mrf.mxu0
        %v359 = vadd.f32 0.0, %v358
        %360 = vmatmul.bf16.gmra.mxu0 %v300
        %v361 = vpop.f32.mrf.mxu0
        %v362 = vadd.f32 0.0, %v361
        %v363 = vpop.f32.mrf.mxu0
        %v364 = vadd.f32 0.0, %v363
        %365 = vmatmul.bf16.gmra.mxu0 %v301
        %v366 = vpop.f32.mrf.mxu0
        %v367 = vadd.f32 0.0, %v366
        %v368 = vpop.f32.mrf.mxu0
        %v369 = vadd.f32 0.0, %v368
        %370 = vmatmul.bf16.gmra.mxu0 %v302
        %v371 = vpop.f32.mrf.mxu0
        %v372 = vadd.f32 0.0, %v371
        %v373 = vpop.f32.mrf.mxu0
        %v374 = vadd.f32 0.0, %v373
        %375 = vdwg.mxu0
        %v376 = vsub.f32 0.0, %v337
        %v377 = vsub.f32 0.0, %v339
        %v378 = vsub.f32 0.0, %v342
        %v379 = vsub.f32 0.0, %v344
        %v380 = vsub.f32 0.0, %v347
        %v381 = vsub.f32 0.0, %v349
        %v382 = vsub.f32 0.0, %v352
        %v383 = vsub.f32 0.0, %v354
        %v384 = vsub.f32 0.0, %v357
        %v385 = vsub.f32 0.0, %v359
        %v386 = vsub.f32 0.0, %v362
        %v387 = vsub.f32 0.0, %v364
        %v388 = vsub.f32 0.0, %v367
        %v389 = vsub.f32 0.0, %v369
        %v390 = vsub.f32 0.0, %v372
        %v391 = vsub.f32 0.0, %v374
        %v392 = vmul.f32 %v376, 1.442695
        %v393 = vpow.pop %v392
        %v394 = vmul.f32 %v377, 1.442695
        %v395 = vpow.pop %v394
        %v396 = vmul.f32 %v378, 1.442695
        %v397 = vpow.pop %v396
        %v398 = vmul.f32 %v379, 1.442695
        %v399 = vpow.pop %v398
        %v400 = vmul.f32 %v380, 1.442695
        %v401 = vpow.pop %v400
        %v402 = vmul.f32 %v381, 1.442695
        %v403 = vpow.pop %v402
        %v404 = vmul.f32 %v382, 1.442695
        %v405 = vpow.pop %v404
        %v406 = vmul.f32 %v383, 1.442695
        %v407 = vpow.pop %v406
        %v408 = vmul.f32 %v384, 1.442695
        %v409 = vpow.pop %v408
        %v410 = vmul.f32 %v385, 1.442695
        %v411 = vpow.pop %v410
        %v412 = vmul.f32 %v386, 1.442695
        %v413 = vpow.pop %v412
        %v414 = vmul.f32 %v387, 1.442695
        %v415 = vpow.pop %v414
        %v416 = vmul.f32 %v388, 1.442695
        %v417 = vpow.pop %v416
        %v418 = vmul.f32 %v389, 1.442695
        %v419 = vpow.pop %v418
        %v420 = vmul.f32 %v390, 1.442695
        %v421 = vpow.pop %v420
        %v422 = vmul.f32 %v391, 1.442695
        %v423 = vpow.pop %v422
        %v424 = vadd.f32 %v393, 1.0
        %v425 = vadd.f32 %v395, 1.0
        %v426 = vadd.f32 %v397, 1.0
        %v427 = vadd.f32 %v399, 1.0
        %v428 = vadd.f32 %v401, 1.0
        %v429 = vadd.f32 %v403, 1.0
        %v430 = vadd.f32 %v405, 1.0
        %v431 = vadd.f32 %v407, 1.0
        %v432 = vadd.f32 %v409, 1.0
        %v433 = vadd.f32 %v411, 1.0
        %v434 = vadd.f32 %v413, 1.0
        %v435 = vadd.f32 %v415, 1.0
        %v436 = vadd.f32 %v417, 1.0
        %v437 = vadd.f32 %v419, 1.0
        %v438 = vadd.f32 %v421, 1.0
        %v439 = vadd.f32 %v423, 1.0
        %v440 = vrcp.pop %v424
        %v441 = vmul.f32 %v424, %v440
        %v442 = vsub.f32 1.0, %v441
        %v443 = vmul.f32 %v440, %v442
        %v444 = vadd.f32 %v440, %v443
        %vm445 = vweird.f32 %v424
        %vm446 = vweird.f32 %v440
        %vm447 = vmor %vm445, %vm446
        %v448 = vsel %vm447, %v440, %v444
        %v449 = vand.u32 2147483647, %v424
        %vm450 = vcmp.eq.f32.partialorder %v449, 8.507059e+37
        %v451 = vand.u32 %v424, 2147483648
        %v452 = vor.u32 1.1754944e-38, %v451
        %v453 = vsel %vm450, %v452, %v448
        %v454 = vmul.f32 1.0, %v453
        %v455 = vrcp.pop %v425
        %v456 = vmul.f32 %v425, %v455
        %v457 = vsub.f32 1.0, %v456
        %v458 = vmul.f32 %v455, %v457
        %v459 = vadd.f32 %v455, %v458
        %vm460 = vweird.f32 %v425
        %vm461 = vweird.f32 %v455
        %vm462 = vmor %vm460, %vm461
        %v463 = vsel %vm462, %v455, %v459
        %v464 = vand.u32 2147483647, %v425
        %vm465 = vcmp.eq.f32.partialorder %v464, 8.507059e+37
        %v466 = vand.u32 %v425, 2147483648
        %v467 = vor.u32 1.1754944e-38, %v466
        %v468 = vsel %vm465, %v467, %v463
        %v469 = vmul.f32 1.0, %v468
        %v470 = vrcp.pop %v426
        %v471 = vmul.f32 %v426, %v470
        %v472 = vsub.f32 1.0, %v471
        %v473 = vmul.f32 %v470, %v472
        %v474 = vadd.f32 %v470, %v473
        %vm475 = vweird.f32 %v426
        %vm476 = vweird.f32 %v470
        %vm477 = vmor %vm475, %vm476
        %v478 = vsel %vm477, %v470, %v474
        %v479 = vand.u32 2147483647, %v426
        %vm480 = vcmp.eq.f32.partialorder %v479, 8.507059e+37
        %v481 = vand.u32 %v426, 2147483648
        %v482 = vor.u32 1.1754944e-38, %v481
        %v483 = vsel %vm480, %v482, %v478
        %v484 = vmul.f32 1.0, %v483
        %v485 = vrcp.pop %v427
        %v486 = vmul.f32 %v427, %v485
        %v487 = vsub.f32 1.0, %v486
        %v488 = vmul.f32 %v485, %v487
        %v489 = vadd.f32 %v485, %v488
        %vm490 = vweird.f32 %v427
        %vm491 = vweird.f32 %v485
        %vm492 = vmor %vm490, %vm491
        %v493 = vsel %vm492, %v485, %v489
        %v494 = vand.u32 2147483647, %v427
        %vm495 = vcmp.eq.f32.partialorder %v494, 8.507059e+37
        %v496 = vand.u32 %v427, 2147483648
        %v497 = vor.u32 1.1754944e-38, %v496
        %v498 = vsel %vm495, %v497, %v493
        %v499 = vmul.f32 1.0, %v498
        %v500 = vrcp.pop %v428
        %v501 = vmul.f32 %v428, %v500
        %v502 = vsub.f32 1.0, %v501
        %v503 = vmul.f32 %v500, %v502
        %v504 = vadd.f32 %v500, %v503
        %vm505 = vweird.f32 %v428
        %vm506 = vweird.f32 %v500
        %vm507 = vmor %vm505, %vm506
        %v508 = vsel %vm507, %v500, %v504
        %v509 = vand.u32 2147483647, %v428
        %vm510 = vcmp.eq.f32.partialorder %v509, 8.507059e+37
        %v511 = vand.u32 %v428, 2147483648
        %v512 = vor.u32 1.1754944e-38, %v511
        %v513 = vsel %vm510, %v512, %v508
        %v514 = vmul.f32 1.0, %v513
        %v515 = vrcp.pop %v429
        %v516 = vmul.f32 %v429, %v515
        %v517 = vsub.f32 1.0, %v516
        %v518 = vmul.f32 %v515, %v517
        %v519 = vadd.f32 %v515, %v518
        %vm520 = vweird.f32 %v429
        %vm521 = vweird.f32 %v515
        %vm522 = vmor %vm520, %vm521
        %v523 = vsel %vm522, %v515, %v519
        %v524 = vand.u32 2147483647, %v429
        %vm525 = vcmp.eq.f32.partialorder %v524, 8.507059e+37
        %v526 = vand.u32 %v429, 2147483648
        %v527 = vor.u32 1.1754944e-38, %v526
        %v528 = vsel %vm525, %v527, %v523
        %v529 = vmul.f32 1.0, %v528
        %v530 = vrcp.pop %v430
        %v531 = vmul.f32 %v430, %v530
        %v532 = vsub.f32 1.0, %v531
        %v533 = vmul.f32 %v530, %v532
        %v534 = vadd.f32 %v530, %v533
        %vm535 = vweird.f32 %v430
        %vm536 = vweird.f32 %v530
        %vm537 = vmor %vm535, %vm536
        %v538 = vsel %vm537, %v530, %v534
        %v539 = vand.u32 2147483647, %v430
        %vm540 = vcmp.eq.f32.partialorder %v539, 8.507059e+37
        %v541 = vand.u32 %v430, 2147483648
        %v542 = vor.u32 1.1754944e-38, %v541
        %v543 = vsel %vm540, %v542, %v538
        %v544 = vmul.f32 1.0, %v543
        %v545 = vrcp.pop %v431
        %v546 = vmul.f32 %v431, %v545
        %v547 = vsub.f32 1.0, %v546
        %v548 = vmul.f32 %v545, %v547
        %v549 = vadd.f32 %v545, %v548
        %vm550 = vweird.f32 %v431
        %vm551 = vweird.f32 %v545
        %vm552 = vmor %vm550, %vm551
        %v553 = vsel %vm552, %v545, %v549
        %v554 = vand.u32 2147483647, %v431
        %vm555 = vcmp.eq.f32.partialorder %v554, 8.507059e+37
        %v556 = vand.u32 %v431, 2147483648
        %v557 = vor.u32 1.1754944e-38, %v556
        %v558 = vsel %vm555, %v557, %v553
        %v559 = vmul.f32 1.0, %v558
        %v560 = vrcp.pop %v432
        %v561 = vmul.f32 %v432, %v560
        %v562 = vsub.f32 1.0, %v561
        %v563 = vmul.f32 %v560, %v562
        %v564 = vadd.f32 %v560, %v563
        %vm565 = vweird.f32 %v432
        %vm566 = vweird.f32 %v560
        %vm567 = vmor %vm565, %vm566
        %v568 = vsel %vm567, %v560, %v564
        %v569 = vand.u32 2147483647, %v432
        %vm570 = vcmp.eq.f32.partialorder %v569, 8.507059e+37
        %v571 = vand.u32 %v432, 2147483648
        %v572 = vor.u32 1.1754944e-38, %v571
        %v573 = vsel %vm570, %v572, %v568
        %v574 = vmul.f32 1.0, %v573
        %v575 = vrcp.pop %v433
        %v576 = vmul.f32 %v433, %v575
        %v577 = vsub.f32 1.0, %v576
        %v578 = vmul.f32 %v575, %v577
        %v579 = vadd.f32 %v575, %v578
        %vm580 = vweird.f32 %v433
        %vm581 = vweird.f32 %v575
        %vm582 = vmor %vm580, %vm581
        %v583 = vsel %vm582, %v575, %v579
        %v584 = vand.u32 2147483647, %v433
        %vm585 = vcmp.eq.f32.partialorder %v584, 8.507059e+37
        %v586 = vand.u32 %v433, 2147483648
        %v587 = vor.u32 1.1754944e-38, %v586
        %v588 = vsel %vm585, %v587, %v583
        %v589 = vmul.f32 1.0, %v588
        %v590 = vrcp.pop %v434
        %v591 = vmul.f32 %v434, %v590
        %v592 = vsub.f32 1.0, %v591
        %v593 = vmul.f32 %v590, %v592
        %v594 = vadd.f32 %v590, %v593
        %vm595 = vweird.f32 %v434
        %vm596 = vweird.f32 %v590
        %vm597 = vmor %vm595, %vm596
        %v598 = vsel %vm597, %v590, %v594
        %v599 = vand.u32 2147483647, %v434
        %vm600 = vcmp.eq.f32.partialorder %v599, 8.507059e+37
        %v601 = vand.u32 %v434, 2147483648
        %v602 = vor.u32 1.1754944e-38, %v601
        %v603 = vsel %vm600, %v602, %v598
        %v604 = vmul.f32 1.0, %v603
        %v605 = vrcp.pop %v435
        %v606 = vmul.f32 %v435, %v605
        %v607 = vsub.f32 1.0, %v606
        %v608 = vmul.f32 %v605, %v607
        %v609 = vadd.f32 %v605, %v608
        %vm610 = vweird.f32 %v435
        %vm611 = vweird.f32 %v605
        %vm612 = vmor %vm610, %vm611
        %v613 = vsel %vm612, %v605, %v609
        %v614 = vand.u32 2147483647, %v435
        %vm615 = vcmp.eq.f32.partialorder %v614, 8.507059e+37
        %v616 = vand.u32 %v435, 2147483648
        %v617 = vor.u32 1.1754944e-38, %v616
        %v618 = vsel %vm615, %v617, %v613
        %v619 = vmul.f32 1.0, %v618
        %v620 = vrcp.pop %v436
        %v621 = vmul.f32 %v436, %v620
        %v622 = vsub.f32 1.0, %v621
        %v623 = vmul.f32 %v620, %v622
        %v624 = vadd.f32 %v620, %v623
        %vm625 = vweird.f32 %v436
        %vm626 = vweird.f32 %v620
        %vm627 = vmor %vm625, %vm626
        %v628 = vsel %vm627, %v620, %v624
        %v629 = vand.u32 2147483647, %v436
        %vm630 = vcmp.eq.f32.partialorder %v629, 8.507059e+37
        %v631 = vand.u32 %v436, 2147483648
        %v632 = vor.u32 1.1754944e-38, %v631
        %v633 = vsel %vm630, %v632, %v628
        %v634 = vmul.f32 1.0, %v633
        %v635 = vrcp.pop %v437
        %v636 = vmul.f32 %v437, %v635
        %v637 = vsub.f32 1.0, %v636
        %v638 = vmul.f32 %v635, %v637
        %v639 = vadd.f32 %v635, %v638
        %vm640 = vweird.f32 %v437
        %vm641 = vweird.f32 %v635
        %vm642 = vmor %vm640, %vm641
        %v643 = vsel %vm642, %v635, %v639
        %v644 = vand.u32 2147483647, %v437
        %vm645 = vcmp.eq.f32.partialorder %v644, 8.507059e+37
        %v646 = vand.u32 %v437, 2147483648
        %v647 = vor.u32 1.1754944e-38, %v646
        %v648 = vsel %vm645, %v647, %v643
        %v649 = vmul.f32 1.0, %v648
        %v650 = vrcp.pop %v438
        %v651 = vmul.f32 %v438, %v650
        %v652 = vsub.f32 1.0, %v651
        %v653 = vmul.f32 %v650, %v652
        %v654 = vadd.f32 %v650, %v653
        %vm655 = vweird.f32 %v438
        %vm656 = vweird.f32 %v650
        %vm657 = vmor %vm655, %vm656
        %v658 = vsel %vm657, %v650, %v654
        %v659 = vand.u32 2147483647, %v438
        %vm660 = vcmp.eq.f32.partialorder %v659, 8.507059e+37
        %v661 = vand.u32 %v438, 2147483648
        %v662 = vor.u32 1.1754944e-38, %v661
        %v663 = vsel %vm660, %v662, %v658
        %v664 = vmul.f32 1.0, %v663
        %v665 = vrcp.pop %v439
        %v666 = vmul.f32 %v439, %v665
        %v667 = vsub.f32 1.0, %v666
        %v668 = vmul.f32 %v665, %v667
        %v669 = vadd.f32 %v665, %v668
        %vm670 = vweird.f32 %v439
        %vm671 = vweird.f32 %v665
        %vm672 = vmor %vm670, %vm671
        %v673 = vsel %vm672, %v665, %v669
        %v674 = vand.u32 2147483647, %v439
        %vm675 = vcmp.eq.f32.partialorder %v674, 8.507059e+37
        %v676 = vand.u32 %v439, 2147483648
        %v677 = vor.u32 1.1754944e-38, %v676
        %v678 = vsel %vm675, %v677, %v673
        %v679 = vmul.f32 1.0, %v678
        %680 = vst [vmem:[%s253] sm:$0xff] %v454
        %681 = vst [vmem:[%s253 + $0x8] sm:$0xff] %v469
        %682 = vst [vmem:[%s253 + $0x10] sm:$0xff] %v484
        %683 = vst [vmem:[%s253 + $0x18] sm:$0xff] %v499
        %684 = vst [vmem:[%s253 + $0x20] sm:$0xff] %v514
        %685 = vst [vmem:[%s253 + $0x28] sm:$0xff] %v529
        %686 = vst [vmem:[%s253 + $0x30] sm:$0xff] %v544
        %687 = vst [vmem:[%s253 + $0x38] sm:$0xff] %v559
        %688 = vst [vmem:[%s253 + $0x40] sm:$0xff] %v574
        %689 = vst [vmem:[%s253 + $0x48] sm:$0xff] %v589
        %690 = vst [vmem:[%s253 + $0x50] sm:$0xff] %v604
        %691 = vst [vmem:[%s253 + $0x58] sm:$0xff] %v619
        %692 = vst [vmem:[%s253 + $0x60] sm:$0xff] %v634
        %693 = vst [vmem:[%s253 + $0x68] sm:$0xff] %v649
        %694 = vst [vmem:[%s253 + $0x70] sm:$0xff] %v664
        %695 = vst [vmem:[%s253 + $0x78] sm:$0xff] %v679
        %v696 = vld [vmem:[%s264] sm:$0xff]
        %v697 = vld [vmem:[%s264 + $0x8] sm:$0xff]
        %v698 = vld [vmem:[%s264 + $0x10] sm:$0xff]
        %v699 = vld [vmem:[%s264 + $0x18] sm:$0xff]
        %v700 = vld [vmem:[%s264 + $0x20] sm:$0xff]
        %v701 = vld [vmem:[%s264 + $0x28] sm:$0xff]
        %v702 = vld [vmem:[%s264 + $0x30] sm:$0xff]
        %v703 = vld [vmem:[%s264 + $0x38] sm:$0xff]
        %v704 = vld [vmem:[%s264 + $0x40] sm:$0xff]
        %v705 = vld [vmem:[%s264 + $0x48] sm:$0xff]
        %v706 = vld [vmem:[%s264 + $0x50] sm:$0xff]
        %v707 = vld [vmem:[%s264 + $0x58] sm:$0xff]
        %v708 = vld [vmem:[%s264 + $0x60] sm:$0xff]
        %v709 = vld [vmem:[%s264 + $0x68] sm:$0xff]
        %v710 = vld [vmem:[%s264 + $0x70] sm:$0xff]
        %v711 = vld [vmem:[%s264 + $0x78] sm:$0xff]
        %v712 = vpack.c.bf16 %v697, %v696
        %v713 = vpack.c.bf16 %v699, %v698
        %v714 = vpack.c.bf16 %v701, %v700
        %v715 = vpack.c.bf16 %v703, %v702
        %v716 = vpack.c.bf16 %v705, %v704
        %v717 = vpack.c.bf16 %v707, %v706
        %v718 = vpack.c.bf16 %v709, %v708
        %v719 = vpack.c.bf16 %v711, %v710
        %v720 = vld [vmem:[%s276] sm:$0xff]
        %v721 = vld [vmem:[%s276 + $0x8] sm:$0xff]
        %v722 = vld [vmem:[%s276 + $0x10] sm:$0xff]
        %v723 = vld [vmem:[%s276 + $0x18] sm:$0xff]
        %v724 = vld [vmem:[%s276 + $0x20] sm:$0xff]
        %v725 = vld [vmem:[%s276 + $0x28] sm:$0xff]
        %v726 = vld [vmem:[%s276 + $0x30] sm:$0xff]
        %v727 = vld [vmem:[%s276 + $0x38] sm:$0xff]
        %v728 = vld [vmem:[%s276 + $0x40] sm:$0xff]
        %v729 = vld [vmem:[%s276 + $0x48] sm:$0xff]
        %v730 = vld [vmem:[%s276 + $0x50] sm:$0xff]
        %v731 = vld [vmem:[%s276 + $0x58] sm:$0xff]
        %v732 = vld [vmem:[%s276 + $0x60] sm:$0xff]
        %v733 = vld [vmem:[%s276 + $0x68] sm:$0xff]
        %v734 = vld [vmem:[%s276 + $0x70] sm:$0xff]
        %v735 = vld [vmem:[%s276 + $0x78] sm:$0xff]
        %v736 = vpack.c.bf16 %v721, %v720
        %v737 = vpack.c.bf16 %v723, %v722
        %v738 = vpack.c.bf16 %v725, %v724
        %v739 = vpack.c.bf16 %v727, %v726
        %v740 = vpack.c.bf16 %v729, %v728
        %v741 = vpack.c.bf16 %v731, %v730
        %v742 = vpack.c.bf16 %v733, %v732
        %v743 = vpack.c.bf16 %v735, %v734
        %744 = vmatpush.bf16.xpose.msra.mxu0 %v743
        %745 = vmatpush.bf16.xpose.msra.mxu0 %v742
        %746 = vmatpush.bf16.xpose.msra.mxu0 %v741
        %747 = vmatpush.bf16.xpose.msra.mxu0 %v740
        %748 = vmatpush.bf16.xpose.msra.mxu0 %v739
        %749 = vmatpush.bf16.xpose.msra.mxu0 %v738
        %750 = vmatpush.bf16.xpose.msra.mxu0 %v737
        %751 = vmatpush.bf16.xpose.msra.mxu0 %v736
        %752 = vmatmul.bf16.gmra.mxu0 %v712
        %v753 = vpop.f32.mrf.mxu0
        %v754 = vadd.f32 0.0, %v753
        %v755 = vpop.f32.mrf.mxu0
        %v756 = vadd.f32 0.0, %v755
        %757 = vmatmul.bf16.gmra.mxu0 %v713
        %v758 = vpop.f32.mrf.mxu0
        %v759 = vadd.f32 0.0, %v758
        %v760 = vpop.f32.mrf.mxu0
        %v761 = vadd.f32 0.0, %v760
        %762 = vmatmul.bf16.gmra.mxu0 %v714
        %v763 = vpop.f32.mrf.mxu0
        %v764 = vadd.f32 0.0, %v763
        %v765 = vpop.f32.mrf.mxu0
        %v766 = vadd.f32 0.0, %v765
        %767 = vmatmul.bf16.gmra.mxu0 %v715
        %v768 = vpop.f32.mrf.mxu0
        %v769 = vadd.f32 0.0, %v768
        %v770 = vpop.f32.mrf.mxu0
        %v771 = vadd.f32 0.0, %v770
        %772 = vmatmul.bf16.gmra.mxu0 %v716
        %v773 = vpop.f32.mrf.mxu0
        %v774 = vadd.f32 0.0, %v773
        %v775 = vpop.f32.mrf.mxu0
        %v776 = vadd.f32 0.0, %v775
        %777 = vmatmul.bf16.gmra.mxu0 %v717
        %v778 = vpop.f32.mrf.mxu0
        %v779 = vadd.f32 0.0, %v778
        %v780 = vpop.f32.mrf.mxu0
        %v781 = vadd.f32 0.0, %v780
        %782 = vmatmul.bf16.gmra.mxu0 %v718
        %v783 = vpop.f32.mrf.mxu0
        %v784 = vadd.f32 0.0, %v783
        %v785 = vpop.f32.mrf.mxu0
        %v786 = vadd.f32 0.0, %v785
        %787 = vmatmul.bf16.gmra.mxu0 %v719
        %v788 = vpop.f32.mrf.mxu0
        %v789 = vadd.f32 0.0, %v788
        %v790 = vpop.f32.mrf.mxu0
        %v791 = vadd.f32 0.0, %v790
        %792 = vdwg.mxu0
        %v793 = vld [vmem:[%s253] sm:$0xff]
        %v794 = vld [vmem:[%s253 + $0x8] sm:$0xff]
        %v795 = vld [vmem:[%s253 + $0x10] sm:$0xff]
        %v796 = vld [vmem:[%s253 + $0x18] sm:$0xff]
        %v797 = vld [vmem:[%s253 + $0x20] sm:$0xff]
        %v798 = vld [vmem:[%s253 + $0x28] sm:$0xff]
        %v799 = vld [vmem:[%s253 + $0x30] sm:$0xff]
        %v800 = vld [vmem:[%s253 + $0x38] sm:$0xff]
        %v801 = vld [vmem:[%s253 + $0x40] sm:$0xff]
        %v802 = vld [vmem:[%s253 + $0x48] sm:$0xff]
        %v803 = vld [vmem:[%s253 + $0x50] sm:$0xff]
        %v804 = vld [vmem:[%s253 + $0x58] sm:$0xff]
        %v805 = vld [vmem:[%s253 + $0x60] sm:$0xff]
        %v806 = vld [vmem:[%s253 + $0x68] sm:$0xff]
        %v807 = vld [vmem:[%s253 + $0x70] sm:$0xff]
        %v808 = vld [vmem:[%s253 + $0x78] sm:$0xff]
        %v809 = vsub.f32 0.0, %v754
        %v810 = vsub.f32 0.0, %v756
        %v811 = vsub.f32 0.0, %v759
        %v812 = vsub.f32 0.0, %v761
        %v813 = vsub.f32 0.0, %v764
        %v814 = vsub.f32 0.0, %v766
        %v815 = vsub.f32 0.0, %v769
        %v816 = vsub.f32 0.0, %v771
        %v817 = vsub.f32 0.0, %v774
        %v818 = vsub.f32 0.0, %v776
        %v819 = vsub.f32 0.0, %v779
        %v820 = vsub.f32 0.0, %v781
        %v821 = vsub.f32 0.0, %v784
        %v822 = vsub.f32 0.0, %v786
        %v823 = vsub.f32 0.0, %v789
        %v824 = vsub.f32 0.0, %v791
        %v825 = vmul.f32 %v809, 1.442695
        %v826 = vpow.pop %v825
        %v827 = vmul.f32 %v810, 1.442695
        %v828 = vpow.pop %v827
        %v829 = vmul.f32 %v811, 1.442695
        %v830 = vpow.pop %v829
        %v831 = vmul.f32 %v812, 1.442695
        %v832 = vpow.pop %v831
        %v833 = vmul.f32 %v813, 1.442695
        %v834 = vpow.pop %v833
        %v835 = vmul.f32 %v814, 1.442695
        %v836 = vpow.pop %v835
        %v837 = vmul.f32 %v815, 1.442695
        %v838 = vpow.pop %v837
        %v839 = vmul.f32 %v816, 1.442695
        %v840 = vpow.pop %v839
        %v841 = vmul.f32 %v817, 1.442695
        %v842 = vpow.pop %v841
        %v843 = vmul.f32 %v818, 1.442695
        %v844 = vpow.pop %v843
        %v845 = vmul.f32 %v819, 1.442695
        %v846 = vpow.pop %v845
        %v847 = vmul.f32 %v820, 1.442695
        %v848 = vpow.pop %v847
        %v849 = vmul.f32 %v821, 1.442695
        %v850 = vpow.pop %v849
        %v851 = vmul.f32 %v822, 1.442695
        %v852 = vpow.pop %v851
        %v853 = vmul.f32 %v823, 1.442695
        %v854 = vpow.pop %v853
        %v855 = vmul.f32 %v824, 1.442695
        %v856 = vpow.pop %v855
        %v857 = vadd.f32 %v826, 1.0
        %v858 = vadd.f32 %v828, 1.0
        %v859 = vadd.f32 %v830, 1.0
        %v860 = vadd.f32 %v832, 1.0
        %v861 = vadd.f32 %v834, 1.0
        %v862 = vadd.f32 %v836, 1.0
        %v863 = vadd.f32 %v838, 1.0
        %v864 = vadd.f32 %v840, 1.0
        %v865 = vadd.f32 %v842, 1.0
        %v866 = vadd.f32 %v844, 1.0
        %v867 = vadd.f32 %v846, 1.0
        %v868 = vadd.f32 %v848, 1.0
        %v869 = vadd.f32 %v850, 1.0
        %v870 = vadd.f32 %v852, 1.0
        %v871 = vadd.f32 %v854, 1.0
        %v872 = vadd.f32 %v856, 1.0
        %v873 = vrcp.pop %v857
        %v874 = vmul.f32 %v857, %v873
        %v875 = vsub.f32 1.0, %v874
        %v876 = vmul.f32 %v873, %v875
        %v877 = vadd.f32 %v873, %v876
        %vm878 = vweird.f32 %v857
        %vm879 = vweird.f32 %v873
        %vm880 = vmor %vm878, %vm879
        %v881 = vsel %vm880, %v873, %v877
        %v882 = vand.u32 2147483647, %v857
        %vm883 = vcmp.eq.f32.partialorder %v882, 8.507059e+37
        %v884 = vand.u32 %v857, 2147483648
        %v885 = vor.u32 1.1754944e-38, %v884
        %v886 = vsel %vm883, %v885, %v881
        %v887 = vmul.f32 1.0, %v886
        %v888 = vrcp.pop %v858
        %v889 = vmul.f32 %v858, %v888
        %v890 = vsub.f32 1.0, %v889
        %v891 = vmul.f32 %v888, %v890
        %v892 = vadd.f32 %v888, %v891
        %vm893 = vweird.f32 %v858
        %vm894 = vweird.f32 %v888
        %vm895 = vmor %vm893, %vm894
        %v896 = vsel %vm895, %v888, %v892
        %v897 = vand.u32 2147483647, %v858
        %vm898 = vcmp.eq.f32.partialorder %v897, 8.507059e+37
        %v899 = vand.u32 %v858, 2147483648
        %v900 = vor.u32 1.1754944e-38, %v899
        %v901 = vsel %vm898, %v900, %v896
        %v902 = vmul.f32 1.0, %v901
        %v903 = vrcp.pop %v859
        %v904 = vmul.f32 %v859, %v903
        %v905 = vsub.f32 1.0, %v904
        %v906 = vmul.f32 %v903, %v905
        %v907 = vadd.f32 %v903, %v906
        %vm908 = vweird.f32 %v859
        %vm909 = vweird.f32 %v903
        %vm910 = vmor %vm908, %vm909
        %v911 = vsel %vm910, %v903, %v907
        %v912 = vand.u32 2147483647, %v859
        %vm913 = vcmp.eq.f32.partialorder %v912, 8.507059e+37
        %v914 = vand.u32 %v859, 2147483648
        %v915 = vor.u32 1.1754944e-38, %v914
        %v916 = vsel %vm913, %v915, %v911
        %v917 = vmul.f32 1.0, %v916
        %v918 = vrcp.pop %v860
        %v919 = vmul.f32 %v860, %v918
        %v920 = vsub.f32 1.0, %v919
        %v921 = vmul.f32 %v918, %v920
        %v922 = vadd.f32 %v918, %v921
        %vm923 = vweird.f32 %v860
        %vm924 = vweird.f32 %v918
        %vm925 = vmor %vm923, %vm924
        %v926 = vsel %vm925, %v918, %v922
        %v927 = vand.u32 2147483647, %v860
        %vm928 = vcmp.eq.f32.partialorder %v927, 8.507059e+37
        %v929 = vand.u32 %v860, 2147483648
        %v930 = vor.u32 1.1754944e-38, %v929
        %v931 = vsel %vm928, %v930, %v926
        %v932 = vmul.f32 1.0, %v931
        %v933 = vrcp.pop %v861
        %v934 = vmul.f32 %v861, %v933
        %v935 = vsub.f32 1.0, %v934
        %v936 = vmul.f32 %v933, %v935
        %v937 = vadd.f32 %v933, %v936
        %vm938 = vweird.f32 %v861
        %vm939 = vweird.f32 %v933
        %vm940 = vmor %vm938, %vm939
        %v941 = vsel %vm940, %v933, %v937
        %v942 = vand.u32 2147483647, %v861
        %vm943 = vcmp.eq.f32.partialorder %v942, 8.507059e+37
        %v944 = vand.u32 %v861, 2147483648
        %v945 = vor.u32 1.1754944e-38, %v944
        %v946 = vsel %vm943, %v945, %v941
        %v947 = vmul.f32 1.0, %v946
        %v948 = vrcp.pop %v862
        %v949 = vmul.f32 %v862, %v948
        %v950 = vsub.f32 1.0, %v949
        %v951 = vmul.f32 %v948, %v950
        %v952 = vadd.f32 %v948, %v951
        %vm953 = vweird.f32 %v862
        %vm954 = vweird.f32 %v948
        %vm955 = vmor %vm953, %vm954
        %v956 = vsel %vm955, %v948, %v952
        %v957 = vand.u32 2147483647, %v862
        %vm958 = vcmp.eq.f32.partialorder %v957, 8.507059e+37
        %v959 = vand.u32 %v862, 2147483648
        %v960 = vor.u32 1.1754944e-38, %v959
        %v961 = vsel %vm958, %v960, %v956
        %v962 = vmul.f32 1.0, %v961
        %v963 = vrcp.pop %v863
        %v964 = vmul.f32 %v863, %v963
        %v965 = vsub.f32 1.0, %v964
        %v966 = vmul.f32 %v963, %v965
        %v967 = vadd.f32 %v963, %v966
        %vm968 = vweird.f32 %v863
        %vm969 = vweird.f32 %v963
        %vm970 = vmor %vm968, %vm969
        %v971 = vsel %vm970, %v963, %v967
        %v972 = vand.u32 2147483647, %v863
        %vm973 = vcmp.eq.f32.partialorder %v972, 8.507059e+37
        %v974 = vand.u32 %v863, 2147483648
        %v975 = vor.u32 1.1754944e-38, %v974
        %v976 = vsel %vm973, %v975, %v971
        %v977 = vmul.f32 1.0, %v976
        %v978 = vrcp.pop %v864
        %v979 = vmul.f32 %v864, %v978
        %v980 = vsub.f32 1.0, %v979
        %v981 = vmul.f32 %v978, %v980
        %v982 = vadd.f32 %v978, %v981
        %vm983 = vweird.f32 %v864
        %vm984 = vweird.f32 %v978
        %vm985 = vmor %vm983, %vm984
        %v986 = vsel %vm985, %v978, %v982
        %v987 = vand.u32 2147483647, %v864
        %vm988 = vcmp.eq.f32.partialorder %v987, 8.507059e+37
        %v989 = vand.u32 %v864, 2147483648
        %v990 = vor.u32 1.1754944e-38, %v989
        %v991 = vsel %vm988, %v990, %v986
        %v992 = vmul.f32 1.0, %v991
        %v993 = vrcp.pop %v865
        %v994 = vmul.f32 %v865, %v993
        %v995 = vsub.f32 1.0, %v994
        %v996 = vmul.f32 %v993, %v995
        %v997 = vadd.f32 %v993, %v996
        %vm998 = vweird.f32 %v865
        %vm999 = vweird.f32 %v993
        %vm1000 = vmor %vm998, %vm999
        %v1001 = vsel %vm1000, %v993, %v997
        %v1002 = vand.u32 2147483647, %v865
        %vm1003 = vcmp.eq.f32.partialorder %v1002, 8.507059e+37
        %v1004 = vand.u32 %v865, 2147483648
        %v1005 = vor.u32 1.1754944e-38, %v1004
        %v1006 = vsel %vm1003, %v1005, %v1001
        %v1007 = vmul.f32 1.0, %v1006
        %v1008 = vrcp.pop %v866
        %v1009 = vmul.f32 %v866, %v1008
        %v1010 = vsub.f32 1.0, %v1009
        %v1011 = vmul.f32 %v1008, %v1010
        %v1012 = vadd.f32 %v1008, %v1011
        %vm1013 = vweird.f32 %v866
        %vm1014 = vweird.f32 %v1008
        %vm1015 = vmor %vm1013, %vm1014
        %v1016 = vsel %vm1015, %v1008, %v1012
        %v1017 = vand.u32 2147483647, %v866
        %vm1018 = vcmp.eq.f32.partialorder %v1017, 8.507059e+37
        %v1019 = vand.u32 %v866, 2147483648
        %v1020 = vor.u32 1.1754944e-38, %v1019
        %v1021 = vsel %vm1018, %v1020, %v1016
        %v1022 = vmul.f32 1.0, %v1021
        %v1023 = vrcp.pop %v867
        %v1024 = vmul.f32 %v867, %v1023
        %v1025 = vsub.f32 1.0, %v1024
        %v1026 = vmul.f32 %v1023, %v1025
        %v1027 = vadd.f32 %v1023, %v1026
        %vm1028 = vweird.f32 %v867
        %vm1029 = vweird.f32 %v1023
        %vm1030 = vmor %vm1028, %vm1029
        %v1031 = vsel %vm1030, %v1023, %v1027
        %v1032 = vand.u32 2147483647, %v867
        %vm1033 = vcmp.eq.f32.partialorder %v1032, 8.507059e+37
        %v1034 = vand.u32 %v867, 2147483648
        %v1035 = vor.u32 1.1754944e-38, %v1034
        %v1036 = vsel %vm1033, %v1035, %v1031
        %v1037 = vmul.f32 1.0, %v1036
        %v1038 = vrcp.pop %v868
        %v1039 = vmul.f32 %v868, %v1038
        %v1040 = vsub.f32 1.0, %v1039
        %v1041 = vmul.f32 %v1038, %v1040
        %v1042 = vadd.f32 %v1038, %v1041
        %vm1043 = vweird.f32 %v868
        %vm1044 = vweird.f32 %v1038
        %vm1045 = vmor %vm1043, %vm1044
        %v1046 = vsel %vm1045, %v1038, %v1042
        %v1047 = vand.u32 2147483647, %v868
        %vm1048 = vcmp.eq.f32.partialorder %v1047, 8.507059e+37
        %v1049 = vand.u32 %v868, 2147483648
        %v1050 = vor.u32 1.1754944e-38, %v1049
        %v1051 = vsel %vm1048, %v1050, %v1046
        %v1052 = vmul.f32 1.0, %v1051
        %v1053 = vrcp.pop %v869
        %v1054 = vmul.f32 %v869, %v1053
        %v1055 = vsub.f32 1.0, %v1054
        %v1056 = vmul.f32 %v1053, %v1055
        %v1057 = vadd.f32 %v1053, %v1056
        %vm1058 = vweird.f32 %v869
        %vm1059 = vweird.f32 %v1053
        %vm1060 = vmor %vm1058, %vm1059
        %v1061 = vsel %vm1060, %v1053, %v1057
        %v1062 = vand.u32 2147483647, %v869
        %vm1063 = vcmp.eq.f32.partialorder %v1062, 8.507059e+37
        %v1064 = vand.u32 %v869, 2147483648
        %v1065 = vor.u32 1.1754944e-38, %v1064
        %v1066 = vsel %vm1063, %v1065, %v1061
        %v1067 = vmul.f32 1.0, %v1066
        %v1068 = vrcp.pop %v870
        %v1069 = vmul.f32 %v870, %v1068
        %v1070 = vsub.f32 1.0, %v1069
        %v1071 = vmul.f32 %v1068, %v1070
        %v1072 = vadd.f32 %v1068, %v1071
        %vm1073 = vweird.f32 %v870
        %vm1074 = vweird.f32 %v1068
        %vm1075 = vmor %vm1073, %vm1074
        %v1076 = vsel %vm1075, %v1068, %v1072
        %v1077 = vand.u32 2147483647, %v870
        %vm1078 = vcmp.eq.f32.partialorder %v1077, 8.507059e+37
        %v1079 = vand.u32 %v870, 2147483648
        %v1080 = vor.u32 1.1754944e-38, %v1079
        %v1081 = vsel %vm1078, %v1080, %v1076
        %v1082 = vmul.f32 1.0, %v1081
        %v1083 = vrcp.pop %v871
        %v1084 = vmul.f32 %v871, %v1083
        %v1085 = vsub.f32 1.0, %v1084
        %v1086 = vmul.f32 %v1083, %v1085
        %v1087 = vadd.f32 %v1083, %v1086
        %vm1088 = vweird.f32 %v871
        %vm1089 = vweird.f32 %v1083
        %vm1090 = vmor %vm1088, %vm1089
        %v1091 = vsel %vm1090, %v1083, %v1087
        %v1092 = vand.u32 2147483647, %v871
        %vm1093 = vcmp.eq.f32.partialorder %v1092, 8.507059e+37
        %v1094 = vand.u32 %v871, 2147483648
        %v1095 = vor.u32 1.1754944e-38, %v1094
        %v1096 = vsel %vm1093, %v1095, %v1091
        %v1097 = vmul.f32 1.0, %v1096
        %v1098 = vrcp.pop %v872
        %v1099 = vmul.f32 %v872, %v1098
        %v1100 = vsub.f32 1.0, %v1099
        %v1101 = vmul.f32 %v1098, %v1100
        %v1102 = vadd.f32 %v1098, %v1101
        %vm1103 = vweird.f32 %v872
        %vm1104 = vweird.f32 %v1098
        %vm1105 = vmor %vm1103, %vm1104
        %v1106 = vsel %vm1105, %v1098, %v1102
        %v1107 = vand.u32 2147483647, %v872
        %vm1108 = vcmp.eq.f32.partialorder %v1107, 8.507059e+37
        %v1109 = vand.u32 %v872, 2147483648
        %v1110 = vor.u32 1.1754944e-38, %v1109
        %v1111 = vsel %vm1108, %v1110, %v1106
        %v1112 = vmul.f32 1.0, %v1111
        %v1113 = vadd.f32 %v793, %v887
        %v1114 = vadd.f32 %v794, %v902
        %v1115 = vadd.f32 %v795, %v917
        %v1116 = vadd.f32 %v796, %v932
        %v1117 = vadd.f32 %v797, %v947
        %v1118 = vadd.f32 %v798, %v962
        %v1119 = vadd.f32 %v799, %v977
        %v1120 = vadd.f32 %v800, %v992
        %v1121 = vadd.f32 %v801, %v1007
        %v1122 = vadd.f32 %v802, %v1022
        %v1123 = vadd.f32 %v803, %v1037
        %v1124 = vadd.f32 %v804, %v1052
        %v1125 = vadd.f32 %v805, %v1067
        %v1126 = vadd.f32 %v806, %v1082
        %v1127 = vadd.f32 %v807, %v1097
        %v1128 = vadd.f32 %v808, %v1112
        %1129 = vst [vmem:[%s253] sm:$0xff] %v1113
        %1130 = vst [vmem:[%s253 + $0x8] sm:$0xff] %v1114
        %1131 = vst [vmem:[%s253 + $0x10] sm:$0xff] %v1115
        %1132 = vst [vmem:[%s253 + $0x18] sm:$0xff] %v1116
        %1133 = vst [vmem:[%s253 + $0x20] sm:$0xff] %v1117
        %1134 = vst [vmem:[%s253 + $0x28] sm:$0xff] %v1118
        %1135 = vst [vmem:[%s253 + $0x30] sm:$0xff] %v1119
        %1136 = vst [vmem:[%s253 + $0x38] sm:$0xff] %v1120
        %1137 = vst [vmem:[%s253 + $0x40] sm:$0xff] %v1121
        %1138 = vst [vmem:[%s253 + $0x48] sm:$0xff] %v1122
        %1139 = vst [vmem:[%s253 + $0x50] sm:$0xff] %v1123
        %1140 = vst [vmem:[%s253 + $0x58] sm:$0xff] %v1124
        %1141 = vst [vmem:[%s253 + $0x60] sm:$0xff] %v1125
        %1142 = vst [vmem:[%s253 + $0x68] sm:$0xff] %v1126
        %1143 = vst [vmem:[%s253 + $0x70] sm:$0xff] %v1127
        %1144 = vst [vmem:[%s253 + $0x78] sm:$0xff] %v1128
        %s1145 = sand.u32 %s144, 1
        %s1146 = scalar_lea.sflag [#allocation3], %s1145
        %s1147 = sand.u32 %s144, 1
        %s1148 = smul.addr %s1147, 128
        %s1149 = scalar_lea.vmem [#allocation2], %s1148
        // Predicated region
        $region37: #{gae_forward.3} parent=35 // pred_check
          %p1150 = pneg %p154
        $region38: #{gae_forward.3} parent=35 // pred_check_branch
          %1152 = sbr.rel (%p1150) target = $region40
        $region39: #{gae_forward.3} parent=35 // pred_region
          %s1153 = smul.u32 16, %s22
          %1155 = vsyncadd %s1146, 0
          %s1156 = smul.addr %s1153, 2
          %s1157 = sadd.s32 %s23, %s1156
          %s1158 = smul.addr %s1157, 8
          %s1159 = scalar_lea.hbm %s4, %s1158
          %s1160 = sshll.u32 %s1149, 4
          %s1161 = int_to_ptr.vmem [resolvable:$true] %s1160
          %s1162 = sshll.u32 %s1159, 4
          %s1163 = int_to_ptr.hbm [resolvable:$true] %s1162
          %1168 = dma.vmem_to_hbm [thread:$0]  %s1161, 2048, %s1163, %s1146, 128, 256, 8
        $region40: #{gae_forward.3} parent=35 // pred_fallthru
          _
      $region36: #{gae_forward.3} parent=5 // pred_fallthru
        _
      %p1169 = scmp.le.s32.totalorder 2, %s13
      // Predicated region
      $region41: #{gae_forward.3} parent=5 // pred_check
        %p1170 = pneg %p1169
      $region42: #{gae_forward.3} parent=5 // pred_check_branch
        %1172 = sbr.rel (%p1170) target = $region44
      $region43: #{gae_forward.3} parent=5 // pred_region
        %s1173 = ssub.s32 %s13, 2
        // Predicated region
        $region45: #{gae_forward.3} parent=43 // pred_check
          %p1174 = pneg %p160
        $region46: #{gae_forward.3} parent=43 // pred_check_branch
          %1176 = sbr.rel (%p1174) target = $region48
        $region47: #{gae_forward.3} parent=43 // pred_region
          %s1177 = sand.u32 %s145, 1
          %s1178 = scalar_lea.sflag [#allocation3], %s1177
          %s1179 = sand.u32 %s145, 1
          %s1180 = smul.addr %s1179, 128
          %s1181 = scalar_lea.vmem [#allocation2], %s1180
          %1183 = dma.done %s1178, 2048
        $region48: #{gae_forward.3} parent=43 // pred_fallthru
          _
      $region44: #{gae_forward.3} parent=5 // pred_fallthru
        _
    $region6: #{gae_forward.3} parent=1 // loop_footer
      %s17 = sadd.s32 1, %s13
    $region7: #{gae_forward.3} parent=1 // loop_footer_branch
      %12 = sbr.rel target = $region3
    $region8: #{gae_forward.3} parent=1 // loop_exit
      _
    %1184 = vsyncpa [#allocation3], 1
    %s1185 = scalar_lea.sflag [#allocation3], 1
    %1186 = vsyncpa %s1185, 1

// kernel: gae_forward.2
$region0: #{gae_forward.2}
  #allocation0 [shape = 'u32[]', space=smem, size = 0x4, offset = 0x4, fixed_abs, tag = 'smem constant byte address 0x4 - core index']
  #allocation1 [shape = 'u32[72,128]{1,0:T(1,128)}', space=vmem, size = 0x9000, scoped, tag = 'internal scratch']
  %s0 = inlined_call_operand.vmem [shape: bf16[256,128], index: 0, kind: input, shape index: {}]
  %s1 = inlined_call_operand.vmem [shape: bf16[256,256], index: 1, kind: input, shape index: {}]
  %s2 = inlined_call_operand.vmem [shape: bf16[8,128,128], index: 2, kind: input, shape index: {}]
  %s3 = inlined_call_operand.vmem [shape: f32[256,128], index: 3, kind: output, shape index: {0}]
  %s4 = inlined_call_operand.vmem [shape: f32[256,128], index: 4, kind: output, shape index: {1}]
  %5 = xla_tuple %s3, %s4
  %s6 = sld [smem:[#allocation0]]
  $region30: #{gae_forward.2} parent=0
    _
  %s8 = ssub.s32 1, %s6
  %s9 = scalar_select 0, %s8, %s6
  // Predicated region
  $region2: #{gae_forward.2} parent=0 // pred_check
    _
  $region3: #{gae_forward.2} parent=0 // pred_check_branch
    %11 = sbr.rel (0) target = $region5
  $region4: #{gae_forward.2} parent=0 // pred_region
    _
  $region5: #{gae_forward.2} parent=0 // pred_fallthru
    _
  // Predicated region
  $region6: #{gae_forward.2} parent=0 // pred_check
    _
  $region7: #{gae_forward.2} parent=0 // pred_check_branch
    %13 = sbr.rel (0) target = $region9
  $region8: #{gae_forward.2} parent=0 // pred_region
    _
  $region9: #{gae_forward.2} parent=0 // pred_fallthru
    _
  // Predicated region
  $region10: #{gae_forward.2} parent=0 // pred_check
    _
  $region11: #{gae_forward.2} parent=0 // pred_check_branch
    %15 = sbr.rel (0) target = $region13
  $region12: #{gae_forward.2} parent=0 // pred_region
    _
  $region13: #{gae_forward.2} parent=0 // pred_fallthru
    _
  %v16 = vld [vmem:[%s1] sm:$0xff]
  %v17 = vld [vmem:[%s1 + $0x8] sm:$0xff]
  %v18 = vld [vmem:[%s1 + $0x10] sm:$0xff]
  %v19 = vld [vmem:[%s1 + $0x18] sm:$0xff]
  %v20 = vld [vmem:[%s1 + $0x20] sm:$0xff]
  %v21 = vld [vmem:[%s1 + $0x28] sm:$0xff]
  %v22 = vld [vmem:[%s1 + $0x30] sm:$0xff]
  %v23 = vld [vmem:[%s1 + $0x38] sm:$0xff]
  %v24 = vld [vmem:[%s1 + $0x40] sm:$0xff]
  %v25 = vld [vmem:[%s1 + $0x48] sm:$0xff]
  %v26 = vld [vmem:[%s1 + $0x50] sm:$0xff]
  %v27 = vld [vmem:[%s1 + $0x58] sm:$0xff]
  %v28 = vld [vmem:[%s1 + $0x60] sm:$0xff]
  %v29 = vld [vmem:[%s1 + $0x68] sm:$0xff]
  %v30 = vld [vmem:[%s1 + $0x70] sm:$0xff]
  %v31 = vld [vmem:[%s1 + $0x78] sm:$0xff]
  %v32 = vld [vmem:[%s1 + $0x80] sm:$0xff]
  %v33 = vld [vmem:[%s1 + $0x88] sm:$0xff]
  %v34 = vld [vmem:[%s1 + $0x90] sm:$0xff]
  %v35 = vld [vmem:[%s1 + $0x98] sm:$0xff]
  %v36 = vld [vmem:[%s1 + $0xa0] sm:$0xff]
  %v37 = vld [vmem:[%s1 + $0xa8] sm:$0xff]
  %v38 = vld [vmem:[%s1 + $0xb0] sm:$0xff]
  %v39 = vld [vmem:[%s1 + $0xb8] sm:$0xff]
  %v40 = vld [vmem:[%s1 + $0xc0] sm:$0xff]
  %v41 = vld [vmem:[%s1 + $0xc8] sm:$0xff]
  %v42 = vld [vmem:[%s1 + $0xd0] sm:$0xff]
  %v43 = vld [vmem:[%s1 + $0xd8] sm:$0xff]
  %v44 = vld [vmem:[%s1 + $0xe0] sm:$0xff]
  %v45 = vld [vmem:[%s1 + $0xe8] sm:$0xff]
  %v46 = vld [vmem:[%s1 + $0xf0] sm:$0xff]
  %v47 = vld [vmem:[%s1 + $0xf8] sm:$0xff]
  %v48 = vld [vmem:[%s0] sm:$0xf]
  %v49 = vld [vmem:[%s0 + $0x4] sm:$0xf]
  %v50 = vld [vmem:[%s0 + $0x8] sm:$0xf]
  %v51 = vld [vmem:[%s0 + $0xc] sm:$0xf]
  %v52 = vld [vmem:[%s0 + $0x10] sm:$0xf]
  %v53 = vld [vmem:[%s0 + $0x14] sm:$0xf]
  %v54 = vld [vmem:[%s0 + $0x18] sm:$0xf]
  %v55 = vld [vmem:[%s0 + $0x1c] sm:$0xf]
  %v56 = vld [vmem:[%s0 + $0x20] sm:$0xf]
  %v57 = vld [vmem:[%s0 + $0x24] sm:$0xf]
  %v58 = vld [vmem:[%s0 + $0x28] sm:$0xf]
  %v59 = vld [vmem:[%s0 + $0x2c] sm:$0xf]
  %v60 = vld [vmem:[%s0 + $0x30] sm:$0xf]
  %v61 = vld [vmem:[%s0 + $0x34] sm:$0xf]
  %v62 = vld [vmem:[%s0 + $0x38] sm:$0xf]
  %v63 = vld [vmem:[%s0 + $0x3c] sm:$0xf]
  %v64 = vld [vmem:[%s0 + $0x40] sm:$0xf]
  %v65 = vld [vmem:[%s0 + $0x44] sm:$0xf]
  %v66 = vld [vmem:[%s0 + $0x48] sm:$0xf]
  %v67 = vld [vmem:[%s0 + $0x4c] sm:$0xf]
  %v68 = vld [vmem:[%s0 + $0x50] sm:$0xf]
  %v69 = vld [vmem:[%s0 + $0x54] sm:$0xf]
  %v70 = vld [vmem:[%s0 + $0x58] sm:$0xf]
  %v71 = vld [vmem:[%s0 + $0x5c] sm:$0xf]
  %v72 = vld [vmem:[%s0 + $0x60] sm:$0xf]
  %v73 = vld [vmem:[%s0 + $0x64] sm:$0xf]
  %v74 = vld [vmem:[%s0 + $0x68] sm:$0xf]
  %v75 = vld [vmem:[%s0 + $0x6c] sm:$0xf]
  %v76 = vld [vmem:[%s0 + $0x70] sm:$0xf]
  %v77 = vld [vmem:[%s0 + $0x74] sm:$0xf]
  %v78 = vld [vmem:[%s0 + $0x78] sm:$0xf]
  %v79 = vld [vmem:[%s0 + $0x7c] sm:$0xf]
  %v80 = vld [vmem:[%s2] sm:$0xf]
  %v81 = vld [vmem:[%s2 + $0x4] sm:$0xf]
  %v82 = vld [vmem:[%s2 + $0x8] sm:$0xf]
  %v83 = vld [vmem:[%s2 + $0xc] sm:$0xf]
  %v84 = vld [vmem:[%s2 + $0x10] sm:$0xf]
  %v85 = vld [vmem:[%s2 + $0x14] sm:$0xf]
  %v86 = vld [vmem:[%s2 + $0x18] sm:$0xf]
  %v87 = vld [vmem:[%s2 + $0x1c] sm:$0xf]
  %v88 = vld [vmem:[%s2 + $0x20] sm:$0xf]
  %v89 = vld [vmem:[%s2 + $0x24] sm:$0xf]
  %v90 = vld [vmem:[%s2 + $0x28] sm:$0xf]
  %v91 = vld [vmem:[%s2 + $0x2c] sm:$0xf]
  %v92 = vld [vmem:[%s2 + $0x30] sm:$0xf]
  %v93 = vld [vmem:[%s2 + $0x34] sm:$0xf]
  %v94 = vld [vmem:[%s2 + $0x38] sm:$0xf]
  %v95 = vld [vmem:[%s2 + $0x3c] sm:$0xf]
  %v128 = vunpack.c.l.b16 %v48
  %v129 = vunpack.c.l.b16 %v49
  %v130 = vunpack.c.l.b16 %v50
  %v131 = vunpack.c.l.b16 %v51
  %v132 = vunpack.c.l.b16 %v52
  %v133 = vunpack.c.l.b16 %v53
  %v134 = vunpack.c.l.b16 %v54
  %v135 = vunpack.c.l.b16 %v55
  %v136 = vunpack.c.l.b16 %v56
  %v137 = vunpack.c.l.b16 %v57
  %v138 = vunpack.c.l.b16 %v58
  %v139 = vunpack.c.l.b16 %v59
  %v140 = vunpack.c.l.b16 %v60
  %v141 = vunpack.c.l.b16 %v61
  %v142 = vunpack.c.l.b16 %v62
  %v143 = vunpack.c.l.b16 %v63
  %v144 = vunpack.c.l.b16 %v64
  %v145 = vunpack.c.l.b16 %v65
  %v146 = vunpack.c.l.b16 %v66
  %v147 = vunpack.c.l.b16 %v67
  %v148 = vunpack.c.l.b16 %v68
  %v149 = vunpack.c.l.b16 %v69
  %v150 = vunpack.c.l.b16 %v70
  %v151 = vunpack.c.l.b16 %v71
  %v152 = vunpack.c.l.b16 %v72
  %v153 = vunpack.c.l.b16 %v73
  %v154 = vunpack.c.l.b16 %v74
  %v155 = vunpack.c.l.b16 %v75
  %v156 = vunpack.c.l.b16 %v76
  %v157 = vunpack.c.l.b16 %v77
  %v158 = vunpack.c.l.b16 %v78
  %v159 = vunpack.c.l.b16 %v79
  %v160 = vpack.c.b16 %v129, %v128
  %v161 = vpack.c.b16 %v131, %v130
  %v162 = vpack.c.b16 %v133, %v132
  %v163 = vpack.c.b16 %v135, %v134
  %v164 = vpack.c.b16 %v137, %v136
  %v165 = vpack.c.b16 %v139, %v138
  %v166 = vpack.c.b16 %v141, %v140
  %v167 = vpack.c.b16 %v143, %v142
  %v168 = vpack.c.b16 %v145, %v144
  %v169 = vpack.c.b16 %v147, %v146
  %v170 = vpack.c.b16 %v149, %v148
  %v171 = vpack.c.b16 %v151, %v150
  %v172 = vpack.c.b16 %v153, %v152
  %v173 = vpack.c.b16 %v155, %v154
  %v174 = vpack.c.b16 %v157, %v156
  %v175 = vpack.c.b16 %v159, %v158
  %v208 = vunpack.c.l.b16 %v80
  %v209 = vunpack.c.l.b16 %v81
  %v210 = vunpack.c.l.b16 %v82
  %v211 = vunpack.c.l.b16 %v83
  %v212 = vunpack.c.l.b16 %v84
  %v213 = vunpack.c.l.b16 %v85
  %v214 = vunpack.c.l.b16 %v86
  %v215 = vunpack.c.l.b16 %v87
  %v216 = vunpack.c.l.b16 %v88
  %v217 = vunpack.c.l.b16 %v89
  %v218 = vunpack.c.l.b16 %v90
  %v219 = vunpack.c.l.b16 %v91
  %v220 = vunpack.c.l.b16 %v92
  %v221 = vunpack.c.l.b16 %v93
  %v222 = vunpack.c.l.b16 %v94
  %v223 = vunpack.c.l.b16 %v95
  %v224 = vpack.c.b16 %v209, %v208
  %v225 = vpack.c.b16 %v211, %v210
  %v226 = vpack.c.b16 %v213, %v212
  %v227 = vpack.c.b16 %v215, %v214
  %v228 = vpack.c.b16 %v217, %v216
  %v229 = vpack.c.b16 %v219, %v218
  %v230 = vpack.c.b16 %v221, %v220
  %v231 = vpack.c.b16 %v223, %v222
  %240 = vmatpush.bf16.msra.mxu0 %v231
  %241 = vmatpush.bf16.msra.mxu0 %v230
  %242 = vmatpush.bf16.msra.mxu0 %v229
  %243 = vmatpush.bf16.msra.mxu0 %v228
  %244 = vmatpush.bf16.msra.mxu0 %v227
  %245 = vmatpush.bf16.msra.mxu0 %v226
  %246 = vmatpush.bf16.msra.mxu0 %v225
  %247 = vmatpush.bf16.msra.mxu0 %v224
  %248 = vmatmul.bf16.gmra.mxu0 %v160
  %v249 = vpop.f32.mrf.mxu0
  %v250 = vadd.f32 0.0, %v249
  %v251 = vpop.f32.mrf.mxu0
  %v252 = vadd.f32 0.0, %v251
  %253 = vmatmul.bf16.gmra.mxu0 %v161
  %v254 = vpop.f32.mrf.mxu0
  %v255 = vadd.f32 0.0, %v254
  %v256 = vpop.f32.mrf.mxu0
  %v257 = vadd.f32 0.0, %v256
  %258 = vmatmul.bf16.gmra.mxu0 %v162
  %v259 = vpop.f32.mrf.mxu0
  %v260 = vadd.f32 0.0, %v259
  %v261 = vpop.f32.mrf.mxu0
  %v262 = vadd.f32 0.0, %v261
  %263 = vmatmul.bf16.gmra.mxu0 %v163
  %v264 = vpop.f32.mrf.mxu0
  %v265 = vadd.f32 0.0, %v264
  %v266 = vpop.f32.mrf.mxu0
  %v267 = vadd.f32 0.0, %v266
  %268 = vmatmul.bf16.gmra.mxu0 %v164
  %v269 = vpop.f32.mrf.mxu0
  %v270 = vadd.f32 0.0, %v269
  %v271 = vpop.f32.mrf.mxu0
  %v272 = vadd.f32 0.0, %v271
  %273 = vmatmul.bf16.gmra.mxu0 %v165
  %v274 = vpop.f32.mrf.mxu0
  %v275 = vadd.f32 0.0, %v274
  %v276 = vpop.f32.mrf.mxu0
  %v277 = vadd.f32 0.0, %v276
  %278 = vmatmul.bf16.gmra.mxu0 %v166
  %v279 = vpop.f32.mrf.mxu0
  %v280 = vadd.f32 0.0, %v279
  %v281 = vpop.f32.mrf.mxu0
  %v282 = vadd.f32 0.0, %v281
  %283 = vmatmul.bf16.gmra.mxu0 %v167
  %v284 = vpop.f32.mrf.mxu0
  %v285 = vadd.f32 0.0, %v284
  %v286 = vpop.f32.mrf.mxu0
  %v287 = vadd.f32 0.0, %v286
  %288 = vmatmul.bf16.gmra.mxu0 %v168
  %v289 = vpop.f32.mrf.mxu0
  %v290 = vadd.f32 0.0, %v289
  %v291 = vpop.f32.mrf.mxu0
  %v292 = vadd.f32 0.0, %v291
  %293 = vmatmul.bf16.gmra.mxu0 %v169
  %v294 = vpop.f32.mrf.mxu0
  %v295 = vadd.f32 0.0, %v294
  %v296 = vpop.f32.mrf.mxu0
  %v297 = vadd.f32 0.0, %v296
  %298 = vmatmul.bf16.gmra.mxu0 %v170
  %v299 = vpop.f32.mrf.mxu0
  %v300 = vadd.f32 0.0, %v299
  %v301 = vpop.f32.mrf.mxu0
  %v302 = vadd.f32 0.0, %v301
  %303 = vmatmul.bf16.gmra.mxu0 %v171
  %v304 = vpop.f32.mrf.mxu0
  %v305 = vadd.f32 0.0, %v304
  %v306 = vpop.f32.mrf.mxu0
  %v307 = vadd.f32 0.0, %v306
  %308 = vmatmul.bf16.gmra.mxu0 %v172
  %v309 = vpop.f32.mrf.mxu0
  %v310 = vadd.f32 0.0, %v309
  %v311 = vpop.f32.mrf.mxu0
  %v312 = vadd.f32 0.0, %v311
  %313 = vmatmul.bf16.gmra.mxu0 %v173
  %v314 = vpop.f32.mrf.mxu0
  %v315 = vadd.f32 0.0, %v314
  %v316 = vpop.f32.mrf.mxu0
  %v317 = vadd.f32 0.0, %v316
  %318 = vmatmul.bf16.gmra.mxu0 %v174
  %v319 = vpop.f32.mrf.mxu0
  %v320 = vadd.f32 0.0, %v319
  %v321 = vpop.f32.mrf.mxu0
  %v322 = vadd.f32 0.0, %v321
  %323 = vmatmul.bf16.gmra.mxu0 %v175
  %v324 = vpop.f32.mrf.mxu0
  %v325 = vadd.f32 0.0, %v324
  %v326 = vpop.f32.mrf.mxu0
  %v327 = vadd.f32 0.0, %v326
  %328 = vdwg.mxu0
  %v329 = vpack.c.bf16 %v252, %v250
  %v330 = vpack.c.bf16 %v257, %v255
  %v331 = vpack.c.bf16 %v262, %v260
  %v332 = vpack.c.bf16 %v267, %v265
  %v333 = vpack.c.bf16 %v272, %v270
  %v334 = vpack.c.bf16 %v277, %v275
  %v335 = vpack.c.bf16 %v282, %v280
  %v336 = vpack.c.bf16 %v287, %v285
  %v337 = vpack.c.bf16 %v292, %v290
  %v338 = vpack.c.bf16 %v297, %v295
  %v339 = vpack.c.bf16 %v302, %v300
  %v340 = vpack.c.bf16 %v307, %v305
  %v341 = vpack.c.bf16 %v312, %v310
  %v342 = vpack.c.bf16 %v317, %v315
  %v343 = vpack.c.bf16 %v322, %v320
  %v344 = vpack.c.bf16 %v327, %v325
  %v377 = vunpack.c.l.b16 %v16
  %v378 = vunpack.c.h.b16 %v16
  %v379 = vunpack.c.l.b16 %v17
  %v380 = vunpack.c.h.b16 %v17
  %v381 = vunpack.c.l.b16 %v18
  %v382 = vunpack.c.h.b16 %v18
  %v383 = vunpack.c.l.b16 %v19
  %v384 = vunpack.c.h.b16 %v19
  %v385 = vunpack.c.l.b16 %v20
  %v386 = vunpack.c.h.b16 %v20
  %v387 = vunpack.c.l.b16 %v21
  %v388 = vunpack.c.h.b16 %v21
  %v389 = vunpack.c.l.b16 %v22
  %v390 = vunpack.c.h.b16 %v22
  %v391 = vunpack.c.l.b16 %v23
  %v392 = vunpack.c.h.b16 %v23
  %v393 = vunpack.c.l.b16 %v24
  %v394 = vunpack.c.h.b16 %v24
  %v395 = vunpack.c.l.b16 %v25
  %v396 = vunpack.c.h.b16 %v25
  %v397 = vunpack.c.l.b16 %v26
  %v398 = vunpack.c.h.b16 %v26
  %v399 = vunpack.c.l.b16 %v27
  %v400 = vunpack.c.h.b16 %v27
  %v401 = vunpack.c.l.b16 %v28
  %v402 = vunpack.c.h.b16 %v28
  %v403 = vunpack.c.l.b16 %v29
  %v404 = vunpack.c.h.b16 %v29
  %v405 = vunpack.c.l.b16 %v30
  %v406 = vunpack.c.h.b16 %v30
  %v407 = vunpack.c.l.b16 %v31
  %v408 = vunpack.c.h.b16 %v31
  %v409 = vunpack.c.l.b16 %v32
  %v410 = vunpack.c.h.b16 %v32
  %v411 = vunpack.c.l.b16 %v33
  %v412 = vunpack.c.h.b16 %v33
  %v413 = vunpack.c.l.b16 %v34
  %v414 = vunpack.c.h.b16 %v34
  %v415 = vunpack.c.l.b16 %v35
  %v416 = vunpack.c.h.b16 %v35
  %v417 = vunpack.c.l.b16 %v36
  %v418 = vunpack.c.h.b16 %v36
  %v419 = vunpack.c.l.b16 %v37
  %v420 = vunpack.c.h.b16 %v37
  %v421 = vunpack.c.l.b16 %v38
  %v422 = vunpack.c.h.b16 %v38
  %v423 = vunpack.c.l.b16 %v39
  %v424 = vunpack.c.h.b16 %v39
  %v425 = vunpack.c.l.b16 %v40
  %v426 = vunpack.c.h.b16 %v40
  %v427 = vunpack.c.l.b16 %v41
  %v428 = vunpack.c.h.b16 %v41
  %v429 = vunpack.c.l.b16 %v42
  %v430 = vunpack.c.h.b16 %v42
  %v431 = vunpack.c.l.b16 %v43
  %v432 = vunpack.c.h.b16 %v43
  %v433 = vunpack.c.l.b16 %v44
  %v434 = vunpack.c.h.b16 %v44
  %v435 = vunpack.c.l.b16 %v45
  %v436 = vunpack.c.h.b16 %v45
  %v437 = vunpack.c.l.b16 %v46
  %v438 = vunpack.c.h.b16 %v46
  %v439 = vunpack.c.l.b16 %v47
  %v440 = vunpack.c.h.b16 %v47
  %v441 = vpack.c.b16 %v379, %v377
  %v442 = vpack.c.b16 %v380, %v378
  %v443 = vpack.c.b16 %v383, %v381
  %v444 = vpack.c.b16 %v384, %v382
  %v445 = vpack.c.b16 %v387, %v385
  %v446 = vpack.c.b16 %v388, %v386
  %v447 = vpack.c.b16 %v391, %v389
  %v448 = vpack.c.b16 %v392, %v390
  %v449 = vpack.c.b16 %v395, %v393
  %v450 = vpack.c.b16 %v396, %v394
  %v451 = vpack.c.b16 %v399, %v397
  %v452 = vpack.c.b16 %v400, %v398
  %v453 = vpack.c.b16 %v403, %v401
  %v454 = vpack.c.b16 %v404, %v402
  %v455 = vpack.c.b16 %v407, %v405
  %v456 = vpack.c.b16 %v408, %v406
  %v457 = vpack.c.b16 %v411, %v409
  %v458 = vpack.c.b16 %v412, %v410
  %v459 = vpack.c.b16 %v415, %v413
  %v460 = vpack.c.b16 %v416, %v414
  %v461 = vpack.c.b16 %v419, %v417
  %v462 = vpack.c.b16 %v420, %v418
  %v463 = vpack.c.b16 %v423, %v421
  %v464 = vpack.c.b16 %v424, %v422
  %v465 = vpack.c.b16 %v427, %v425
  %v466 = vpack.c.b16 %v428, %v426
  %v467 = vpack.c.b16 %v431, %v429
  %v468 = vpack.c.b16 %v432, %v430
  %v469 = vpack.c.b16 %v435, %v433
  %v470 = vpack.c.b16 %v436, %v434
  %v471 = vpack.c.b16 %v439, %v437
  %v472 = vpack.c.b16 %v440, %v438
  %505 = vmatpush.bf16.msra.mxu0 %v336
  %506 = vmatpush.bf16.msra.mxu0 %v335
  %507 = vmatpush.bf16.msra.mxu0 %v334
  %508 = vmatpush.bf16.msra.mxu0 %v333
  %509 = vmatpush.bf16.msra.mxu0 %v332
  %510 = vmatpush.bf16.msra.mxu0 %v331
  %511 = vmatpush.bf16.msra.mxu0 %v330
  %512 = vmatpush.bf16.msra.mxu0 %v329
  %513 = vmatmul.bf16.gmra.mxu0 %v441
  %v514 = vpop.f32.mrf.mxu0
  %v515 = vadd.f32 0.0, %v514
  %v516 = vpop.f32.mrf.mxu0
  %v517 = vadd.f32 0.0, %v516
  %518 = vmatmul.bf16.gmra.mxu0 %v443
  %v519 = vpop.f32.mrf.mxu0
  %v520 = vadd.f32 0.0, %v519
  %v521 = vpop.f32.mrf.mxu0
  %v522 = vadd.f32 0.0, %v521
  %523 = vmatmul.bf16.gmra.mxu0 %v445
  %v524 = vpop.f32.mrf.mxu0
  %v525 = vadd.f32 0.0, %v524
  %v526 = vpop.f32.mrf.mxu0
  %v527 = vadd.f32 0.0, %v526
  %528 = vmatmul.bf16.gmra.mxu0 %v447
  %v529 = vpop.f32.mrf.mxu0
  %v530 = vadd.f32 0.0, %v529
  %v531 = vpop.f32.mrf.mxu0
  %v532 = vadd.f32 0.0, %v531
  %533 = vmatmul.bf16.gmra.mxu0 %v449
  %v534 = vpop.f32.mrf.mxu0
  %v535 = vadd.f32 0.0, %v534
  %v536 = vpop.f32.mrf.mxu0
  %v537 = vadd.f32 0.0, %v536
  %538 = vmatmul.bf16.gmra.mxu0 %v451
  %v539 = vpop.f32.mrf.mxu0
  %v540 = vadd.f32 0.0, %v539
  %v541 = vpop.f32.mrf.mxu0
  %v542 = vadd.f32 0.0, %v541
  %543 = vmatmul.bf16.gmra.mxu0 %v453
  %v544 = vpop.f32.mrf.mxu0
  %v545 = vadd.f32 0.0, %v544
  %v546 = vpop.f32.mrf.mxu0
  %v547 = vadd.f32 0.0, %v546
  %548 = vmatmul.bf16.gmra.mxu0 %v455
  %v549 = vpop.f32.mrf.mxu0
  %v550 = vadd.f32 0.0, %v549
  %v551 = vpop.f32.mrf.mxu0
  %v552 = vadd.f32 0.0, %v551
  %553 = vmatmul.bf16.gmra.mxu0 %v457
  %v554 = vpop.f32.mrf.mxu0
  %v555 = vadd.f32 0.0, %v554
  %v556 = vpop.f32.mrf.mxu0
  %v557 = vadd.f32 0.0, %v556
  %558 = vmatmul.bf16.gmra.mxu0 %v459
  %v559 = vpop.f32.mrf.mxu0
  %v560 = vadd.f32 0.0, %v559
  %v561 = vpop.f32.mrf.mxu0
  %v562 = vadd.f32 0.0, %v561
  %563 = vmatmul.bf16.gmra.mxu0 %v461
  %v564 = vpop.f32.mrf.mxu0
  %v565 = vadd.f32 0.0, %v564
  %v566 = vpop.f32.mrf.mxu0
  %v567 = vadd.f32 0.0, %v566
  %568 = vmatmul.bf16.gmra.mxu0 %v463
  %v569 = vpop.f32.mrf.mxu0
  %v570 = vadd.f32 0.0, %v569
  %v571 = vpop.f32.mrf.mxu0
  %v572 = vadd.f32 0.0, %v571
  %573 = vmatmul.bf16.gmra.mxu0 %v465
  %v574 = vpop.f32.mrf.mxu0
  %v575 = vadd.f32 0.0, %v574
  %v576 = vpop.f32.mrf.mxu0
  %v577 = vadd.f32 0.0, %v576
  %578 = vmatmul.bf16.gmra.mxu0 %v467
  %v579 = vpop.f32.mrf.mxu0
  %v580 = vadd.f32 0.0, %v579
  %v581 = vpop.f32.mrf.mxu0
  %v582 = vadd.f32 0.0, %v581
  %583 = vmatmul.bf16.gmra.mxu0 %v469
  %v584 = vpop.f32.mrf.mxu0
  %v585 = vadd.f32 0.0, %v584
  %v586 = vpop.f32.mrf.mxu0
  %v587 = vadd.f32 0.0, %v586
  %588 = vmatmul.bf16.gmra.mxu0 %v471
  %v589 = vpop.f32.mrf.mxu0
  %v590 = vadd.f32 0.0, %v589
  %v591 = vpop.f32.mrf.mxu0
  %v592 = vadd.f32 0.0, %v591
  %593 = vdwg.mxu0
  %594 = vmatpush.bf16.msra.mxu0 %v344
  %595 = vmatpush.bf16.msra.mxu0 %v343
  %596 = vmatpush.bf16.msra.mxu0 %v342
  %597 = vmatpush.bf16.msra.mxu0 %v341
  %598 = vmatpush.bf16.msra.mxu0 %v340
  %599 = vmatpush.bf16.msra.mxu0 %v339
  %600 = vmatpush.bf16.msra.mxu0 %v338
  %601 = vmatpush.bf16.msra.mxu0 %v337
  %602 = vmatmul.bf16.gmra.mxu0 %v442
  %v603 = vpop.f32.mrf.mxu0
  %v604 = vadd.f32 %v515, %v603
  %v605 = vpop.f32.mrf.mxu0
  %v606 = vadd.f32 %v517, %v605
  %607 = vmatmul.bf16.gmra.mxu0 %v444
  %v608 = vpop.f32.mrf.mxu0
  %v609 = vadd.f32 %v520, %v608
  %v610 = vpop.f32.mrf.mxu0
  %v611 = vadd.f32 %v522, %v610
  %612 = vmatmul.bf16.gmra.mxu0 %v446
  %v613 = vpop.f32.mrf.mxu0
  %v614 = vadd.f32 %v525, %v613
  %v615 = vpop.f32.mrf.mxu0
  %v616 = vadd.f32 %v527, %v615
  %617 = vmatmul.bf16.gmra.mxu0 %v448
  %v618 = vpop.f32.mrf.mxu0
  %v619 = vadd.f32 %v530, %v618
  %v620 = vpop.f32.mrf.mxu0
  %v621 = vadd.f32 %v532, %v620
  %622 = vmatmul.bf16.gmra.mxu0 %v450
  %v623 = vpop.f32.mrf.mxu0
  %v624 = vadd.f32 %v535, %v623
  %v625 = vpop.f32.mrf.mxu0
  %v626 = vadd.f32 %v537, %v625
  %627 = vmatmul.bf16.gmra.mxu0 %v452
  %v628 = vpop.f32.mrf.mxu0
  %v629 = vadd.f32 %v540, %v628
  %v630 = vpop.f32.mrf.mxu0
  %v631 = vadd.f32 %v542, %v630
  %632 = vmatmul.bf16.gmra.mxu0 %v454
  %v633 = vpop.f32.mrf.mxu0
  %v634 = vadd.f32 %v545, %v633
  %v635 = vpop.f32.mrf.mxu0
  %v636 = vadd.f32 %v547, %v635
  %637 = vmatmul.bf16.gmra.mxu0 %v456
  %v638 = vpop.f32.mrf.mxu0
  %v639 = vadd.f32 %v550, %v638
  %v640 = vpop.f32.mrf.mxu0
  %v641 = vadd.f32 %v552, %v640
  %642 = vmatmul.bf16.gmra.mxu0 %v458
  %v643 = vpop.f32.mrf.mxu0
  %v644 = vadd.f32 %v555, %v643
  %v645 = vpop.f32.mrf.mxu0
  %v646 = vadd.f32 %v557, %v645
  %647 = vmatmul.bf16.gmra.mxu0 %v460
  %v648 = vpop.f32.mrf.mxu0
  %v649 = vadd.f32 %v560, %v648
  %v650 = vpop.f32.mrf.mxu0
  %v651 = vadd.f32 %v562, %v650
  %652 = vmatmul.bf16.gmra.mxu0 %v462
  %v653 = vpop.f32.mrf.mxu0
  %v654 = vadd.f32 %v565, %v653
  %v655 = vpop.f32.mrf.mxu0
  %v656 = vadd.f32 %v567, %v655
  %657 = vmatmul.bf16.gmra.mxu0 %v464
  %v658 = vpop.f32.mrf.mxu0
  %v659 = vadd.f32 %v570, %v658
  %v660 = vpop.f32.mrf.mxu0
  %v661 = vadd.f32 %v572, %v660
  %662 = vmatmul.bf16.gmra.mxu0 %v466
  %v663 = vpop.f32.mrf.mxu0
  %v664 = vadd.f32 %v575, %v663
  %v665 = vpop.f32.mrf.mxu0
  %v666 = vadd.f32 %v577, %v665
  %667 = vmatmul.bf16.gmra.mxu0 %v468
  %v668 = vpop.f32.mrf.mxu0
  %v669 = vadd.f32 %v580, %v668
  %v670 = vpop.f32.mrf.mxu0
  %v671 = vadd.f32 %v582, %v670
  %672 = vmatmul.bf16.gmra.mxu0 %v470
  %v673 = vpop.f32.mrf.mxu0
  %v674 = vadd.f32 %v585, %v673
  %v675 = vpop.f32.mrf.mxu0
  %v676 = vadd.f32 %v587, %v675
  %677 = vmatmul.bf16.gmra.mxu0 %v472
  %v678 = vpop.f32.mrf.mxu0
  %v679 = vadd.f32 %v590, %v678
  %v680 = vpop.f32.mrf.mxu0
  %v681 = vadd.f32 %v592, %v680
  %682 = vdwg.mxu0
  %v683 = vmax.f32 %v604, 0.0
  %v684 = vmax.f32 %v606, 0.0
  %v685 = vmax.f32 %v609, 0.0
  %v686 = vmax.f32 %v611, 0.0
  %v687 = vmax.f32 %v614, 0.0
  %v688 = vmax.f32 %v616, 0.0
  %v689 = vmax.f32 %v619, 0.0
  %v690 = vmax.f32 %v621, 0.0
  %v691 = vmax.f32 %v624, 0.0
  %v692 = vmax.f32 %v626, 0.0
  %v693 = vmax.f32 %v629, 0.0
  %v694 = vmax.f32 %v631, 0.0
  %v695 = vmax.f32 %v634, 0.0
  %v696 = vmax.f32 %v636, 0.0
  %v697 = vmax.f32 %v639, 0.0
  %v698 = vmax.f32 %v641, 0.0
  %v699 = vmax.f32 %v644, 0.0
  %v700 = vmax.f32 %v646, 0.0
  %v701 = vmax.f32 %v649, 0.0
  %v702 = vmax.f32 %v651, 0.0
  %v703 = vmax.f32 %v654, 0.0
  %v704 = vmax.f32 %v656, 0.0
  %v705 = vmax.f32 %v659, 0.0
  %v706 = vmax.f32 %v661, 0.0
  %v707 = vmax.f32 %v664, 0.0
  %v708 = vmax.f32 %v666, 0.0
  %v709 = vmax.f32 %v669, 0.0
  %v710 = vmax.f32 %v671, 0.0
  %v711 = vmax.f32 %v674, 0.0
  %v712 = vmax.f32 %v676, 0.0
  %v713 = vmax.f32 %v679, 0.0
  %v714 = vmax.f32 %v681, 0.0
  %v715 = vpack.c.bf16 %v684, %v683
  %v716 = vpack.c.bf16 %v686, %v685
  %v717 = vpack.c.bf16 %v688, %v687
  %v718 = vpack.c.bf16 %v690, %v689
  %v719 = vpack.c.bf16 %v692, %v691
  %v720 = vpack.c.bf16 %v694, %v693
  %v721 = vpack.c.bf16 %v696, %v695
  %v722 = vpack.c.bf16 %v698, %v697
  %v723 = vpack.c.bf16 %v700, %v699
  %v724 = vpack.c.bf16 %v702, %v701
  %v725 = vpack.c.bf16 %v704, %v703
  %v726 = vpack.c.bf16 %v706, %v705
  %v727 = vpack.c.bf16 %v708, %v707
  %v728 = vpack.c.bf16 %v710, %v709
  %v729 = vpack.c.bf16 %v712, %v711
  %v730 = vpack.c.bf16 %v714, %v713
  %s731 = scalar_lea.vmem %s2, 64
  %v732 = vld [vmem:[%s731] sm:$0xf]
  %v733 = vld [vmem:[%s731 + $0x4] sm:$0xf]
  %v734 = vld [vmem:[%s731 + $0x8] sm:$0xf]
  %v735 = vld [vmem:[%s731 + $0xc] sm:$0xf]
  %v736 = vld [vmem:[%s731 + $0x10] sm:$0xf]
  %v737 = vld [vmem:[%s731 + $0x14] sm:$0xf]
  %v738 = vld [vmem:[%s731 + $0x18] sm:$0xf]
  %v739 = vld [vmem:[%s731 + $0x1c] sm:$0xf]
  %v740 = vld [vmem:[%s731 + $0x20] sm:$0xf]
  %v741 = vld [vmem:[%s731 + $0x24] sm:$0xf]
  %v742 = vld [vmem:[%s731 + $0x28] sm:$0xf]
  %v743 = vld [vmem:[%s731 + $0x2c] sm:$0xf]
  %v744 = vld [vmem:[%s731 + $0x30] sm:$0xf]
  %v745 = vld [vmem:[%s731 + $0x34] sm:$0xf]
  %v746 = vld [vmem:[%s731 + $0x38] sm:$0xf]
  %v747 = vld [vmem:[%s731 + $0x3c] sm:$0xf]
  %v764 = vunpack.c.l.b16 %v732
  %v765 = vunpack.c.l.b16 %v733
  %v766 = vunpack.c.l.b16 %v734
  %v767 = vunpack.c.l.b16 %v735
  %v768 = vunpack.c.l.b16 %v736
  %v769 = vunpack.c.l.b16 %v737
  %v770 = vunpack.c.l.b16 %v738
  %v771 = vunpack.c.l.b16 %v739
  %v772 = vunpack.c.l.b16 %v740
  %v773 = vunpack.c.l.b16 %v741
  %v774 = vunpack.c.l.b16 %v742
  %v775 = vunpack.c.l.b16 %v743
  %v776 = vunpack.c.l.b16 %v744
  %v777 = vunpack.c.l.b16 %v745
  %v778 = vunpack.c.l.b16 %v746
  %v779 = vunpack.c.l.b16 %v747
  %v780 = vpack.c.b16 %v765, %v764
  %v781 = vpack.c.b16 %v767, %v766
  %v782 = vpack.c.b16 %v769, %v768
  %v783 = vpack.c.b16 %v771, %v770
  %v784 = vpack.c.b16 %v773, %v772
  %v785 = vpack.c.b16 %v775, %v774
  %v786 = vpack.c.b16 %v777, %v776
  %v787 = vpack.c.b16 %v779, %v778
  %796 = vmatpush.bf16.msra.mxu0 %v787
  %797 = vmatpush.bf16.msra.mxu0 %v786
  %798 = vmatpush.bf16.msra.mxu0 %v785
  %799 = vmatpush.bf16.msra.mxu0 %v784
  %800 = vmatpush.bf16.msra.mxu0 %v783
  %801 = vmatpush.bf16.msra.mxu0 %v782
  %802 = vmatpush.bf16.msra.mxu0 %v781
  %803 = vmatpush.bf16.msra.mxu0 %v780
  %804 = vmatmul.bf16.gmra.mxu0 %v715
  %v805 = vpop.f32.mrf.mxu0
  %v806 = vadd.f32 0.0, %v805
  %v807 = vpop.f32.mrf.mxu0
  %v808 = vadd.f32 0.0, %v807
  %809 = vmatmul.bf16.gmra.mxu0 %v716
  %v810 = vpop.f32.mrf.mxu0
  %v811 = vadd.f32 0.0, %v810
  %v812 = vpop.f32.mrf.mxu0
  %v813 = vadd.f32 0.0, %v812
  %814 = vmatmul.bf16.gmra.mxu0 %v717
  %v815 = vpop.f32.mrf.mxu0
  %v816 = vadd.f32 0.0, %v815
  %v817 = vpop.f32.mrf.mxu0
  %v818 = vadd.f32 0.0, %v817
  %819 = vmatmul.bf16.gmra.mxu0 %v718
  %v820 = vpop.f32.mrf.mxu0
  %v821 = vadd.f32 0.0, %v820
  %v822 = vpop.f32.mrf.mxu0
  %v823 = vadd.f32 0.0, %v822
  %824 = vmatmul.bf16.gmra.mxu0 %v719
  %v825 = vpop.f32.mrf.mxu0
  %v826 = vadd.f32 0.0, %v825
  %v827 = vpop.f32.mrf.mxu0
  %v828 = vadd.f32 0.0, %v827
  %829 = vmatmul.bf16.gmra.mxu0 %v720
  %v830 = vpop.f32.mrf.mxu0
  %v831 = vadd.f32 0.0, %v830
  %v832 = vpop.f32.mrf.mxu0
  %v833 = vadd.f32 0.0, %v832
  %834 = vmatmul.bf16.gmra.mxu0 %v721
  %v835 = vpop.f32.mrf.mxu0
  %v836 = vadd.f32 0.0, %v835
  %v837 = vpop.f32.mrf.mxu0
  %v838 = vadd.f32 0.0, %v837
  %839 = vmatmul.bf16.gmra.mxu0 %v722
  %v840 = vpop.f32.mrf.mxu0
  %v841 = vadd.f32 0.0, %v840
  %v842 = vpop.f32.mrf.mxu0
  %v843 = vadd.f32 0.0, %v842
  %844 = vmatmul.bf16.gmra.mxu0 %v723
  %v845 = vpop.f32.mrf.mxu0
  %v846 = vadd.f32 0.0, %v845
  %v847 = vpop.f32.mrf.mxu0
  %v848 = vadd.f32 0.0, %v847
  %849 = vmatmul.bf16.gmra.mxu0 %v724
  %v850 = vpop.f32.mrf.mxu0
  %v851 = vadd.f32 0.0, %v850
  %v852 = vpop.f32.mrf.mxu0
  %v853 = vadd.f32 0.0, %v852
  %854 = vmatmul.bf16.gmra.mxu0 %v725
  %v855 = vpop.f32.mrf.mxu0
  %v856 = vadd.f32 0.0, %v855
  %v857 = vpop.f32.mrf.mxu0
  %v858 = vadd.f32 0.0, %v857
  %859 = vmatmul.bf16.gmra.mxu0 %v726
  %v860 = vpop.f32.mrf.mxu0
  %v861 = vadd.f32 0.0, %v860
  %v862 = vpop.f32.mrf.mxu0
  %v863 = vadd.f32 0.0, %v862
  %864 = vmatmul.bf16.gmra.mxu0 %v727
  %v865 = vpop.f32.mrf.mxu0
  %v866 = vadd.f32 0.0, %v865
  %v867 = vpop.f32.mrf.mxu0
  %v868 = vadd.f32 0.0, %v867
  %869 = vmatmul.bf16.gmra.mxu0 %v728
  %v870 = vpop.f32.mrf.mxu0
  %v871 = vadd.f32 0.0, %v870
  %v872 = vpop.f32.mrf.mxu0
  %v873 = vadd.f32 0.0, %v872
  %874 = vmatmul.bf16.gmra.mxu0 %v729
  %v875 = vpop.f32.mrf.mxu0
  %v876 = vadd.f32 0.0, %v875
  %v877 = vpop.f32.mrf.mxu0
  %v878 = vadd.f32 0.0, %v877
  %879 = vmatmul.bf16.gmra.mxu0 %v730
  %v880 = vpop.f32.mrf.mxu0
  %v881 = vadd.f32 0.0, %v880
  %v882 = vpop.f32.mrf.mxu0
  %v883 = vadd.f32 0.0, %v882
  %884 = vdwg.mxu0
  %v885 = vpack.c.bf16 %v808, %v806
  %v886 = vpack.c.bf16 %v813, %v811
  %v887 = vpack.c.bf16 %v818, %v816
  %v888 = vpack.c.bf16 %v823, %v821
  %v889 = vpack.c.bf16 %v828, %v826
  %v890 = vpack.c.bf16 %v833, %v831
  %v891 = vpack.c.bf16 %v838, %v836
  %v892 = vpack.c.bf16 %v843, %v841
  %v893 = vpack.c.bf16 %v848, %v846
  %v894 = vpack.c.bf16 %v853, %v851
  %v895 = vpack.c.bf16 %v858, %v856
  %v896 = vpack.c.bf16 %v863, %v861
  %v897 = vpack.c.bf16 %v868, %v866
  %v898 = vpack.c.bf16 %v873, %v871
  %v899 = vpack.c.bf16 %v878, %v876
  %v900 = vpack.c.bf16 %v883, %v881
  %901 = vmatpush.bf16.msra.mxu0 %v892
  %902 = vmatpush.bf16.msra.mxu0 %v891
  %903 = vmatpush.bf16.msra.mxu0 %v890
  %904 = vmatpush.bf16.msra.mxu0 %v889
  %905 = vmatpush.bf16.msra.mxu0 %v888
  %906 = vmatpush.bf16.msra.mxu0 %v887
  %907 = vmatpush.bf16.msra.mxu0 %v886
  %908 = vmatpush.bf16.msra.mxu0 %v885
  %909 = vmatmul.bf16.gmra.mxu0 %v441
  %v910 = vpop.f32.mrf.mxu0
  %v911 = vadd.f32 0.0, %v910
  %v912 = vpop.f32.mrf.mxu0
  %v913 = vadd.f32 0.0, %v912
  %914 = vmatmul.bf16.gmra.mxu0 %v443
  %v915 = vpop.f32.mrf.mxu0
  %v916 = vadd.f32 0.0, %v915
  %v917 = vpop.f32.mrf.mxu0
  %v918 = vadd.f32 0.0, %v917
  %919 = vmatmul.bf16.gmra.mxu0 %v445
  %v920 = vpop.f32.mrf.mxu0
  %v921 = vadd.f32 0.0, %v920
  %v922 = vpop.f32.mrf.mxu0
  %v923 = vadd.f32 0.0, %v922
  %924 = vmatmul.bf16.gmra.mxu0 %v447
  %v925 = vpop.f32.mrf.mxu0
  %v926 = vadd.f32 0.0, %v925
  %v927 = vpop.f32.mrf.mxu0
  %v928 = vadd.f32 0.0, %v927
  %929 = vmatmul.bf16.gmra.mxu0 %v449
  %v930 = vpop.f32.mrf.mxu0
  %v931 = vadd.f32 0.0, %v930
  %v932 = vpop.f32.mrf.mxu0
  %v933 = vadd.f32 0.0, %v932
  %934 = vmatmul.bf16.gmra.mxu0 %v451
  %v935 = vpop.f32.mrf.mxu0
  %v936 = vadd.f32 0.0, %v935
  %v937 = vpop.f32.mrf.mxu0
  %v938 = vadd.f32 0.0, %v937
  %939 = vmatmul.bf16.gmra.mxu0 %v453
  %v940 = vpop.f32.mrf.mxu0
  %v941 = vadd.f32 0.0, %v940
  %v942 = vpop.f32.mrf.mxu0
  %v943 = vadd.f32 0.0, %v942
  %944 = vmatmul.bf16.gmra.mxu0 %v455
  %v945 = vpop.f32.mrf.mxu0
  %v946 = vadd.f32 0.0, %v945
  %v947 = vpop.f32.mrf.mxu0
  %v948 = vadd.f32 0.0, %v947
  %949 = vmatmul.bf16.gmra.mxu0 %v457
  %v950 = vpop.f32.mrf.mxu0
  %v951 = vadd.f32 0.0, %v950
  %v952 = vpop.f32.mrf.mxu0
  %v953 = vadd.f32 0.0, %v952
  %954 = vmatmul.bf16.gmra.mxu0 %v459
  %v955 = vpop.f32.mrf.mxu0
  %v956 = vadd.f32 0.0, %v955
  %v957 = vpop.f32.mrf.mxu0
  %v958 = vadd.f32 0.0, %v957
  %959 = vmatmul.bf16.gmra.mxu0 %v461
  %v960 = vpop.f32.mrf.mxu0
  %v961 = vadd.f32 0.0, %v960
  %v962 = vpop.f32.mrf.mxu0
  %v963 = vadd.f32 0.0, %v962
  %964 = vmatmul.bf16.gmra.mxu0 %v463
  %v965 = vpop.f32.mrf.mxu0
  %v966 = vadd.f32 0.0, %v965
  %v967 = vpop.f32.mrf.mxu0
  %v968 = vadd.f32 0.0, %v967
  %969 = vmatmul.bf16.gmra.mxu0 %v465
  %v970 = vpop.f32.mrf.mxu0
  %v971 = vadd.f32 0.0, %v970
  %v972 = vpop.f32.mrf.mxu0
  %v973 = vadd.f32 0.0, %v972
  %974 = vmatmul.bf16.gmra.mxu0 %v467
  %v975 = vpop.f32.mrf.mxu0
  %v976 = vadd.f32 0.0, %v975
  %v977 = vpop.f32.mrf.mxu0
  %v978 = vadd.f32 0.0, %v977
  %979 = vmatmul.bf16.gmra.mxu0 %v469
  %v980 = vpop.f32.mrf.mxu0
  %v981 = vadd.f32 0.0, %v980
  %v982 = vpop.f32.mrf.mxu0
  %v983 = vadd.f32 0.0, %v982
  %984 = vmatmul.bf16.gmra.mxu0 %v471
  %v985 = vpop.f32.mrf.mxu0
  %v986 = vadd.f32 0.0, %v985
  %v987 = vpop.f32.mrf.mxu0
  %v988 = vadd.f32 0.0, %v987
  %989 = vdwg.mxu0
  %990 = vmatpush.bf16.msra.mxu0 %v900
  %991 = vmatpush.bf16.msra.mxu0 %v899
  %992 = vmatpush.bf16.msra.mxu0 %v898
  %993 = vmatpush.bf16.msra.mxu0 %v897
  %994 = vmatpush.bf16.msra.mxu0 %v896
  %995 = vmatpush.bf16.msra.mxu0 %v895
  %996 = vmatpush.bf16.msra.mxu0 %v894
  %997 = vmatpush.bf16.msra.mxu0 %v893
  %998 = vmatmul.bf16.gmra.mxu0 %v442
  %v999 = vpop.f32.mrf.mxu0
  %v1000 = vadd.f32 %v911, %v999
  %v1001 = vpop.f32.mrf.mxu0
  %v1002 = vadd.f32 %v913, %v1001
  %1003 = vmatmul.bf16.gmra.mxu0 %v444
  %v1004 = vpop.f32.mrf.mxu0
  %v1005 = vadd.f32 %v916, %v1004
  %v1006 = vpop.f32.mrf.mxu0
  %v1007 = vadd.f32 %v918, %v1006
  %1008 = vmatmul.bf16.gmra.mxu0 %v446
  %v1009 = vpop.f32.mrf.mxu0
  %v1010 = vadd.f32 %v921, %v1009
  %v1011 = vpop.f32.mrf.mxu0
  %v1012 = vadd.f32 %v923, %v1011
  %1013 = vmatmul.bf16.gmra.mxu0 %v448
  %v1014 = vpop.f32.mrf.mxu0
  %v1015 = vadd.f32 %v926, %v1014
  %v1016 = vpop.f32.mrf.mxu0
  %v1017 = vadd.f32 %v928, %v1016
  %1018 = vmatmul.bf16.gmra.mxu0 %v450
  %v1019 = vpop.f32.mrf.mxu0
  %v1020 = vadd.f32 %v931, %v1019
  %v1021 = vpop.f32.mrf.mxu0
  %v1022 = vadd.f32 %v933, %v1021
  %1023 = vmatmul.bf16.gmra.mxu0 %v452
  %v1024 = vpop.f32.mrf.mxu0
  %v1025 = vadd.f32 %v936, %v1024
  %v1026 = vpop.f32.mrf.mxu0
  %v1027 = vadd.f32 %v938, %v1026
  %1028 = vmatmul.bf16.gmra.mxu0 %v454
  %v1029 = vpop.f32.mrf.mxu0
  %v1030 = vadd.f32 %v941, %v1029
  %v1031 = vpop.f32.mrf.mxu0
  %v1032 = vadd.f32 %v943, %v1031
  %1033 = vmatmul.bf16.gmra.mxu0 %v456
  %v1034 = vpop.f32.mrf.mxu0
  %v1035 = vadd.f32 %v946, %v1034
  %v1036 = vpop.f32.mrf.mxu0
  %v1037 = vadd.f32 %v948, %v1036
  %1038 = vmatmul.bf16.gmra.mxu0 %v458
  %v1039 = vpop.f32.mrf.mxu0
  %v1040 = vadd.f32 %v951, %v1039
  %v1041 = vpop.f32.mrf.mxu0
  %v1042 = vadd.f32 %v953, %v1041
  %1043 = vmatmul.bf16.gmra.mxu0 %v460
  %v1044 = vpop.f32.mrf.mxu0
  %v1045 = vadd.f32 %v956, %v1044
  %v1046 = vpop.f32.mrf.mxu0
  %v1047 = vadd.f32 %v958, %v1046
  %1048 = vmatmul.bf16.gmra.mxu0 %v462
  %v1049 = vpop.f32.mrf.mxu0
  %v1050 = vadd.f32 %v961, %v1049
  %v1051 = vpop.f32.mrf.mxu0
  %v1052 = vadd.f32 %v963, %v1051
  %1053 = vmatmul.bf16.gmra.mxu0 %v464
  %v1054 = vpop.f32.mrf.mxu0
  %v1055 = vadd.f32 %v966, %v1054
  %v1056 = vpop.f32.mrf.mxu0
  %v1057 = vadd.f32 %v968, %v1056
  %1058 = vmatmul.bf16.gmra.mxu0 %v466
  %v1059 = vpop.f32.mrf.mxu0
  %v1060 = vadd.f32 %v971, %v1059
  %v1061 = vpop.f32.mrf.mxu0
  %v1062 = vadd.f32 %v973, %v1061
  %1063 = vmatmul.bf16.gmra.mxu0 %v468
  %v1064 = vpop.f32.mrf.mxu0
  %v1065 = vadd.f32 %v976, %v1064
  %v1066 = vpop.f32.mrf.mxu0
  %v1067 = vadd.f32 %v978, %v1066
  %1068 = vmatmul.bf16.gmra.mxu0 %v470
  %v1069 = vpop.f32.mrf.mxu0
  %v1070 = vadd.f32 %v981, %v1069
  %v1071 = vpop.f32.mrf.mxu0
  %v1072 = vadd.f32 %v983, %v1071
  %1073 = vmatmul.bf16.gmra.mxu0 %v472
  %v1074 = vpop.f32.mrf.mxu0
  %v1075 = vadd.f32 %v986, %v1074
  %v1076 = vpop.f32.mrf.mxu0
  %v1077 = vadd.f32 %v988, %v1076
  %1078 = vdwg.mxu0
  %v1079 = vmax.f32 %v1000, 0.0
  %v1080 = vmax.f32 %v1002, 0.0
  %v1081 = vmax.f32 %v1005, 0.0
  %v1082 = vmax.f32 %v1007, 0.0
  %v1083 = vmax.f32 %v1010, 0.0
  %v1084 = vmax.f32 %v1012, 0.0
  %v1085 = vmax.f32 %v1015, 0.0
  %v1086 = vmax.f32 %v1017, 0.0
  %v1087 = vmax.f32 %v1020, 0.0
  %v1088 = vmax.f32 %v1022, 0.0
  %v1089 = vmax.f32 %v1025, 0.0
  %v1090 = vmax.f32 %v1027, 0.0
  %v1091 = vmax.f32 %v1030, 0.0
  %v1092 = vmax.f32 %v1032, 0.0
  %v1093 = vmax.f32 %v1035, 0.0
  %v1094 = vmax.f32 %v1037, 0.0
  %v1095 = vmax.f32 %v1040, 0.0
  %v1096 = vmax.f32 %v1042, 0.0
  %v1097 = vmax.f32 %v1045, 0.0
  %v1098 = vmax.f32 %v1047, 0.0
  %v1099 = vmax.f32 %v1050, 0.0
  %v1100 = vmax.f32 %v1052, 0.0
  %v1101 = vmax.f32 %v1055, 0.0
  %v1102 = vmax.f32 %v1057, 0.0
  %v1103 = vmax.f32 %v1060, 0.0
  %v1104 = vmax.f32 %v1062, 0.0
  %v1105 = vmax.f32 %v1065, 0.0
  %v1106 = vmax.f32 %v1067, 0.0
  %v1107 = vmax.f32 %v1070, 0.0
  %v1108 = vmax.f32 %v1072, 0.0
  %v1109 = vmax.f32 %v1075, 0.0
  %v1110 = vmax.f32 %v1077, 0.0
  %v1111 = vpack.c.bf16 %v1080, %v1079
  %v1112 = vpack.c.bf16 %v1082, %v1081
  %v1113 = vpack.c.bf16 %v1084, %v1083
  %v1114 = vpack.c.bf16 %v1086, %v1085
  %v1115 = vpack.c.bf16 %v1088, %v1087
  %v1116 = vpack.c.bf16 %v1090, %v1089
  %v1117 = vpack.c.bf16 %v1092, %v1091
  %v1118 = vpack.c.bf16 %v1094, %v1093
  %v1119 = vpack.c.bf16 %v1096, %v1095
  %v1120 = vpack.c.bf16 %v1098, %v1097
  %v1121 = vpack.c.bf16 %v1100, %v1099
  %v1122 = vpack.c.bf16 %v1102, %v1101
  %v1123 = vpack.c.bf16 %v1104, %v1103
  %v1124 = vpack.c.bf16 %v1106, %v1105
  %v1125 = vpack.c.bf16 %v1108, %v1107
  %v1126 = vpack.c.bf16 %v1110, %v1109
  %s1127 = scalar_lea.vmem %s2, 128
  %v1128 = vld [vmem:[%s1127] sm:$0xf]
  %v1129 = vld [vmem:[%s1127 + $0x4] sm:$0xf]
  %v1130 = vld [vmem:[%s1127 + $0x8] sm:$0xf]
  %v1131 = vld [vmem:[%s1127 + $0xc] sm:$0xf]
  %v1132 = vld [vmem:[%s1127 + $0x10] sm:$0xf]
  %v1133 = vld [vmem:[%s1127 + $0x14] sm:$0xf]
  %v1134 = vld [vmem:[%s1127 + $0x18] sm:$0xf]
  %v1135 = vld [vmem:[%s1127 + $0x1c] sm:$0xf]
  %v1136 = vld [vmem:[%s1127 + $0x20] sm:$0xf]
  %v1137 = vld [vmem:[%s1127 + $0x24] sm:$0xf]
  %v1138 = vld [vmem:[%s1127 + $0x28] sm:$0xf]
  %v1139 = vld [vmem:[%s1127 + $0x2c] sm:$0xf]
  %v1140 = vld [vmem:[%s1127 + $0x30] sm:$0xf]
  %v1141 = vld [vmem:[%s1127 + $0x34] sm:$0xf]
  %v1142 = vld [vmem:[%s1127 + $0x38] sm:$0xf]
  %v1143 = vld [vmem:[%s1127 + $0x3c] sm:$0xf]
  %v1160 = vunpack.c.l.b16 %v1128
  %v1161 = vunpack.c.l.b16 %v1129
  %v1162 = vunpack.c.l.b16 %v1130
  %v1163 = vunpack.c.l.b16 %v1131
  %v1164 = vunpack.c.l.b16 %v1132
  %v1165 = vunpack.c.l.b16 %v1133
  %v1166 = vunpack.c.l.b16 %v1134
  %v1167 = vunpack.c.l.b16 %v1135
  %v1168 = vunpack.c.l.b16 %v1136
  %v1169 = vunpack.c.l.b16 %v1137
  %v1170 = vunpack.c.l.b16 %v1138
  %v1171 = vunpack.c.l.b16 %v1139
  %v1172 = vunpack.c.l.b16 %v1140
  %v1173 = vunpack.c.l.b16 %v1141
  %v1174 = vunpack.c.l.b16 %v1142
  %v1175 = vunpack.c.l.b16 %v1143
  %v1176 = vpack.c.b16 %v1161, %v1160
  %v1177 = vpack.c.b16 %v1163, %v1162
  %v1178 = vpack.c.b16 %v1165, %v1164
  %v1179 = vpack.c.b16 %v1167, %v1166
  %v1180 = vpack.c.b16 %v1169, %v1168
  %v1181 = vpack.c.b16 %v1171, %v1170
  %v1182 = vpack.c.b16 %v1173, %v1172
  %v1183 = vpack.c.b16 %v1175, %v1174
  %1192 = vmatpush.bf16.msra.mxu0 %v1183
  %1193 = vmatpush.bf16.msra.mxu0 %v1182
  %1194 = vmatpush.bf16.msra.mxu0 %v1181
  %1195 = vmatpush.bf16.msra.mxu0 %v1180
  %1196 = vmatpush.bf16.msra.mxu0 %v1179
  %1197 = vmatpush.bf16.msra.mxu0 %v1178
  %1198 = vmatpush.bf16.msra.mxu0 %v1177
  %1199 = vmatpush.bf16.msra.mxu0 %v1176
  %1200 = vmatmul.bf16.gmra.mxu0 %v1111
  %v1201 = vpop.f32.mrf.mxu0
  %v1202 = vadd.f32 0.0, %v1201
  %v1203 = vpop.f32.mrf.mxu0
  %v1204 = vadd.f32 0.0, %v1203
  %1205 = vmatmul.bf16.gmra.mxu0 %v1112
  %v1206 = vpop.f32.mrf.mxu0
  %v1207 = vadd.f32 0.0, %v1206
  %v1208 = vpop.f32.mrf.mxu0
  %v1209 = vadd.f32 0.0, %v1208
  %1210 = vmatmul.bf16.gmra.mxu0 %v1113
  %v1211 = vpop.f32.mrf.mxu0
  %v1212 = vadd.f32 0.0, %v1211
  %v1213 = vpop.f32.mrf.mxu0
  %v1214 = vadd.f32 0.0, %v1213
  %1215 = vmatmul.bf16.gmra.mxu0 %v1114
  %v1216 = vpop.f32.mrf.mxu0
  %v1217 = vadd.f32 0.0, %v1216
  %v1218 = vpop.f32.mrf.mxu0
  %v1219 = vadd.f32 0.0, %v1218
  %1220 = vmatmul.bf16.gmra.mxu0 %v1115
  %v1221 = vpop.f32.mrf.mxu0
  %v1222 = vadd.f32 0.0, %v1221
  %v1223 = vpop.f32.mrf.mxu0
  %v1224 = vadd.f32 0.0, %v1223
  %1225 = vmatmul.bf16.gmra.mxu0 %v1116
  %v1226 = vpop.f32.mrf.mxu0
  %v1227 = vadd.f32 0.0, %v1226
  %v1228 = vpop.f32.mrf.mxu0
  %v1229 = vadd.f32 0.0, %v1228
  %1230 = vmatmul.bf16.gmra.mxu0 %v1117
  %v1231 = vpop.f32.mrf.mxu0
  %v1232 = vadd.f32 0.0, %v1231
  %v1233 = vpop.f32.mrf.mxu0
  %v1234 = vadd.f32 0.0, %v1233
  %1235 = vmatmul.bf16.gmra.mxu0 %v1118
  %v1236 = vpop.f32.mrf.mxu0
  %v1237 = vadd.f32 0.0, %v1236
  %v1238 = vpop.f32.mrf.mxu0
  %v1239 = vadd.f32 0.0, %v1238
  %1240 = vmatmul.bf16.gmra.mxu0 %v1119
  %v1241 = vpop.f32.mrf.mxu0
  %v1242 = vadd.f32 0.0, %v1241
  %v1243 = vpop.f32.mrf.mxu0
  %v1244 = vadd.f32 0.0, %v1243
  %1245 = vmatmul.bf16.gmra.mxu0 %v1120
  %v1246 = vpop.f32.mrf.mxu0
  %v1247 = vadd.f32 0.0, %v1246
  %v1248 = vpop.f32.mrf.mxu0
  %v1249 = vadd.f32 0.0, %v1248
  %1250 = vmatmul.bf16.gmra.mxu0 %v1121
  %v1251 = vpop.f32.mrf.mxu0
  %v1252 = vadd.f32 0.0, %v1251
  %v1253 = vpop.f32.mrf.mxu0
  %v1254 = vadd.f32 0.0, %v1253
  %1255 = vmatmul.bf16.gmra.mxu0 %v1122
  %v1256 = vpop.f32.mrf.mxu0
  %v1257 = vadd.f32 0.0, %v1256
  %v1258 = vpop.f32.mrf.mxu0
  %v1259 = vadd.f32 0.0, %v1258
  %1260 = vmatmul.bf16.gmra.mxu0 %v1123
  %v1261 = vpop.f32.mrf.mxu0
  %v1262 = vadd.f32 0.0, %v1261
  %v1263 = vpop.f32.mrf.mxu0
  %v1264 = vadd.f32 0.0, %v1263
  %1265 = vmatmul.bf16.gmra.mxu0 %v1124
  %v1266 = vpop.f32.mrf.mxu0
  %v1267 = vadd.f32 0.0, %v1266
  %v1268 = vpop.f32.mrf.mxu0
  %v1269 = vadd.f32 0.0, %v1268
  %1270 = vmatmul.bf16.gmra.mxu0 %v1125
  %v1271 = vpop.f32.mrf.mxu0
  %v1272 = vadd.f32 0.0, %v1271
  %v1273 = vpop.f32.mrf.mxu0
  %v1274 = vadd.f32 0.0, %v1273
  %1275 = vmatmul.bf16.gmra.mxu0 %v1126
  %v1276 = vpop.f32.mrf.mxu0
  %v1277 = vadd.f32 0.0, %v1276
  %v1278 = vpop.f32.mrf.mxu0
  %v1279 = vadd.f32 0.0, %v1278
  %1280 = vdwg.mxu0
  %v1281 = vpack.c.bf16 %v1204, %v1202
  %v1282 = vpack.c.bf16 %v1209, %v1207
  %v1283 = vpack.c.bf16 %v1214, %v1212
  %v1284 = vpack.c.bf16 %v1219, %v1217
  %v1285 = vpack.c.bf16 %v1224, %v1222
  %v1286 = vpack.c.bf16 %v1229, %v1227
  %v1287 = vpack.c.bf16 %v1234, %v1232
  %v1288 = vpack.c.bf16 %v1239, %v1237
  %v1289 = vpack.c.bf16 %v1244, %v1242
  %v1290 = vpack.c.bf16 %v1249, %v1247
  %v1291 = vpack.c.bf16 %v1254, %v1252
  %v1292 = vpack.c.bf16 %v1259, %v1257
  %v1293 = vpack.c.bf16 %v1264, %v1262
  %v1294 = vpack.c.bf16 %v1269, %v1267
  %v1295 = vpack.c.bf16 %v1274, %v1272
  %v1296 = vpack.c.bf16 %v1279, %v1277
  %1297 = vmatpush.bf16.msra.mxu0 %v1288
  %1298 = vmatpush.bf16.msra.mxu0 %v1287
  %1299 = vmatpush.bf16.msra.mxu0 %v1286
  %1300 = vmatpush.bf16.msra.mxu0 %v1285
  %1301 = vmatpush.bf16.msra.mxu0 %v1284
  %1302 = vmatpush.bf16.msra.mxu0 %v1283
  %1303 = vmatpush.bf16.msra.mxu0 %v1282
  %1304 = vmatpush.bf16.msra.mxu0 %v1281
  %1305 = vmatmul.bf16.gmra.mxu0 %v441
  %v1306 = vpop.f32.mrf.mxu0
  %v1307 = vadd.f32 0.0, %v1306
  %v1308 = vpop.f32.mrf.mxu0
  %v1309 = vadd.f32 0.0, %v1308
  %1310 = vmatmul.bf16.gmra.mxu0 %v443
  %v1311 = vpop.f32.mrf.mxu0
  %v1312 = vadd.f32 0.0, %v1311
  %v1313 = vpop.f32.mrf.mxu0
  %v1314 = vadd.f32 0.0, %v1313
  %1315 = vmatmul.bf16.gmra.mxu0 %v445
  %v1316 = vpop.f32.mrf.mxu0
  %v1317 = vadd.f32 0.0, %v1316
  %v1318 = vpop.f32.mrf.mxu0
  %v1319 = vadd.f32 0.0, %v1318
  %1320 = vmatmul.bf16.gmra.mxu0 %v447
  %v1321 = vpop.f32.mrf.mxu0
  %v1322 = vadd.f32 0.0, %v1321
  %v1323 = vpop.f32.mrf.mxu0
  %v1324 = vadd.f32 0.0, %v1323
  %1325 = vmatmul.bf16.gmra.mxu0 %v449
  %v1326 = vpop.f32.mrf.mxu0
  %v1327 = vadd.f32 0.0, %v1326
  %v1328 = vpop.f32.mrf.mxu0
  %v1329 = vadd.f32 0.0, %v1328
  %1330 = vmatmul.bf16.gmra.mxu0 %v451
  %v1331 = vpop.f32.mrf.mxu0
  %v1332 = vadd.f32 0.0, %v1331
  %v1333 = vpop.f32.mrf.mxu0
  %v1334 = vadd.f32 0.0, %v1333
  %1335 = vmatmul.bf16.gmra.mxu0 %v453
  %v1336 = vpop.f32.mrf.mxu0
  %v1337 = vadd.f32 0.0, %v1336
  %v1338 = vpop.f32.mrf.mxu0
  %v1339 = vadd.f32 0.0, %v1338
  %1340 = vmatmul.bf16.gmra.mxu0 %v455
  %v1341 = vpop.f32.mrf.mxu0
  %v1342 = vadd.f32 0.0, %v1341
  %v1343 = vpop.f32.mrf.mxu0
  %v1344 = vadd.f32 0.0, %v1343
  %1345 = vmatmul.bf16.gmra.mxu0 %v457
  %v1346 = vpop.f32.mrf.mxu0
  %v1347 = vadd.f32 0.0, %v1346
  %v1348 = vpop.f32.mrf.mxu0
  %v1349 = vadd.f32 0.0, %v1348
  %1350 = vmatmul.bf16.gmra.mxu0 %v459
  %v1351 = vpop.f32.mrf.mxu0
  %v1352 = vadd.f32 0.0, %v1351
  %v1353 = vpop.f32.mrf.mxu0
  %v1354 = vadd.f32 0.0, %v1353
  %1355 = vmatmul.bf16.gmra.mxu0 %v461
  %v1356 = vpop.f32.mrf.mxu0
  %v1357 = vadd.f32 0.0, %v1356
  %v1358 = vpop.f32.mrf.mxu0
  %v1359 = vadd.f32 0.0, %v1358
  %1360 = vmatmul.bf16.gmra.mxu0 %v463
  %v1361 = vpop.f32.mrf.mxu0
  %v1362 = vadd.f32 0.0, %v1361
  %v1363 = vpop.f32.mrf.mxu0
  %v1364 = vadd.f32 0.0, %v1363
  %1365 = vmatmul.bf16.gmra.mxu0 %v465
  %v1366 = vpop.f32.mrf.mxu0
  %v1367 = vadd.f32 0.0, %v1366
  %v1368 = vpop.f32.mrf.mxu0
  %v1369 = vadd.f32 0.0, %v1368
  %1370 = vmatmul.bf16.gmra.mxu0 %v467
  %v1371 = vpop.f32.mrf.mxu0
  %v1372 = vadd.f32 0.0, %v1371
  %v1373 = vpop.f32.mrf.mxu0
  %v1374 = vadd.f32 0.0, %v1373
  %1375 = vmatmul.bf16.gmra.mxu0 %v469
  %v1376 = vpop.f32.mrf.mxu0
  %v1377 = vadd.f32 0.0, %v1376
  %v1378 = vpop.f32.mrf.mxu0
  %v1379 = vadd.f32 0.0, %v1378
  %1380 = vmatmul.bf16.gmra.mxu0 %v471
  %v1381 = vpop.f32.mrf.mxu0
  %v1382 = vadd.f32 0.0, %v1381
  %v1383 = vpop.f32.mrf.mxu0
  %v1384 = vadd.f32 0.0, %v1383
  %1385 = vdwg.mxu0
  %1386 = vmatpush.bf16.msra.mxu0 %v1296
  %1387 = vmatpush.bf16.msra.mxu0 %v1295
  %1388 = vmatpush.bf16.msra.mxu0 %v1294
  %1389 = vmatpush.bf16.msra.mxu0 %v1293
  %1390 = vmatpush.bf16.msra.mxu0 %v1292
  %1391 = vmatpush.bf16.msra.mxu0 %v1291
  %1392 = vmatpush.bf16.msra.mxu0 %v1290
  %1393 = vmatpush.bf16.msra.mxu0 %v1289
  %1394 = vmatmul.bf16.gmra.mxu0 %v442
  %v1395 = vpop.f32.mrf.mxu0
  %v1396 = vadd.f32 %v1307, %v1395
  %v1397 = vpop.f32.mrf.mxu0
  %v1398 = vadd.f32 %v1309, %v1397
  %1399 = vmatmul.bf16.gmra.mxu0 %v444
  %v1400 = vpop.f32.mrf.mxu0
  %v1401 = vadd.f32 %v1312, %v1400
  %v1402 = vpop.f32.mrf.mxu0
  %v1403 = vadd.f32 %v1314, %v1402
  %1404 = vmatmul.bf16.gmra.mxu0 %v446
  %v1405 = vpop.f32.mrf.mxu0
  %v1406 = vadd.f32 %v1317, %v1405
  %v1407 = vpop.f32.mrf.mxu0
  %v1408 = vadd.f32 %v1319, %v1407
  %1409 = vmatmul.bf16.gmra.mxu0 %v448
  %v1410 = vpop.f32.mrf.mxu0
  %v1411 = vadd.f32 %v1322, %v1410
  %v1412 = vpop.f32.mrf.mxu0
  %v1413 = vadd.f32 %v1324, %v1412
  %1414 = vmatmul.bf16.gmra.mxu0 %v450
  %v1415 = vpop.f32.mrf.mxu0
  %v1416 = vadd.f32 %v1327, %v1415
  %v1417 = vpop.f32.mrf.mxu0
  %v1418 = vadd.f32 %v1329, %v1417
  %1419 = vmatmul.bf16.gmra.mxu0 %v452
  %v1420 = vpop.f32.mrf.mxu0
  %v1421 = vadd.f32 %v1332, %v1420
  %v1422 = vpop.f32.mrf.mxu0
  %v1423 = vadd.f32 %v1334, %v1422
  %1424 = vmatmul.bf16.gmra.mxu0 %v454
  %v1425 = vpop.f32.mrf.mxu0
  %v1426 = vadd.f32 %v1337, %v1425
  %v1427 = vpop.f32.mrf.mxu0
  %v1428 = vadd.f32 %v1339, %v1427
  %1429 = vmatmul.bf16.gmra.mxu0 %v456
  %v1430 = vpop.f32.mrf.mxu0
  %v1431 = vadd.f32 %v1342, %v1430
  %v1432 = vpop.f32.mrf.mxu0
  %v1433 = vadd.f32 %v1344, %v1432
  %1434 = vmatmul.bf16.gmra.mxu0 %v458
  %v1435 = vpop.f32.mrf.mxu0
  %v1436 = vadd.f32 %v1347, %v1435
  %v1437 = vpop.f32.mrf.mxu0
  %v1438 = vadd.f32 %v1349, %v1437
  %1439 = vmatmul.bf16.gmra.mxu0 %v460
  %v1440 = vpop.f32.mrf.mxu0
  %v1441 = vadd.f32 %v1352, %v1440
  %v1442 = vpop.f32.mrf.mxu0
  %v1443 = vadd.f32 %v1354, %v1442
  %1444 = vmatmul.bf16.gmra.mxu0 %v462
  %v1445 = vpop.f32.mrf.mxu0
  %v1446 = vadd.f32 %v1357, %v1445
  %v1447 = vpop.f32.mrf.mxu0
  %v1448 = vadd.f32 %v1359, %v1447
  %1449 = vmatmul.bf16.gmra.mxu0 %v464
  %v1450 = vpop.f32.mrf.mxu0
  %v1451 = vadd.f32 %v1362, %v1450
  %v1452 = vpop.f32.mrf.mxu0
  %v1453 = vadd.f32 %v1364, %v1452
  %1454 = vmatmul.bf16.gmra.mxu0 %v466
  %v1455 = vpop.f32.mrf.mxu0
  %v1456 = vadd.f32 %v1367, %v1455
  %v1457 = vpop.f32.mrf.mxu0
  %v1458 = vadd.f32 %v1369, %v1457
  %1459 = vmatmul.bf16.gmra.mxu0 %v468
  %v1460 = vpop.f32.mrf.mxu0
  %v1461 = vadd.f32 %v1372, %v1460
  %v1462 = vpop.f32.mrf.mxu0
  %v1463 = vadd.f32 %v1374, %v1462
  %1464 = vmatmul.bf16.gmra.mxu0 %v470
  %v1465 = vpop.f32.mrf.mxu0
  %v1466 = vadd.f32 %v1377, %v1465
  %v1467 = vpop.f32.mrf.mxu0
  %v1468 = vadd.f32 %v1379, %v1467
  %1469 = vmatmul.bf16.gmra.mxu0 %v472
  %v1470 = vpop.f32.mrf.mxu0
  %v1471 = vadd.f32 %v1382, %v1470
  %v1472 = vpop.f32.mrf.mxu0
  %v1473 = vadd.f32 %v1384, %v1472
  %1474 = vdwg.mxu0
  %v1475 = vmax.f32 %v1396, 0.0
  %v1476 = vmax.f32 %v1398, 0.0
  %v1477 = vmax.f32 %v1401, 0.0
  %v1478 = vmax.f32 %v1403, 0.0
  %v1479 = vmax.f32 %v1406, 0.0
  %v1480 = vmax.f32 %v1408, 0.0
  %v1481 = vmax.f32 %v1411, 0.0
  %v1482 = vmax.f32 %v1413, 0.0
  %v1483 = vmax.f32 %v1416, 0.0
  %v1484 = vmax.f32 %v1418, 0.0
  %v1485 = vmax.f32 %v1421, 0.0
  %v1486 = vmax.f32 %v1423, 0.0
  %v1487 = vmax.f32 %v1426, 0.0
  %v1488 = vmax.f32 %v1428, 0.0
  %v1489 = vmax.f32 %v1431, 0.0
  %v1490 = vmax.f32 %v1433, 0.0
  %v1491 = vmax.f32 %v1436, 0.0
  %v1492 = vmax.f32 %v1438, 0.0
  %v1493 = vmax.f32 %v1441, 0.0
  %v1494 = vmax.f32 %v1443, 0.0
  %v1495 = vmax.f32 %v1446, 0.0
  %v1496 = vmax.f32 %v1448, 0.0
  %v1497 = vmax.f32 %v1451, 0.0
  %v1498 = vmax.f32 %v1453, 0.0
  %v1499 = vmax.f32 %v1456, 0.0
  %v1500 = vmax.f32 %v1458, 0.0
  %v1501 = vmax.f32 %v1461, 0.0
  %v1502 = vmax.f32 %v1463, 0.0
  %v1503 = vmax.f32 %v1466, 0.0
  %v1504 = vmax.f32 %v1468, 0.0
  %v1505 = vmax.f32 %v1471, 0.0
  %v1506 = vmax.f32 %v1473, 0.0
  %v1507 = vpack.c.bf16 %v1476, %v1475
  %v1508 = vpack.c.bf16 %v1478, %v1477
  %v1509 = vpack.c.bf16 %v1480, %v1479
  %v1510 = vpack.c.bf16 %v1482, %v1481
  %v1511 = vpack.c.bf16 %v1484, %v1483
  %v1512 = vpack.c.bf16 %v1486, %v1485
  %v1513 = vpack.c.bf16 %v1488, %v1487
  %v1514 = vpack.c.bf16 %v1490, %v1489
  %v1515 = vpack.c.bf16 %v1492, %v1491
  %v1516 = vpack.c.bf16 %v1494, %v1493
  %v1517 = vpack.c.bf16 %v1496, %v1495
  %v1518 = vpack.c.bf16 %v1498, %v1497
  %v1519 = vpack.c.bf16 %v1500, %v1499
  %v1520 = vpack.c.bf16 %v1502, %v1501
  %v1521 = vpack.c.bf16 %v1504, %v1503
  %v1522 = vpack.c.bf16 %v1506, %v1505
  %s1523 = scalar_lea.vmem %s2, 192
  %v1524 = vld [vmem:[%s1523] sm:$0xf]
  %v1525 = vld [vmem:[%s1523 + $0x4] sm:$0xf]
  %v1526 = vld [vmem:[%s1523 + $0x8] sm:$0xf]
  %v1527 = vld [vmem:[%s1523 + $0xc] sm:$0xf]
  %v1528 = vld [vmem:[%s1523 + $0x10] sm:$0xf]
  %v1529 = vld [vmem:[%s1523 + $0x14] sm:$0xf]
  %v1530 = vld [vmem:[%s1523 + $0x18] sm:$0xf]
  %v1531 = vld [vmem:[%s1523 + $0x1c] sm:$0xf]
  %v1532 = vld [vmem:[%s1523 + $0x20] sm:$0xf]
  %v1533 = vld [vmem:[%s1523 + $0x24] sm:$0xf]
  %v1534 = vld [vmem:[%s1523 + $0x28] sm:$0xf]
  %v1535 = vld [vmem:[%s1523 + $0x2c] sm:$0xf]
  %v1536 = vld [vmem:[%s1523 + $0x30] sm:$0xf]
  %v1537 = vld [vmem:[%s1523 + $0x34] sm:$0xf]
  %v1538 = vld [vmem:[%s1523 + $0x38] sm:$0xf]
  %v1539 = vld [vmem:[%s1523 + $0x3c] sm:$0xf]
  %v1556 = vunpack.c.l.b16 %v1524
  %v1557 = vunpack.c.l.b16 %v1525
  %v1558 = vunpack.c.l.b16 %v1526
  %v1559 = vunpack.c.l.b16 %v1527
  %v1560 = vunpack.c.l.b16 %v1528
  %v1561 = vunpack.c.l.b16 %v1529
  %v1562 = vunpack.c.l.b16 %v1530
  %v1563 = vunpack.c.l.b16 %v1531
  %v1564 = vunpack.c.l.b16 %v1532
  %v1565 = vunpack.c.l.b16 %v1533
  %v1566 = vunpack.c.l.b16 %v1534
  %v1567 = vunpack.c.l.b16 %v1535
  %v1568 = vunpack.c.l.b16 %v1536
  %v1569 = vunpack.c.l.b16 %v1537
  %v1570 = vunpack.c.l.b16 %v1538
  %v1571 = vunpack.c.l.b16 %v1539
  %v1572 = vpack.c.b16 %v1557, %v1556
  %v1573 = vpack.c.b16 %v1559, %v1558
  %v1574 = vpack.c.b16 %v1561, %v1560
  %v1575 = vpack.c.b16 %v1563, %v1562
  %v1576 = vpack.c.b16 %v1565, %v1564
  %v1577 = vpack.c.b16 %v1567, %v1566
  %v1578 = vpack.c.b16 %v1569, %v1568
  %v1579 = vpack.c.b16 %v1571, %v1570
  %1588 = vmatpush.bf16.msra.mxu0 %v1579
  %1589 = vmatpush.bf16.msra.mxu0 %v1578
  %1590 = vmatpush.bf16.msra.mxu0 %v1577
  %1591 = vmatpush.bf16.msra.mxu0 %v1576
  %1592 = vmatpush.bf16.msra.mxu0 %v1575
  %1593 = vmatpush.bf16.msra.mxu0 %v1574
  %1594 = vmatpush.bf16.msra.mxu0 %v1573
  %1595 = vmatpush.bf16.msra.mxu0 %v1572
  %1596 = vmatmul.bf16.gmra.mxu0 %v1507
  %v1597 = vpop.f32.mrf.mxu0
  %v1598 = vadd.f32 0.0, %v1597
  %v1599 = vpop.f32.mrf.mxu0
  %v1600 = vadd.f32 0.0, %v1599
  %1601 = vmatmul.bf16.gmra.mxu0 %v1508
  %v1602 = vpop.f32.mrf.mxu0
  %v1603 = vadd.f32 0.0, %v1602
  %v1604 = vpop.f32.mrf.mxu0
  %v1605 = vadd.f32 0.0, %v1604
  %1606 = vmatmul.bf16.gmra.mxu0 %v1509
  %v1607 = vpop.f32.mrf.mxu0
  %v1608 = vadd.f32 0.0, %v1607
  %v1609 = vpop.f32.mrf.mxu0
  %v1610 = vadd.f32 0.0, %v1609
  %1611 = vmatmul.bf16.gmra.mxu0 %v1510
  %v1612 = vpop.f32.mrf.mxu0
  %v1613 = vadd.f32 0.0, %v1612
  %v1614 = vpop.f32.mrf.mxu0
  %v1615 = vadd.f32 0.0, %v1614
  %1616 = vmatmul.bf16.gmra.mxu0 %v1511
  %v1617 = vpop.f32.mrf.mxu0
  %v1618 = vadd.f32 0.0, %v1617
  %v1619 = vpop.f32.mrf.mxu0
  %v1620 = vadd.f32 0.0, %v1619
  %1621 = vmatmul.bf16.gmra.mxu0 %v1512
  %v1622 = vpop.f32.mrf.mxu0
  %v1623 = vadd.f32 0.0, %v1622
  %v1624 = vpop.f32.mrf.mxu0
  %v1625 = vadd.f32 0.0, %v1624
  %1626 = vmatmul.bf16.gmra.mxu0 %v1513
  %v1627 = vpop.f32.mrf.mxu0
  %v1628 = vadd.f32 0.0, %v1627
  %v1629 = vpop.f32.mrf.mxu0
  %v1630 = vadd.f32 0.0, %v1629
  %1631 = vmatmul.bf16.gmra.mxu0 %v1514
  %v1632 = vpop.f32.mrf.mxu0
  %v1633 = vadd.f32 0.0, %v1632
  %v1634 = vpop.f32.mrf.mxu0
  %v1635 = vadd.f32 0.0, %v1634
  %1636 = vmatmul.bf16.gmra.mxu0 %v1515
  %v1637 = vpop.f32.mrf.mxu0
  %v1638 = vadd.f32 0.0, %v1637
  %v1639 = vpop.f32.mrf.mxu0
  %v1640 = vadd.f32 0.0, %v1639
  %1641 = vmatmul.bf16.gmra.mxu0 %v1516
  %v1642 = vpop.f32.mrf.mxu0
  %v1643 = vadd.f32 0.0, %v1642
  %v1644 = vpop.f32.mrf.mxu0
  %v1645 = vadd.f32 0.0, %v1644
  %1646 = vmatmul.bf16.gmra.mxu0 %v1517
  %v1647 = vpop.f32.mrf.mxu0
  %v1648 = vadd.f32 0.0, %v1647
  %v1649 = vpop.f32.mrf.mxu0
  %v1650 = vadd.f32 0.0, %v1649
  %1651 = vmatmul.bf16.gmra.mxu0 %v1518
  %v1652 = vpop.f32.mrf.mxu0
  %v1653 = vadd.f32 0.0, %v1652
  %v1654 = vpop.f32.mrf.mxu0
  %v1655 = vadd.f32 0.0, %v1654
  %1656 = vmatmul.bf16.gmra.mxu0 %v1519
  %v1657 = vpop.f32.mrf.mxu0
  %v1658 = vadd.f32 0.0, %v1657
  %v1659 = vpop.f32.mrf.mxu0
  %v1660 = vadd.f32 0.0, %v1659
  %1661 = vmatmul.bf16.gmra.mxu0 %v1520
  %v1662 = vpop.f32.mrf.mxu0
  %v1663 = vadd.f32 0.0, %v1662
  %v1664 = vpop.f32.mrf.mxu0
  %v1665 = vadd.f32 0.0, %v1664
  %1666 = vmatmul.bf16.gmra.mxu0 %v1521
  %v1667 = vpop.f32.mrf.mxu0
  %v1668 = vadd.f32 0.0, %v1667
  %v1669 = vpop.f32.mrf.mxu0
  %v1670 = vadd.f32 0.0, %v1669
  %1671 = vmatmul.bf16.gmra.mxu0 %v1522
  %v1672 = vpop.f32.mrf.mxu0
  %v1673 = vadd.f32 0.0, %v1672
  %v1674 = vpop.f32.mrf.mxu0
  %v1675 = vadd.f32 0.0, %v1674
  %1676 = vdwg.mxu0
  %v1677 = vpack.c.bf16 %v1600, %v1598
  %v1678 = vpack.c.bf16 %v1605, %v1603
  %v1679 = vpack.c.bf16 %v1610, %v1608
  %v1680 = vpack.c.bf16 %v1615, %v1613
  %v1681 = vpack.c.bf16 %v1620, %v1618
  %v1682 = vpack.c.bf16 %v1625, %v1623
  %v1683 = vpack.c.bf16 %v1630, %v1628
  %v1684 = vpack.c.bf16 %v1635, %v1633
  %v1685 = vpack.c.bf16 %v1640, %v1638
  %v1686 = vpack.c.bf16 %v1645, %v1643
  %v1687 = vpack.c.bf16 %v1650, %v1648
  %v1688 = vpack.c.bf16 %v1655, %v1653
  %v1689 = vpack.c.bf16 %v1660, %v1658
  %v1690 = vpack.c.bf16 %v1665, %v1663
  %v1691 = vpack.c.bf16 %v1670, %v1668
  %v1692 = vpack.c.bf16 %v1675, %v1673
  %1693 = vmatpush.bf16.msra.mxu0 %v1684
  %1694 = vmatpush.bf16.msra.mxu0 %v1683
  %1695 = vmatpush.bf16.msra.mxu0 %v1682
  %1696 = vmatpush.bf16.msra.mxu0 %v1681
  %1697 = vmatpush.bf16.msra.mxu0 %v1680
  %1698 = vmatpush.bf16.msra.mxu0 %v1679
  %1699 = vmatpush.bf16.msra.mxu0 %v1678
  %1700 = vmatpush.bf16.msra.mxu0 %v1677
  %1701 = vmatmul.bf16.gmra.mxu0 %v441
  %v1702 = vpop.f32.mrf.mxu0
  %v1703 = vadd.f32 0.0, %v1702
  %v1704 = vpop.f32.mrf.mxu0
  %v1705 = vadd.f32 0.0, %v1704
  %1706 = vmatmul.bf16.gmra.mxu0 %v443
  %v1707 = vpop.f32.mrf.mxu0
  %v1708 = vadd.f32 0.0, %v1707
  %v1709 = vpop.f32.mrf.mxu0
  %v1710 = vadd.f32 0.0, %v1709
  %1711 = vmatmul.bf16.gmra.mxu0 %v445
  %v1712 = vpop.f32.mrf.mxu0
  %v1713 = vadd.f32 0.0, %v1712
  %v1714 = vpop.f32.mrf.mxu0
  %v1715 = vadd.f32 0.0, %v1714
  %1716 = vmatmul.bf16.gmra.mxu0 %v447
  %v1717 = vpop.f32.mrf.mxu0
  %v1718 = vadd.f32 0.0, %v1717
  %v1719 = vpop.f32.mrf.mxu0
  %v1720 = vadd.f32 0.0, %v1719
  %1721 = vmatmul.bf16.gmra.mxu0 %v449
  %v1722 = vpop.f32.mrf.mxu0
  %v1723 = vadd.f32 0.0, %v1722
  %v1724 = vpop.f32.mrf.mxu0
  %v1725 = vadd.f32 0.0, %v1724
  %1726 = vmatmul.bf16.gmra.mxu0 %v451
  %v1727 = vpop.f32.mrf.mxu0
  %v1728 = vadd.f32 0.0, %v1727
  %v1729 = vpop.f32.mrf.mxu0
  %v1730 = vadd.f32 0.0, %v1729
  %1731 = vmatmul.bf16.gmra.mxu0 %v453
  %v1732 = vpop.f32.mrf.mxu0
  %v1733 = vadd.f32 0.0, %v1732
  %v1734 = vpop.f32.mrf.mxu0
  %v1735 = vadd.f32 0.0, %v1734
  %1736 = vmatmul.bf16.gmra.mxu0 %v455
  %v1737 = vpop.f32.mrf.mxu0
  %v1738 = vadd.f32 0.0, %v1737
  %v1739 = vpop.f32.mrf.mxu0
  %v1740 = vadd.f32 0.0, %v1739
  %1741 = vmatmul.bf16.gmra.mxu0 %v457
  %v1742 = vpop.f32.mrf.mxu0
  %v1743 = vadd.f32 0.0, %v1742
  %v1744 = vpop.f32.mrf.mxu0
  %v1745 = vadd.f32 0.0, %v1744
  %1746 = vmatmul.bf16.gmra.mxu0 %v459
  %v1747 = vpop.f32.mrf.mxu0
  %v1748 = vadd.f32 0.0, %v1747
  %v1749 = vpop.f32.mrf.mxu0
  %v1750 = vadd.f32 0.0, %v1749
  %1751 = vmatmul.bf16.gmra.mxu0 %v461
  %v1752 = vpop.f32.mrf.mxu0
  %v1753 = vadd.f32 0.0, %v1752
  %v1754 = vpop.f32.mrf.mxu0
  %v1755 = vadd.f32 0.0, %v1754
  %1756 = vmatmul.bf16.gmra.mxu0 %v463
  %v1757 = vpop.f32.mrf.mxu0
  %v1758 = vadd.f32 0.0, %v1757
  %v1759 = vpop.f32.mrf.mxu0
  %v1760 = vadd.f32 0.0, %v1759
  %1761 = vmatmul.bf16.gmra.mxu0 %v465
  %v1762 = vpop.f32.mrf.mxu0
  %v1763 = vadd.f32 0.0, %v1762
  %v1764 = vpop.f32.mrf.mxu0
  %v1765 = vadd.f32 0.0, %v1764
  %1766 = vmatmul.bf16.gmra.mxu0 %v467
  %v1767 = vpop.f32.mrf.mxu0
  %v1768 = vadd.f32 0.0, %v1767
  %v1769 = vpop.f32.mrf.mxu0
  %v1770 = vadd.f32 0.0, %v1769
  %1771 = vmatmul.bf16.gmra.mxu0 %v469
  %v1772 = vpop.f32.mrf.mxu0
  %v1773 = vadd.f32 0.0, %v1772
  %v1774 = vpop.f32.mrf.mxu0
  %v1775 = vadd.f32 0.0, %v1774
  %1776 = vmatmul.bf16.gmra.mxu0 %v471
  %v1777 = vpop.f32.mrf.mxu0
  %v1778 = vadd.f32 0.0, %v1777
  %v1779 = vpop.f32.mrf.mxu0
  %v1780 = vadd.f32 0.0, %v1779
  %1781 = vdwg.mxu0
  %1782 = vmatpush.bf16.msra.mxu0 %v1692
  %1783 = vmatpush.bf16.msra.mxu0 %v1691
  %1784 = vmatpush.bf16.msra.mxu0 %v1690
  %1785 = vmatpush.bf16.msra.mxu0 %v1689
  %1786 = vmatpush.bf16.msra.mxu0 %v1688
  %1787 = vmatpush.bf16.msra.mxu0 %v1687
  %1788 = vmatpush.bf16.msra.mxu0 %v1686
  %1789 = vmatpush.bf16.msra.mxu0 %v1685
  %1790 = vmatmul.bf16.gmra.mxu0 %v442
  %v1791 = vpop.f32.mrf.mxu0
  %v1792 = vadd.f32 %v1703, %v1791
  %v1793 = vpop.f32.mrf.mxu0
  %v1794 = vadd.f32 %v1705, %v1793
  %1795 = vmatmul.bf16.gmra.mxu0 %v444
  %v1796 = vpop.f32.mrf.mxu0
  %v1797 = vadd.f32 %v1708, %v1796
  %v1798 = vpop.f32.mrf.mxu0
  %v1799 = vadd.f32 %v1710, %v1798
  %1800 = vmatmul.bf16.gmra.mxu0 %v446
  %v1801 = vpop.f32.mrf.mxu0
  %v1802 = vadd.f32 %v1713, %v1801
  %v1803 = vpop.f32.mrf.mxu0
  %v1804 = vadd.f32 %v1715, %v1803
  %1805 = vmatmul.bf16.gmra.mxu0 %v448
  %v1806 = vpop.f32.mrf.mxu0
  %v1807 = vadd.f32 %v1718, %v1806
  %v1808 = vpop.f32.mrf.mxu0
  %v1809 = vadd.f32 %v1720, %v1808
  %1810 = vmatmul.bf16.gmra.mxu0 %v450
  %v1811 = vpop.f32.mrf.mxu0
  %v1812 = vadd.f32 %v1723, %v1811
  %v1813 = vpop.f32.mrf.mxu0
  %v1814 = vadd.f32 %v1725, %v1813
  %1815 = vmatmul.bf16.gmra.mxu0 %v452
  %v1816 = vpop.f32.mrf.mxu0
  %v1817 = vadd.f32 %v1728, %v1816
  %v1818 = vpop.f32.mrf.mxu0
  %v1819 = vadd.f32 %v1730, %v1818
  %1820 = vmatmul.bf16.gmra.mxu0 %v454
  %v1821 = vpop.f32.mrf.mxu0
  %v1822 = vadd.f32 %v1733, %v1821
  %v1823 = vpop.f32.mrf.mxu0
  %v1824 = vadd.f32 %v1735, %v1823
  %1825 = vmatmul.bf16.gmra.mxu0 %v456
  %v1826 = vpop.f32.mrf.mxu0
  %v1827 = vadd.f32 %v1738, %v1826
  %v1828 = vpop.f32.mrf.mxu0
  %v1829 = vadd.f32 %v1740, %v1828
  %1830 = vmatmul.bf16.gmra.mxu0 %v458
  %v1831 = vpop.f32.mrf.mxu0
  %v1832 = vadd.f32 %v1743, %v1831
  %v1833 = vpop.f32.mrf.mxu0
  %v1834 = vadd.f32 %v1745, %v1833
  %1835 = vmatmul.bf16.gmra.mxu0 %v460
  %v1836 = vpop.f32.mrf.mxu0
  %v1837 = vadd.f32 %v1748, %v1836
  %v1838 = vpop.f32.mrf.mxu0
  %v1839 = vadd.f32 %v1750, %v1838
  %1840 = vmatmul.bf16.gmra.mxu0 %v462
  %v1841 = vpop.f32.mrf.mxu0
  %v1842 = vadd.f32 %v1753, %v1841
  %v1843 = vpop.f32.mrf.mxu0
  %v1844 = vadd.f32 %v1755, %v1843
  %1845 = vmatmul.bf16.gmra.mxu0 %v464
  %v1846 = vpop.f32.mrf.mxu0
  %v1847 = vadd.f32 %v1758, %v1846
  %v1848 = vpop.f32.mrf.mxu0
  %v1849 = vadd.f32 %v1760, %v1848
  %1850 = vmatmul.bf16.gmra.mxu0 %v466
  %v1851 = vpop.f32.mrf.mxu0
  %v1852 = vadd.f32 %v1763, %v1851
  %v1853 = vpop.f32.mrf.mxu0
  %v1854 = vadd.f32 %v1765, %v1853
  %1855 = vmatmul.bf16.gmra.mxu0 %v468
  %v1856 = vpop.f32.mrf.mxu0
  %v1857 = vadd.f32 %v1768, %v1856
  %v1858 = vpop.f32.mrf.mxu0
  %v1859 = vadd.f32 %v1770, %v1858
  %1860 = vmatmul.bf16.gmra.mxu0 %v470
  %v1861 = vpop.f32.mrf.mxu0
  %v1862 = vadd.f32 %v1773, %v1861
  %v1863 = vpop.f32.mrf.mxu0
  %v1864 = vadd.f32 %v1775, %v1863
  %1865 = vmatmul.bf16.gmra.mxu0 %v472
  %v1866 = vpop.f32.mrf.mxu0
  %v1867 = vadd.f32 %v1778, %v1866
  %v1868 = vpop.f32.mrf.mxu0
  %v1869 = vadd.f32 %v1780, %v1868
  %1870 = vdwg.mxu0
  %1871 = vst [vmem:[%s3] sm:$0xff] %v1792
  %1872 = vst [vmem:[%s3 + $0x8] sm:$0xff] %v1794
  %1873 = vst [vmem:[%s3 + $0x10] sm:$0xff] %v1797
  %1874 = vst [vmem:[%s3 + $0x18] sm:$0xff] %v1799
  %1875 = vst [vmem:[%s3 + $0x20] sm:$0xff] %v1802
  %1876 = vst [vmem:[%s3 + $0x28] sm:$0xff] %v1804
  %1877 = vst [vmem:[%s3 + $0x30] sm:$0xff] %v1807
  %1878 = vst [vmem:[%s3 + $0x38] sm:$0xff] %v1809
  %1879 = vst [vmem:[%s3 + $0x40] sm:$0xff] %v1812
  %1880 = vst [vmem:[%s3 + $0x48] sm:$0xff] %v1814
  %1881 = vst [vmem:[%s3 + $0x50] sm:$0xff] %v1817
  %1882 = vst [vmem:[%s3 + $0x58] sm:$0xff] %v1819
  %1883 = vst [vmem:[%s3 + $0x60] sm:$0xff] %v1822
  %1884 = vst [vmem:[%s3 + $0x68] sm:$0xff] %v1824
  %1885 = vst [vmem:[%s3 + $0x70] sm:$0xff] %v1827
  %1886 = vst [vmem:[%s3 + $0x78] sm:$0xff] %v1829
  %1887 = vst [vmem:[%s3 + $0x80] sm:$0xff] %v1832
  %1888 = vst [vmem:[%s3 + $0x88] sm:$0xff] %v1834
  %1889 = vst [vmem:[%s3 + $0x90] sm:$0xff] %v1837
  %1890 = vst [vmem:[%s3 + $0x98] sm:$0xff] %v1839
  %1891 = vst [vmem:[%s3 + $0xa0] sm:$0xff] %v1842
  %1892 = vst [vmem:[%s3 + $0xa8] sm:$0xff] %v1844
  %1893 = vst [vmem:[%s3 + $0xb0] sm:$0xff] %v1847
  %1894 = vst [vmem:[%s3 + $0xb8] sm:$0xff] %v1849
  %1895 = vst [vmem:[%s3 + $0xc0] sm:$0xff] %v1852
  %1896 = vst [vmem:[%s3 + $0xc8] sm:$0xff] %v1854
  %1897 = vst [vmem:[%s3 + $0xd0] sm:$0xff] %v1857
  %1898 = vst [vmem:[%s3 + $0xd8] sm:$0xff] %v1859
  %1899 = vst [vmem:[%s3 + $0xe0] sm:$0xff] %v1862
  %1900 = vst [vmem:[%s3 + $0xe8] sm:$0xff] %v1864
  %1901 = vst [vmem:[%s3 + $0xf0] sm:$0xff] %v1867
  %1902 = vst [vmem:[%s3 + $0xf8] sm:$0xff] %v1869
  %v1903 = vpack.c.bf16 %v1794, %v1792
  %v1904 = vpack.c.bf16 %v1799, %v1797
  %v1905 = vpack.c.bf16 %v1804, %v1802
  %v1906 = vpack.c.bf16 %v1809, %v1807
  %v1907 = vpack.c.bf16 %v1814, %v1812
  %v1908 = vpack.c.bf16 %v1819, %v1817
  %v1909 = vpack.c.bf16 %v1824, %v1822
  %v1910 = vpack.c.bf16 %v1829, %v1827
  %v1911 = vpack.c.bf16 %v1834, %v1832
  %v1912 = vpack.c.bf16 %v1839, %v1837
  %v1913 = vpack.c.bf16 %v1844, %v1842
  %v1914 = vpack.c.bf16 %v1849, %v1847
  %v1915 = vpack.c.bf16 %v1854, %v1852
  %v1916 = vpack.c.bf16 %v1859, %v1857
  %v1917 = vpack.c.bf16 %v1864, %v1862
  %v1918 = vpack.c.bf16 %v1869, %v1867
  %s1919 = scalar_lea.vmem %s2, 256
  %v1920 = vld [vmem:[%s1919] sm:$0xf]
  %v1921 = vld [vmem:[%s1919 + $0x4] sm:$0xf]
  %v1922 = vld [vmem:[%s1919 + $0x8] sm:$0xf]
  %v1923 = vld [vmem:[%s1919 + $0xc] sm:$0xf]
  %v1924 = vld [vmem:[%s1919 + $0x10] sm:$0xf]
  %v1925 = vld [vmem:[%s1919 + $0x14] sm:$0xf]
  %v1926 = vld [vmem:[%s1919 + $0x18] sm:$0xf]
  %v1927 = vld [vmem:[%s1919 + $0x1c] sm:$0xf]
  %v1928 = vld [vmem:[%s1919 + $0x20] sm:$0xf]
  %v1929 = vld [vmem:[%s1919 + $0x24] sm:$0xf]
  %v1930 = vld [vmem:[%s1919 + $0x28] sm:$0xf]
  %v1931 = vld [vmem:[%s1919 + $0x2c] sm:$0xf]
  %v1932 = vld [vmem:[%s1919 + $0x30] sm:$0xf]
  %v1933 = vld [vmem:[%s1919 + $0x34] sm:$0xf]
  %v1934 = vld [vmem:[%s1919 + $0x38] sm:$0xf]
  %v1935 = vld [vmem:[%s1919 + $0x3c] sm:$0xf]
  %v1952 = vunpack.c.l.b16 %v1920
  %v1953 = vunpack.c.l.b16 %v1921
  %v1954 = vunpack.c.l.b16 %v1922
  %v1955 = vunpack.c.l.b16 %v1923
  %v1956 = vunpack.c.l.b16 %v1924
  %v1957 = vunpack.c.l.b16 %v1925
  %v1958 = vunpack.c.l.b16 %v1926
  %v1959 = vunpack.c.l.b16 %v1927
  %v1960 = vunpack.c.l.b16 %v1928
  %v1961 = vunpack.c.l.b16 %v1929
  %v1962 = vunpack.c.l.b16 %v1930
  %v1963 = vunpack.c.l.b16 %v1931
  %v1964 = vunpack.c.l.b16 %v1932
  %v1965 = vunpack.c.l.b16 %v1933
  %v1966 = vunpack.c.l.b16 %v1934
  %v1967 = vunpack.c.l.b16 %v1935
  %v1968 = vpack.c.b16 %v1953, %v1952
  %v1969 = vpack.c.b16 %v1955, %v1954
  %v1970 = vpack.c.b16 %v1957, %v1956
  %v1971 = vpack.c.b16 %v1959, %v1958
  %v1972 = vpack.c.b16 %v1961, %v1960
  %v1973 = vpack.c.b16 %v1963, %v1962
  %v1974 = vpack.c.b16 %v1965, %v1964
  %v1975 = vpack.c.b16 %v1967, %v1966
  %1984 = vmatpush.bf16.msra.mxu0 %v1975
  %1985 = vmatpush.bf16.msra.mxu0 %v1974
  %1986 = vmatpush.bf16.msra.mxu0 %v1973
  %1987 = vmatpush.bf16.msra.mxu0 %v1972
  %1988 = vmatpush.bf16.msra.mxu0 %v1971
  %1989 = vmatpush.bf16.msra.mxu0 %v1970
  %1990 = vmatpush.bf16.msra.mxu0 %v1969
  %1991 = vmatpush.bf16.msra.mxu0 %v1968
  %1992 = vmatmul.bf16.gmra.mxu0 %v1903
  %v1993 = vpop.f32.mrf.mxu0
  %v1994 = vadd.f32 0.0, %v1993
  %v1995 = vpop.f32.mrf.mxu0
  %v1996 = vadd.f32 0.0, %v1995
  %1997 = vmatmul.bf16.gmra.mxu0 %v1904
  %v1998 = vpop.f32.mrf.mxu0
  %v1999 = vadd.f32 0.0, %v1998
  %v2000 = vpop.f32.mrf.mxu0
  %v2001 = vadd.f32 0.0, %v2000
  %2002 = vmatmul.bf16.gmra.mxu0 %v1905
  %v2003 = vpop.f32.mrf.mxu0
  %v2004 = vadd.f32 0.0, %v2003
  %v2005 = vpop.f32.mrf.mxu0
  %v2006 = vadd.f32 0.0, %v2005
  %2007 = vmatmul.bf16.gmra.mxu0 %v1906
  %v2008 = vpop.f32.mrf.mxu0
  %v2009 = vadd.f32 0.0, %v2008
  %v2010 = vpop.f32.mrf.mxu0
  %v2011 = vadd.f32 0.0, %v2010
  %2012 = vmatmul.bf16.gmra.mxu0 %v1907
  %v2013 = vpop.f32.mrf.mxu0
  %v2014 = vadd.f32 0.0, %v2013
  %v2015 = vpop.f32.mrf.mxu0
  %v2016 = vadd.f32 0.0, %v2015
  %2017 = vmatmul.bf16.gmra.mxu0 %v1908
  %v2018 = vpop.f32.mrf.mxu0
  %v2019 = vadd.f32 0.0, %v2018
  %v2020 = vpop.f32.mrf.mxu0
  %v2021 = vadd.f32 0.0, %v2020
  %2022 = vmatmul.bf16.gmra.mxu0 %v1909
  %v2023 = vpop.f32.mrf.mxu0
  %v2024 = vadd.f32 0.0, %v2023
  %v2025 = vpop.f32.mrf.mxu0
  %v2026 = vadd.f32 0.0, %v2025
  %2027 = vmatmul.bf16.gmra.mxu0 %v1910
  %v2028 = vpop.f32.mrf.mxu0
  %v2029 = vadd.f32 0.0, %v2028
  %v2030 = vpop.f32.mrf.mxu0
  %v2031 = vadd.f32 0.0, %v2030
  %2032 = vmatmul.bf16.gmra.mxu0 %v1911
  %v2033 = vpop.f32.mrf.mxu0
  %v2034 = vadd.f32 0.0, %v2033
  %v2035 = vpop.f32.mrf.mxu0
  %v2036 = vadd.f32 0.0, %v2035
  %2037 = vmatmul.bf16.gmra.mxu0 %v1912
  %v2038 = vpop.f32.mrf.mxu0
  %v2039 = vadd.f32 0.0, %v2038
  %v2040 = vpop.f32.mrf.mxu0
  %v2041 = vadd.f32 0.0, %v2040
  %2042 = vmatmul.bf16.gmra.mxu0 %v1913
  %v2043 = vpop.f32.mrf.mxu0
  %v2044 = vadd.f32 0.0, %v2043
  %v2045 = vpop.f32.mrf.mxu0
  %v2046 = vadd.f32 0.0, %v2045
  %2047 = vmatmul.bf16.gmra.mxu0 %v1914
  %v2048 = vpop.f32.mrf.mxu0
  %v2049 = vadd.f32 0.0, %v2048
  %v2050 = vpop.f32.mrf.mxu0
  %v2051 = vadd.f32 0.0, %v2050
  %2052 = vmatmul.bf16.gmra.mxu0 %v1915
  %v2053 = vpop.f32.mrf.mxu0
  %v2054 = vadd.f32 0.0, %v2053
  %v2055 = vpop.f32.mrf.mxu0
  %v2056 = vadd.f32 0.0, %v2055
  %2057 = vmatmul.bf16.gmra.mxu0 %v1916
  %v2058 = vpop.f32.mrf.mxu0
  %v2059 = vadd.f32 0.0, %v2058
  %v2060 = vpop.f32.mrf.mxu0
  %v2061 = vadd.f32 0.0, %v2060
  %2062 = vmatmul.bf16.gmra.mxu0 %v1917
  %v2063 = vpop.f32.mrf.mxu0
  %v2064 = vadd.f32 0.0, %v2063
  %v2065 = vpop.f32.mrf.mxu0
  %v2066 = vadd.f32 0.0, %v2065
  %2067 = vmatmul.bf16.gmra.mxu0 %v1918
  %v2068 = vpop.f32.mrf.mxu0
  %v2069 = vadd.f32 0.0, %v2068
  %v2070 = vpop.f32.mrf.mxu0
  %v2071 = vadd.f32 0.0, %v2070
  %2072 = vdwg.mxu0
  %v2073 = vpack.c.bf16 %v1996, %v1994
  %v2074 = vpack.c.bf16 %v2001, %v1999
  %v2075 = vpack.c.bf16 %v2006, %v2004
  %v2076 = vpack.c.bf16 %v2011, %v2009
  %v2077 = vpack.c.bf16 %v2016, %v2014
  %v2078 = vpack.c.bf16 %v2021, %v2019
  %v2079 = vpack.c.bf16 %v2026, %v2024
  %v2080 = vpack.c.bf16 %v2031, %v2029
  %v2081 = vpack.c.bf16 %v2036, %v2034
  %v2082 = vpack.c.bf16 %v2041, %v2039
  %v2083 = vpack.c.bf16 %v2046, %v2044
  %v2084 = vpack.c.bf16 %v2051, %v2049
  %v2085 = vpack.c.bf16 %v2056, %v2054
  %v2086 = vpack.c.bf16 %v2061, %v2059
  %v2087 = vpack.c.bf16 %v2066, %v2064
  %v2088 = vpack.c.bf16 %v2071, %v2069
  %2089 = vmatpush.bf16.msra.mxu0 %v2080
  %2090 = vmatpush.bf16.msra.mxu0 %v2079
  %2091 = vmatpush.bf16.msra.mxu0 %v2078
  %2092 = vmatpush.bf16.msra.mxu0 %v2077
  %2093 = vmatpush.bf16.msra.mxu0 %v2076
  %2094 = vmatpush.bf16.msra.mxu0 %v2075
  %2095 = vmatpush.bf16.msra.mxu0 %v2074
  %2096 = vmatpush.bf16.msra.mxu0 %v2073
  %2097 = vmatmul.bf16.gmra.mxu0 %v441
  %v2098 = vpop.f32.mrf.mxu0
  %v2099 = vadd.f32 0.0, %v2098
  %v2100 = vpop.f32.mrf.mxu0
  %v2101 = vadd.f32 0.0, %v2100
  %2102 = vmatmul.bf16.gmra.mxu0 %v443
  %v2103 = vpop.f32.mrf.mxu0
  %v2104 = vadd.f32 0.0, %v2103
  %v2105 = vpop.f32.mrf.mxu0
  %v2106 = vadd.f32 0.0, %v2105
  %2107 = vmatmul.bf16.gmra.mxu0 %v445
  %v2108 = vpop.f32.mrf.mxu0
  %v2109 = vadd.f32 0.0, %v2108
  %v2110 = vpop.f32.mrf.mxu0
  %v2111 = vadd.f32 0.0, %v2110
  %2112 = vmatmul.bf16.gmra.mxu0 %v447
  %v2113 = vpop.f32.mrf.mxu0
  %v2114 = vadd.f32 0.0, %v2113
  %v2115 = vpop.f32.mrf.mxu0
  %v2116 = vadd.f32 0.0, %v2115
  %2117 = vmatmul.bf16.gmra.mxu0 %v449
  %v2118 = vpop.f32.mrf.mxu0
  %v2119 = vadd.f32 0.0, %v2118
  %v2120 = vpop.f32.mrf.mxu0
  %v2121 = vadd.f32 0.0, %v2120
  %2122 = vmatmul.bf16.gmra.mxu0 %v451
  %v2123 = vpop.f32.mrf.mxu0
  %v2124 = vadd.f32 0.0, %v2123
  %v2125 = vpop.f32.mrf.mxu0
  %v2126 = vadd.f32 0.0, %v2125
  %2127 = vmatmul.bf16.gmra.mxu0 %v453
  %v2128 = vpop.f32.mrf.mxu0
  %v2129 = vadd.f32 0.0, %v2128
  %v2130 = vpop.f32.mrf.mxu0
  %v2131 = vadd.f32 0.0, %v2130
  %2132 = vmatmul.bf16.gmra.mxu0 %v455
  %v2133 = vpop.f32.mrf.mxu0
  %v2134 = vadd.f32 0.0, %v2133
  %v2135 = vpop.f32.mrf.mxu0
  %v2136 = vadd.f32 0.0, %v2135
  %2137 = vmatmul.bf16.gmra.mxu0 %v457
  %v2138 = vpop.f32.mrf.mxu0
  %v2139 = vadd.f32 0.0, %v2138
  %v2140 = vpop.f32.mrf.mxu0
  %v2141 = vadd.f32 0.0, %v2140
  %2142 = vmatmul.bf16.gmra.mxu0 %v459
  %v2143 = vpop.f32.mrf.mxu0
  %v2144 = vadd.f32 0.0, %v2143
  %v2145 = vpop.f32.mrf.mxu0
  %v2146 = vadd.f32 0.0, %v2145
  %2147 = vmatmul.bf16.gmra.mxu0 %v461
  %v2148 = vpop.f32.mrf.mxu0
  %v2149 = vadd.f32 0.0, %v2148
  %v2150 = vpop.f32.mrf.mxu0
  %v2151 = vadd.f32 0.0, %v2150
  %2152 = vmatmul.bf16.gmra.mxu0 %v463
  %v2153 = vpop.f32.mrf.mxu0
  %v2154 = vadd.f32 0.0, %v2153
  %v2155 = vpop.f32.mrf.mxu0
  %v2156 = vadd.f32 0.0, %v2155
  %2157 = vmatmul.bf16.gmra.mxu0 %v465
  %v2158 = vpop.f32.mrf.mxu0
  %v2159 = vadd.f32 0.0, %v2158
  %v2160 = vpop.f32.mrf.mxu0
  %v2161 = vadd.f32 0.0, %v2160
  %2162 = vmatmul.bf16.gmra.mxu0 %v467
  %v2163 = vpop.f32.mrf.mxu0
  %v2164 = vadd.f32 0.0, %v2163
  %v2165 = vpop.f32.mrf.mxu0
  %v2166 = vadd.f32 0.0, %v2165
  %2167 = vmatmul.bf16.gmra.mxu0 %v469
  %v2168 = vpop.f32.mrf.mxu0
  %v2169 = vadd.f32 0.0, %v2168
  %v2170 = vpop.f32.mrf.mxu0
  %v2171 = vadd.f32 0.0, %v2170
  %2172 = vmatmul.bf16.gmra.mxu0 %v471
  %v2173 = vpop.f32.mrf.mxu0
  %v2174 = vadd.f32 0.0, %v2173
  %v2175 = vpop.f32.mrf.mxu0
  %v2176 = vadd.f32 0.0, %v2175
  %2177 = vdwg.mxu0
  %2178 = vmatpush.bf16.msra.mxu0 %v2088
  %2179 = vmatpush.bf16.msra.mxu0 %v2087
  %2180 = vmatpush.bf16.msra.mxu0 %v2086
  %2181 = vmatpush.bf16.msra.mxu0 %v2085
  %2182 = vmatpush.bf16.msra.mxu0 %v2084
  %2183 = vmatpush.bf16.msra.mxu0 %v2083
  %2184 = vmatpush.bf16.msra.mxu0 %v2082
  %2185 = vmatpush.bf16.msra.mxu0 %v2081
  %2186 = vmatmul.bf16.gmra.mxu0 %v442
  %v2187 = vpop.f32.mrf.mxu0
  %v2188 = vadd.f32 %v2099, %v2187
  %v2189 = vpop.f32.mrf.mxu0
  %v2190 = vadd.f32 %v2101, %v2189
  %2191 = vmatmul.bf16.gmra.mxu0 %v444
  %v2192 = vpop.f32.mrf.mxu0
  %v2193 = vadd.f32 %v2104, %v2192
  %v2194 = vpop.f32.mrf.mxu0
  %v2195 = vadd.f32 %v2106, %v2194
  %2196 = vmatmul.bf16.gmra.mxu0 %v446
  %v2197 = vpop.f32.mrf.mxu0
  %v2198 = vadd.f32 %v2109, %v2197
  %v2199 = vpop.f32.mrf.mxu0
  %v2200 = vadd.f32 %v2111, %v2199
  %2201 = vmatmul.bf16.gmra.mxu0 %v448
  %v2202 = vpop.f32.mrf.mxu0
  %v2203 = vadd.f32 %v2114, %v2202
  %v2204 = vpop.f32.mrf.mxu0
  %v2205 = vadd.f32 %v2116, %v2204
  %2206 = vmatmul.bf16.gmra.mxu0 %v450
  %v2207 = vpop.f32.mrf.mxu0
  %v2208 = vadd.f32 %v2119, %v2207
  %v2209 = vpop.f32.mrf.mxu0
  %v2210 = vadd.f32 %v2121, %v2209
  %2211 = vmatmul.bf16.gmra.mxu0 %v452
  %v2212 = vpop.f32.mrf.mxu0
  %v2213 = vadd.f32 %v2124, %v2212
  %v2214 = vpop.f32.mrf.mxu0
  %v2215 = vadd.f32 %v2126, %v2214
  %2216 = vmatmul.bf16.gmra.mxu0 %v454
  %v2217 = vpop.f32.mrf.mxu0
  %v2218 = vadd.f32 %v2129, %v2217
  %v2219 = vpop.f32.mrf.mxu0
  %v2220 = vadd.f32 %v2131, %v2219
  %2221 = vmatmul.bf16.gmra.mxu0 %v456
  %v2222 = vpop.f32.mrf.mxu0
  %v2223 = vadd.f32 %v2134, %v2222
  %v2224 = vpop.f32.mrf.mxu0
  %v2225 = vadd.f32 %v2136, %v2224
  %2226 = vmatmul.bf16.gmra.mxu0 %v458
  %v2227 = vpop.f32.mrf.mxu0
  %v2228 = vadd.f32 %v2139, %v2227
  %v2229 = vpop.f32.mrf.mxu0
  %v2230 = vadd.f32 %v2141, %v2229
  %2231 = vmatmul.bf16.gmra.mxu0 %v460
  %v2232 = vpop.f32.mrf.mxu0
  %v2233 = vadd.f32 %v2144, %v2232
  %v2234 = vpop.f32.mrf.mxu0
  %v2235 = vadd.f32 %v2146, %v2234
  %2236 = vmatmul.bf16.gmra.mxu0 %v462
  %v2237 = vpop.f32.mrf.mxu0
  %v2238 = vadd.f32 %v2149, %v2237
  %v2239 = vpop.f32.mrf.mxu0
  %v2240 = vadd.f32 %v2151, %v2239
  %2241 = vmatmul.bf16.gmra.mxu0 %v464
  %v2242 = vpop.f32.mrf.mxu0
  %v2243 = vadd.f32 %v2154, %v2242
  %v2244 = vpop.f32.mrf.mxu0
  %v2245 = vadd.f32 %v2156, %v2244
  %2246 = vmatmul.bf16.gmra.mxu0 %v466
  %v2247 = vpop.f32.mrf.mxu0
  %v2248 = vadd.f32 %v2159, %v2247
  %v2249 = vpop.f32.mrf.mxu0
  %v2250 = vadd.f32 %v2161, %v2249
  %2251 = vmatmul.bf16.gmra.mxu0 %v468
  %v2252 = vpop.f32.mrf.mxu0
  %v2253 = vadd.f32 %v2164, %v2252
  %v2254 = vpop.f32.mrf.mxu0
  %v2255 = vadd.f32 %v2166, %v2254
  %2256 = vmatmul.bf16.gmra.mxu0 %v470
  %v2257 = vpop.f32.mrf.mxu0
  %v2258 = vadd.f32 %v2169, %v2257
  %v2259 = vpop.f32.mrf.mxu0
  %v2260 = vadd.f32 %v2171, %v2259
  %2261 = vmatmul.bf16.gmra.mxu0 %v472
  %v2262 = vpop.f32.mrf.mxu0
  %v2263 = vadd.f32 %v2174, %v2262
  %v2264 = vpop.f32.mrf.mxu0
  %v2265 = vadd.f32 %v2176, %v2264
  %2266 = vdwg.mxu0
  %v2267 = vmax.f32 %v2188, 0.0
  %v2268 = vmax.f32 %v2190, 0.0
  %v2269 = vmax.f32 %v2193, 0.0
  %v2270 = vmax.f32 %v2195, 0.0
  %v2271 = vmax.f32 %v2198, 0.0
  %v2272 = vmax.f32 %v2200, 0.0
  %v2273 = vmax.f32 %v2203, 0.0
  %v2274 = vmax.f32 %v2205, 0.0
  %v2275 = vmax.f32 %v2208, 0.0
  %v2276 = vmax.f32 %v2210, 0.0
  %v2277 = vmax.f32 %v2213, 0.0
  %v2278 = vmax.f32 %v2215, 0.0
  %v2279 = vmax.f32 %v2218, 0.0
  %v2280 = vmax.f32 %v2220, 0.0
  %v2281 = vmax.f32 %v2223, 0.0
  %v2282 = vmax.f32 %v2225, 0.0
  %v2283 = vmax.f32 %v2228, 0.0
  %v2284 = vmax.f32 %v2230, 0.0
  %v2285 = vmax.f32 %v2233, 0.0
  %v2286 = vmax.f32 %v2235, 0.0
  %v2287 = vmax.f32 %v2238, 0.0
  %v2288 = vmax.f32 %v2240, 0.0
  %v2289 = vmax.f32 %v2243, 0.0
  %v2290 = vmax.f32 %v2245, 0.0
  %v2291 = vmax.f32 %v2248, 0.0
  %v2292 = vmax.f32 %v2250, 0.0
  %v2293 = vmax.f32 %v2253, 0.0
  %v2294 = vmax.f32 %v2255, 0.0
  %v2295 = vmax.f32 %v2258, 0.0
  %v2296 = vmax.f32 %v2260, 0.0
  %v2297 = vmax.f32 %v2263, 0.0
  %v2298 = vmax.f32 %v2265, 0.0
  %v2299 = vpack.c.bf16 %v2268, %v2267
  %v2300 = vpack.c.bf16 %v2270, %v2269
  %v2301 = vpack.c.bf16 %v2272, %v2271
  %v2302 = vpack.c.bf16 %v2274, %v2273
  %v2303 = vpack.c.bf16 %v2276, %v2275
  %v2304 = vpack.c.bf16 %v2278, %v2277
  %v2305 = vpack.c.bf16 %v2280, %v2279
  %v2306 = vpack.c.bf16 %v2282, %v2281
  %v2307 = vpack.c.bf16 %v2284, %v2283
  %v2308 = vpack.c.bf16 %v2286, %v2285
  %v2309 = vpack.c.bf16 %v2288, %v2287
  %v2310 = vpack.c.bf16 %v2290, %v2289
  %v2311 = vpack.c.bf16 %v2292, %v2291
  %v2312 = vpack.c.bf16 %v2294, %v2293
  %v2313 = vpack.c.bf16 %v2296, %v2295
  %v2314 = vpack.c.bf16 %v2298, %v2297
  %s2315 = scalar_lea.vmem %s2, 320
  %v2316 = vld [vmem:[%s2315] sm:$0xf]
  %v2317 = vld [vmem:[%s2315 + $0x4] sm:$0xf]
  %v2318 = vld [vmem:[%s2315 + $0x8] sm:$0xf]
  %v2319 = vld [vmem:[%s2315 + $0xc] sm:$0xf]
  %v2320 = vld [vmem:[%s2315 + $0x10] sm:$0xf]
  %v2321 = vld [vmem:[%s2315 + $0x14] sm:$0xf]
  %v2322 = vld [vmem:[%s2315 + $0x18] sm:$0xf]
  %v2323 = vld [vmem:[%s2315 + $0x1c] sm:$0xf]
  %v2324 = vld [vmem:[%s2315 + $0x20] sm:$0xf]
  %v2325 = vld [vmem:[%s2315 + $0x24] sm:$0xf]
  %v2326 = vld [vmem:[%s2315 + $0x28] sm:$0xf]
  %v2327 = vld [vmem:[%s2315 + $0x2c] sm:$0xf]
  %v2328 = vld [vmem:[%s2315 + $0x30] sm:$0xf]
  %v2329 = vld [vmem:[%s2315 + $0x34] sm:$0xf]
  %v2330 = vld [vmem:[%s2315 + $0x38] sm:$0xf]
  %v2331 = vld [vmem:[%s2315 + $0x3c] sm:$0xf]
  %v2348 = vunpack.c.l.b16 %v2316
  %v2349 = vunpack.c.l.b16 %v2317
  %v2350 = vunpack.c.l.b16 %v2318
  %v2351 = vunpack.c.l.b16 %v2319
  %v2352 = vunpack.c.l.b16 %v2320
  %v2353 = vunpack.c.l.b16 %v2321
  %v2354 = vunpack.c.l.b16 %v2322
  %v2355 = vunpack.c.l.b16 %v2323
  %v2356 = vunpack.c.l.b16 %v2324
  %v2357 = vunpack.c.l.b16 %v2325
  %v2358 = vunpack.c.l.b16 %v2326
  %v2359 = vunpack.c.l.b16 %v2327
  %v2360 = vunpack.c.l.b16 %v2328
  %v2361 = vunpack.c.l.b16 %v2329
  %v2362 = vunpack.c.l.b16 %v2330
  %v2363 = vunpack.c.l.b16 %v2331
  %v2364 = vpack.c.b16 %v2349, %v2348
  %v2365 = vpack.c.b16 %v2351, %v2350
  %v2366 = vpack.c.b16 %v2353, %v2352
  %v2367 = vpack.c.b16 %v2355, %v2354
  %v2368 = vpack.c.b16 %v2357, %v2356
  %v2369 = vpack.c.b16 %v2359, %v2358
  %v2370 = vpack.c.b16 %v2361, %v2360
  %v2371 = vpack.c.b16 %v2363, %v2362
  %2380 = vmatpush.bf16.msra.mxu0 %v2371
  %2381 = vmatpush.bf16.msra.mxu0 %v2370
  %2382 = vmatpush.bf16.msra.mxu0 %v2369
  %2383 = vmatpush.bf16.msra.mxu0 %v2368
  %2384 = vmatpush.bf16.msra.mxu0 %v2367
  %2385 = vmatpush.bf16.msra.mxu0 %v2366
  %2386 = vmatpush.bf16.msra.mxu0 %v2365
  %2387 = vmatpush.bf16.msra.mxu0 %v2364
  %2388 = vmatmul.bf16.gmra.mxu0 %v2299
  %v2389 = vpop.f32.mrf.mxu0
  %v2390 = vadd.f32 0.0, %v2389
  %v2391 = vpop.f32.mrf.mxu0
  %v2392 = vadd.f32 0.0, %v2391
  %2393 = vmatmul.bf16.gmra.mxu0 %v2300
  %v2394 = vpop.f32.mrf.mxu0
  %v2395 = vadd.f32 0.0, %v2394
  %v2396 = vpop.f32.mrf.mxu0
  %v2397 = vadd.f32 0.0, %v2396
  %2398 = vmatmul.bf16.gmra.mxu0 %v2301
  %v2399 = vpop.f32.mrf.mxu0
  %v2400 = vadd.f32 0.0, %v2399
  %v2401 = vpop.f32.mrf.mxu0
  %v2402 = vadd.f32 0.0, %v2401
  %2403 = vmatmul.bf16.gmra.mxu0 %v2302
  %v2404 = vpop.f32.mrf.mxu0
  %v2405 = vadd.f32 0.0, %v2404
  %v2406 = vpop.f32.mrf.mxu0
  %v2407 = vadd.f32 0.0, %v2406
  %2408 = vmatmul.bf16.gmra.mxu0 %v2303
  %v2409 = vpop.f32.mrf.mxu0
  %v2410 = vadd.f32 0.0, %v2409
  %v2411 = vpop.f32.mrf.mxu0
  %v2412 = vadd.f32 0.0, %v2411
  %2413 = vmatmul.bf16.gmra.mxu0 %v2304
  %v2414 = vpop.f32.mrf.mxu0
  %v2415 = vadd.f32 0.0, %v2414
  %v2416 = vpop.f32.mrf.mxu0
  %v2417 = vadd.f32 0.0, %v2416
  %2418 = vmatmul.bf16.gmra.mxu0 %v2305
  %v2419 = vpop.f32.mrf.mxu0
  %v2420 = vadd.f32 0.0, %v2419
  %v2421 = vpop.f32.mrf.mxu0
  %v2422 = vadd.f32 0.0, %v2421
  %2423 = vmatmul.bf16.gmra.mxu0 %v2306
  %v2424 = vpop.f32.mrf.mxu0
  %v2425 = vadd.f32 0.0, %v2424
  %v2426 = vpop.f32.mrf.mxu0
  %v2427 = vadd.f32 0.0, %v2426
  %2428 = vmatmul.bf16.gmra.mxu0 %v2307
  %v2429 = vpop.f32.mrf.mxu0
  %v2430 = vadd.f32 0.0, %v2429
  %v2431 = vpop.f32.mrf.mxu0
  %v2432 = vadd.f32 0.0, %v2431
  %2433 = vmatmul.bf16.gmra.mxu0 %v2308
  %v2434 = vpop.f32.mrf.mxu0
  %v2435 = vadd.f32 0.0, %v2434
  %v2436 = vpop.f32.mrf.mxu0
  %v2437 = vadd.f32 0.0, %v2436
  %2438 = vmatmul.bf16.gmra.mxu0 %v2309
  %v2439 = vpop.f32.mrf.mxu0
  %v2440 = vadd.f32 0.0, %v2439
  %v2441 = vpop.f32.mrf.mxu0
  %v2442 = vadd.f32 0.0, %v2441
  %2443 = vmatmul.bf16.gmra.mxu0 %v2310
  %v2444 = vpop.f32.mrf.mxu0
  %v2445 = vadd.f32 0.0, %v2444
  %v2446 = vpop.f32.mrf.mxu0
  %v2447 = vadd.f32 0.0, %v2446
  %2448 = vmatmul.bf16.gmra.mxu0 %v2311
  %v2449 = vpop.f32.mrf.mxu0
  %v2450 = vadd.f32 0.0, %v2449
  %v2451 = vpop.f32.mrf.mxu0
  %v2452 = vadd.f32 0.0, %v2451
  %2453 = vmatmul.bf16.gmra.mxu0 %v2312
  %v2454 = vpop.f32.mrf.mxu0
  %v2455 = vadd.f32 0.0, %v2454
  %v2456 = vpop.f32.mrf.mxu0
  %v2457 = vadd.f32 0.0, %v2456
  %2458 = vmatmul.bf16.gmra.mxu0 %v2313
  %v2459 = vpop.f32.mrf.mxu0
  %v2460 = vadd.f32 0.0, %v2459
  %v2461 = vpop.f32.mrf.mxu0
  %v2462 = vadd.f32 0.0, %v2461
  %2463 = vmatmul.bf16.gmra.mxu0 %v2314
  %v2464 = vpop.f32.mrf.mxu0
  %v2465 = vadd.f32 0.0, %v2464
  %v2466 = vpop.f32.mrf.mxu0
  %v2467 = vadd.f32 0.0, %v2466
  %2468 = vdwg.mxu0
  %v2469 = vpack.c.bf16 %v2392, %v2390
  %v2470 = vpack.c.bf16 %v2397, %v2395
  %v2471 = vpack.c.bf16 %v2402, %v2400
  %v2472 = vpack.c.bf16 %v2407, %v2405
  %v2473 = vpack.c.bf16 %v2412, %v2410
  %v2474 = vpack.c.bf16 %v2417, %v2415
  %v2475 = vpack.c.bf16 %v2422, %v2420
  %v2476 = vpack.c.bf16 %v2427, %v2425
  %v2477 = vpack.c.bf16 %v2432, %v2430
  %v2478 = vpack.c.bf16 %v2437, %v2435
  %v2479 = vpack.c.bf16 %v2442, %v2440
  %v2480 = vpack.c.bf16 %v2447, %v2445
  %v2481 = vpack.c.bf16 %v2452, %v2450
  %v2482 = vpack.c.bf16 %v2457, %v2455
  %v2483 = vpack.c.bf16 %v2462, %v2460
  %v2484 = vpack.c.bf16 %v2467, %v2465
  %2485 = vmatpush.bf16.msra.mxu0 %v2476
  %2486 = vmatpush.bf16.msra.mxu0 %v2475
  %2487 = vmatpush.bf16.msra.mxu0 %v2474
  %2488 = vmatpush.bf16.msra.mxu0 %v2473
  %2489 = vmatpush.bf16.msra.mxu0 %v2472
  %2490 = vmatpush.bf16.msra.mxu0 %v2471
  %2491 = vmatpush.bf16.msra.mxu0 %v2470
  %2492 = vmatpush.bf16.msra.mxu0 %v2469
  %2493 = vmatmul.bf16.gmra.mxu0 %v441
  %v2494 = vpop.f32.mrf.mxu0
  %v2495 = vadd.f32 0.0, %v2494
  %v2496 = vpop.f32.mrf.mxu0
  %v2497 = vadd.f32 0.0, %v2496
  %2498 = vmatmul.bf16.gmra.mxu0 %v443
  %v2499 = vpop.f32.mrf.mxu0
  %v2500 = vadd.f32 0.0, %v2499
  %v2501 = vpop.f32.mrf.mxu0
  %v2502 = vadd.f32 0.0, %v2501
  %2503 = vmatmul.bf16.gmra.mxu0 %v445
  %v2504 = vpop.f32.mrf.mxu0
  %v2505 = vadd.f32 0.0, %v2504
  %v2506 = vpop.f32.mrf.mxu0
  %v2507 = vadd.f32 0.0, %v2506
  %2508 = vmatmul.bf16.gmra.mxu0 %v447
  %v2509 = vpop.f32.mrf.mxu0
  %v2510 = vadd.f32 0.0, %v2509
  %v2511 = vpop.f32.mrf.mxu0
  %v2512 = vadd.f32 0.0, %v2511
  %2513 = vmatmul.bf16.gmra.mxu0 %v449
  %v2514 = vpop.f32.mrf.mxu0
  %v2515 = vadd.f32 0.0, %v2514
  %v2516 = vpop.f32.mrf.mxu0
  %v2517 = vadd.f32 0.0, %v2516
  %2518 = vmatmul.bf16.gmra.mxu0 %v451
  %v2519 = vpop.f32.mrf.mxu0
  %v2520 = vadd.f32 0.0, %v2519
  %v2521 = vpop.f32.mrf.mxu0
  %v2522 = vadd.f32 0.0, %v2521
  %2523 = vmatmul.bf16.gmra.mxu0 %v453
  %v2524 = vpop.f32.mrf.mxu0
  %v2525 = vadd.f32 0.0, %v2524
  %v2526 = vpop.f32.mrf.mxu0
  %v2527 = vadd.f32 0.0, %v2526
  %2528 = vmatmul.bf16.gmra.mxu0 %v455
  %v2529 = vpop.f32.mrf.mxu0
  %v2530 = vadd.f32 0.0, %v2529
  %v2531 = vpop.f32.mrf.mxu0
  %v2532 = vadd.f32 0.0, %v2531
  %2533 = vmatmul.bf16.gmra.mxu0 %v457
  %v2534 = vpop.f32.mrf.mxu0
  %v2535 = vadd.f32 0.0, %v2534
  %v2536 = vpop.f32.mrf.mxu0
  %v2537 = vadd.f32 0.0, %v2536
  %2538 = vmatmul.bf16.gmra.mxu0 %v459
  %v2539 = vpop.f32.mrf.mxu0
  %v2540 = vadd.f32 0.0, %v2539
  %v2541 = vpop.f32.mrf.mxu0
  %v2542 = vadd.f32 0.0, %v2541
  %2543 = vmatmul.bf16.gmra.mxu0 %v461
  %v2544 = vpop.f32.mrf.mxu0
  %v2545 = vadd.f32 0.0, %v2544
  %v2546 = vpop.f32.mrf.mxu0
  %v2547 = vadd.f32 0.0, %v2546
  %2548 = vmatmul.bf16.gmra.mxu0 %v463
  %v2549 = vpop.f32.mrf.mxu0
  %v2550 = vadd.f32 0.0, %v2549
  %v2551 = vpop.f32.mrf.mxu0
  %v2552 = vadd.f32 0.0, %v2551
  %2553 = vmatmul.bf16.gmra.mxu0 %v465
  %v2554 = vpop.f32.mrf.mxu0
  %v2555 = vadd.f32 0.0, %v2554
  %v2556 = vpop.f32.mrf.mxu0
  %v2557 = vadd.f32 0.0, %v2556
  %2558 = vmatmul.bf16.gmra.mxu0 %v467
  %v2559 = vpop.f32.mrf.mxu0
  %v2560 = vadd.f32 0.0, %v2559
  %v2561 = vpop.f32.mrf.mxu0
  %v2562 = vadd.f32 0.0, %v2561
  %2563 = vmatmul.bf16.gmra.mxu0 %v469
  %v2564 = vpop.f32.mrf.mxu0
  %v2565 = vadd.f32 0.0, %v2564
  %v2566 = vpop.f32.mrf.mxu0
  %v2567 = vadd.f32 0.0, %v2566
  %2568 = vmatmul.bf16.gmra.mxu0 %v471
  %v2569 = vpop.f32.mrf.mxu0
  %v2570 = vadd.f32 0.0, %v2569
  %v2571 = vpop.f32.mrf.mxu0
  %v2572 = vadd.f32 0.0, %v2571
  %2573 = vdwg.mxu0
  %2574 = vmatpush.bf16.msra.mxu0 %v2484
  %2575 = vmatpush.bf16.msra.mxu0 %v2483
  %2576 = vmatpush.bf16.msra.mxu0 %v2482
  %2577 = vmatpush.bf16.msra.mxu0 %v2481
  %2578 = vmatpush.bf16.msra.mxu0 %v2480
  %2579 = vmatpush.bf16.msra.mxu0 %v2479
  %2580 = vmatpush.bf16.msra.mxu0 %v2478
  %2581 = vmatpush.bf16.msra.mxu0 %v2477
  %2582 = vmatmul.bf16.gmra.mxu0 %v442
  %v2583 = vpop.f32.mrf.mxu0
  %v2584 = vadd.f32 %v2495, %v2583
  %v2585 = vpop.f32.mrf.mxu0
  %v2586 = vadd.f32 %v2497, %v2585
  %2587 = vmatmul.bf16.gmra.mxu0 %v444
  %v2588 = vpop.f32.mrf.mxu0
  %v2589 = vadd.f32 %v2500, %v2588
  %v2590 = vpop.f32.mrf.mxu0
  %v2591 = vadd.f32 %v2502, %v2590
  %2592 = vmatmul.bf16.gmra.mxu0 %v446
  %v2593 = vpop.f32.mrf.mxu0
  %v2594 = vadd.f32 %v2505, %v2593
  %v2595 = vpop.f32.mrf.mxu0
  %v2596 = vadd.f32 %v2507, %v2595
  %2597 = vmatmul.bf16.gmra.mxu0 %v448
  %v2598 = vpop.f32.mrf.mxu0
  %v2599 = vadd.f32 %v2510, %v2598
  %v2600 = vpop.f32.mrf.mxu0
  %v2601 = vadd.f32 %v2512, %v2600
  %2602 = vmatmul.bf16.gmra.mxu0 %v450
  %v2603 = vpop.f32.mrf.mxu0
  %v2604 = vadd.f32 %v2515, %v2603
  %v2605 = vpop.f32.mrf.mxu0
  %v2606 = vadd.f32 %v2517, %v2605
  %2607 = vmatmul.bf16.gmra.mxu0 %v452
  %v2608 = vpop.f32.mrf.mxu0
  %v2609 = vadd.f32 %v2520, %v2608
  %v2610 = vpop.f32.mrf.mxu0
  %v2611 = vadd.f32 %v2522, %v2610
  %2612 = vmatmul.bf16.gmra.mxu0 %v454
  %v2613 = vpop.f32.mrf.mxu0
  %v2614 = vadd.f32 %v2525, %v2613
  %v2615 = vpop.f32.mrf.mxu0
  %v2616 = vadd.f32 %v2527, %v2615
  %2617 = vmatmul.bf16.gmra.mxu0 %v456
  %v2618 = vpop.f32.mrf.mxu0
  %v2619 = vadd.f32 %v2530, %v2618
  %v2620 = vpop.f32.mrf.mxu0
  %v2621 = vadd.f32 %v2532, %v2620
  %2622 = vmatmul.bf16.gmra.mxu0 %v458
  %v2623 = vpop.f32.mrf.mxu0
  %v2624 = vadd.f32 %v2535, %v2623
  %v2625 = vpop.f32.mrf.mxu0
  %v2626 = vadd.f32 %v2537, %v2625
  %2627 = vmatmul.bf16.gmra.mxu0 %v460
  %v2628 = vpop.f32.mrf.mxu0
  %v2629 = vadd.f32 %v2540, %v2628
  %v2630 = vpop.f32.mrf.mxu0
  %v2631 = vadd.f32 %v2542, %v2630
  %2632 = vmatmul.bf16.gmra.mxu0 %v462
  %v2633 = vpop.f32.mrf.mxu0
  %v2634 = vadd.f32 %v2545, %v2633
  %v2635 = vpop.f32.mrf.mxu0
  %v2636 = vadd.f32 %v2547, %v2635
  %2637 = vmatmul.bf16.gmra.mxu0 %v464
  %v2638 = vpop.f32.mrf.mxu0
  %v2639 = vadd.f32 %v2550, %v2638
  %v2640 = vpop.f32.mrf.mxu0
  %v2641 = vadd.f32 %v2552, %v2640
  %2642 = vmatmul.bf16.gmra.mxu0 %v466
  %v2643 = vpop.f32.mrf.mxu0
  %v2644 = vadd.f32 %v2555, %v2643
  %v2645 = vpop.f32.mrf.mxu0
  %v2646 = vadd.f32 %v2557, %v2645
  %2647 = vmatmul.bf16.gmra.mxu0 %v468
  %v2648 = vpop.f32.mrf.mxu0
  %v2649 = vadd.f32 %v2560, %v2648
  %v2650 = vpop.f32.mrf.mxu0
  %v2651 = vadd.f32 %v2562, %v2650
  %2652 = vmatmul.bf16.gmra.mxu0 %v470
  %v2653 = vpop.f32.mrf.mxu0
  %v2654 = vadd.f32 %v2565, %v2653
  %v2655 = vpop.f32.mrf.mxu0
  %v2656 = vadd.f32 %v2567, %v2655
  %2657 = vmatmul.bf16.gmra.mxu0 %v472
  %v2658 = vpop.f32.mrf.mxu0
  %v2659 = vadd.f32 %v2570, %v2658
  %v2660 = vpop.f32.mrf.mxu0
  %v2661 = vadd.f32 %v2572, %v2660
  %2662 = vdwg.mxu0
  %v2663 = vmax.f32 %v2584, 0.0
  %v2664 = vmax.f32 %v2586, 0.0
  %v2665 = vmax.f32 %v2589, 0.0
  %v2666 = vmax.f32 %v2591, 0.0
  %v2667 = vmax.f32 %v2594, 0.0
  %v2668 = vmax.f32 %v2596, 0.0
  %v2669 = vmax.f32 %v2599, 0.0
  %v2670 = vmax.f32 %v2601, 0.0
  %v2671 = vmax.f32 %v2604, 0.0
  %v2672 = vmax.f32 %v2606, 0.0
  %v2673 = vmax.f32 %v2609, 0.0
  %v2674 = vmax.f32 %v2611, 0.0
  %v2675 = vmax.f32 %v2614, 0.0
  %v2676 = vmax.f32 %v2616, 0.0
  %v2677 = vmax.f32 %v2619, 0.0
  %v2678 = vmax.f32 %v2621, 0.0
  %v2679 = vmax.f32 %v2624, 0.0
  %v2680 = vmax.f32 %v2626, 0.0
  %v2681 = vmax.f32 %v2629, 0.0
  %v2682 = vmax.f32 %v2631, 0.0
  %v2683 = vmax.f32 %v2634, 0.0
  %v2684 = vmax.f32 %v2636, 0.0
  %v2685 = vmax.f32 %v2639, 0.0
  %v2686 = vmax.f32 %v2641, 0.0
  %v2687 = vmax.f32 %v2644, 0.0
  %v2688 = vmax.f32 %v2646, 0.0
  %v2689 = vmax.f32 %v2649, 0.0
  %v2690 = vmax.f32 %v2651, 0.0
  %v2691 = vmax.f32 %v2654, 0.0
  %v2692 = vmax.f32 %v2656, 0.0
  %v2693 = vmax.f32 %v2659, 0.0
  %v2694 = vmax.f32 %v2661, 0.0
  %v2695 = vpack.c.bf16 %v2664, %v2663
  %v2696 = vpack.c.bf16 %v2666, %v2665
  %v2697 = vpack.c.bf16 %v2668, %v2667
  %v2698 = vpack.c.bf16 %v2670, %v2669
  %v2699 = vpack.c.bf16 %v2672, %v2671
  %v2700 = vpack.c.bf16 %v2674, %v2673
  %v2701 = vpack.c.bf16 %v2676, %v2675
  %v2702 = vpack.c.bf16 %v2678, %v2677
  %v2703 = vpack.c.bf16 %v2680, %v2679
  %v2704 = vpack.c.bf16 %v2682, %v2681
  %v2705 = vpack.c.bf16 %v2684, %v2683
  %v2706 = vpack.c.bf16 %v2686, %v2685
  %v2707 = vpack.c.bf16 %v2688, %v2687
  %v2708 = vpack.c.bf16 %v2690, %v2689
  %v2709 = vpack.c.bf16 %v2692, %v2691
  %v2710 = vpack.c.bf16 %v2694, %v2693
  %s2711 = scalar_lea.vmem %s2, 384
  %v2712 = vld [vmem:[%s2711] sm:$0xf]
  %v2713 = vld [vmem:[%s2711 + $0x4] sm:$0xf]
  %v2714 = vld [vmem:[%s2711 + $0x8] sm:$0xf]
  %v2715 = vld [vmem:[%s2711 + $0xc] sm:$0xf]
  %v2716 = vld [vmem:[%s2711 + $0x10] sm:$0xf]
  %v2717 = vld [vmem:[%s2711 + $0x14] sm:$0xf]
  %v2718 = vld [vmem:[%s2711 + $0x18] sm:$0xf]
  %v2719 = vld [vmem:[%s2711 + $0x1c] sm:$0xf]
  %v2720 = vld [vmem:[%s2711 + $0x20] sm:$0xf]
  %v2721 = vld [vmem:[%s2711 + $0x24] sm:$0xf]
  %v2722 = vld [vmem:[%s2711 + $0x28] sm:$0xf]
  %v2723 = vld [vmem:[%s2711 + $0x2c] sm:$0xf]
  %v2724 = vld [vmem:[%s2711 + $0x30] sm:$0xf]
  %v2725 = vld [vmem:[%s2711 + $0x34] sm:$0xf]
  %v2726 = vld [vmem:[%s2711 + $0x38] sm:$0xf]
  %v2727 = vld [vmem:[%s2711 + $0x3c] sm:$0xf]
  %v2744 = vunpack.c.l.b16 %v2712
  %v2745 = vunpack.c.l.b16 %v2713
  %v2746 = vunpack.c.l.b16 %v2714
  %v2747 = vunpack.c.l.b16 %v2715
  %v2748 = vunpack.c.l.b16 %v2716
  %v2749 = vunpack.c.l.b16 %v2717
  %v2750 = vunpack.c.l.b16 %v2718
  %v2751 = vunpack.c.l.b16 %v2719
  %v2752 = vunpack.c.l.b16 %v2720
  %v2753 = vunpack.c.l.b16 %v2721
  %v2754 = vunpack.c.l.b16 %v2722
  %v2755 = vunpack.c.l.b16 %v2723
  %v2756 = vunpack.c.l.b16 %v2724
  %v2757 = vunpack.c.l.b16 %v2725
  %v2758 = vunpack.c.l.b16 %v2726
  %v2759 = vunpack.c.l.b16 %v2727
  %v2760 = vpack.c.b16 %v2745, %v2744
  %v2761 = vpack.c.b16 %v2747, %v2746
  %v2762 = vpack.c.b16 %v2749, %v2748
  %v2763 = vpack.c.b16 %v2751, %v2750
  %v2764 = vpack.c.b16 %v2753, %v2752
  %v2765 = vpack.c.b16 %v2755, %v2754
  %v2766 = vpack.c.b16 %v2757, %v2756
  %v2767 = vpack.c.b16 %v2759, %v2758
  %2776 = vmatpush.bf16.msra.mxu0 %v2767
  %2777 = vmatpush.bf16.msra.mxu0 %v2766
  %2778 = vmatpush.bf16.msra.mxu0 %v2765
  %2779 = vmatpush.bf16.msra.mxu0 %v2764
  %2780 = vmatpush.bf16.msra.mxu0 %v2763
  %2781 = vmatpush.bf16.msra.mxu0 %v2762
  %2782 = vmatpush.bf16.msra.mxu0 %v2761
  %2783 = vmatpush.bf16.msra.mxu0 %v2760
  %2784 = vmatmul.bf16.gmra.mxu0 %v2695
  %v2785 = vpop.f32.mrf.mxu0
  %v2786 = vadd.f32 0.0, %v2785
  %v2787 = vpop.f32.mrf.mxu0
  %v2788 = vadd.f32 0.0, %v2787
  %2789 = vmatmul.bf16.gmra.mxu0 %v2696
  %v2790 = vpop.f32.mrf.mxu0
  %v2791 = vadd.f32 0.0, %v2790
  %v2792 = vpop.f32.mrf.mxu0
  %v2793 = vadd.f32 0.0, %v2792
  %2794 = vmatmul.bf16.gmra.mxu0 %v2697
  %v2795 = vpop.f32.mrf.mxu0
  %v2796 = vadd.f32 0.0, %v2795
  %v2797 = vpop.f32.mrf.mxu0
  %v2798 = vadd.f32 0.0, %v2797
  %2799 = vmatmul.bf16.gmra.mxu0 %v2698
  %v2800 = vpop.f32.mrf.mxu0
  %v2801 = vadd.f32 0.0, %v2800
  %v2802 = vpop.f32.mrf.mxu0
  %v2803 = vadd.f32 0.0, %v2802
  %2804 = vmatmul.bf16.gmra.mxu0 %v2699
  %v2805 = vpop.f32.mrf.mxu0
  %v2806 = vadd.f32 0.0, %v2805
  %v2807 = vpop.f32.mrf.mxu0
  %v2808 = vadd.f32 0.0, %v2807
  %2809 = vmatmul.bf16.gmra.mxu0 %v2700
  %v2810 = vpop.f32.mrf.mxu0
  %v2811 = vadd.f32 0.0, %v2810
  %v2812 = vpop.f32.mrf.mxu0
  %v2813 = vadd.f32 0.0, %v2812
  %2814 = vmatmul.bf16.gmra.mxu0 %v2701
  %v2815 = vpop.f32.mrf.mxu0
  %v2816 = vadd.f32 0.0, %v2815
  %v2817 = vpop.f32.mrf.mxu0
  %v2818 = vadd.f32 0.0, %v2817
  %2819 = vmatmul.bf16.gmra.mxu0 %v2702
  %v2820 = vpop.f32.mrf.mxu0
  %v2821 = vadd.f32 0.0, %v2820
  %v2822 = vpop.f32.mrf.mxu0
  %v2823 = vadd.f32 0.0, %v2822
  %2824 = vmatmul.bf16.gmra.mxu0 %v2703
  %v2825 = vpop.f32.mrf.mxu0
  %v2826 = vadd.f32 0.0, %v2825
  %v2827 = vpop.f32.mrf.mxu0
  %v2828 = vadd.f32 0.0, %v2827
  %2829 = vmatmul.bf16.gmra.mxu0 %v2704
  %v2830 = vpop.f32.mrf.mxu0
  %v2831 = vadd.f32 0.0, %v2830
  %v2832 = vpop.f32.mrf.mxu0
  %v2833 = vadd.f32 0.0, %v2832
  %2834 = vmatmul.bf16.gmra.mxu0 %v2705
  %v2835 = vpop.f32.mrf.mxu0
  %v2836 = vadd.f32 0.0, %v2835
  %v2837 = vpop.f32.mrf.mxu0
  %v2838 = vadd.f32 0.0, %v2837
  %2839 = vmatmul.bf16.gmra.mxu0 %v2706
  %v2840 = vpop.f32.mrf.mxu0
  %v2841 = vadd.f32 0.0, %v2840
  %v2842 = vpop.f32.mrf.mxu0
  %v2843 = vadd.f32 0.0, %v2842
  %2844 = vmatmul.bf16.gmra.mxu0 %v2707
  %v2845 = vpop.f32.mrf.mxu0
  %v2846 = vadd.f32 0.0, %v2845
  %v2847 = vpop.f32.mrf.mxu0
  %v2848 = vadd.f32 0.0, %v2847
  %2849 = vmatmul.bf16.gmra.mxu0 %v2708
  %v2850 = vpop.f32.mrf.mxu0
  %v2851 = vadd.f32 0.0, %v2850
  %v2852 = vpop.f32.mrf.mxu0
  %v2853 = vadd.f32 0.0, %v2852
  %2854 = vmatmul.bf16.gmra.mxu0 %v2709
  %v2855 = vpop.f32.mrf.mxu0
  %v2856 = vadd.f32 0.0, %v2855
  %v2857 = vpop.f32.mrf.mxu0
  %v2858 = vadd.f32 0.0, %v2857
  %2859 = vmatmul.bf16.gmra.mxu0 %v2710
  %v2860 = vpop.f32.mrf.mxu0
  %v2861 = vadd.f32 0.0, %v2860
  %v2862 = vpop.f32.mrf.mxu0
  %v2863 = vadd.f32 0.0, %v2862
  %2864 = vdwg.mxu0
  %v2865 = vpack.c.bf16 %v2788, %v2786
  %v2866 = vpack.c.bf16 %v2793, %v2791
  %v2867 = vpack.c.bf16 %v2798, %v2796
  %v2868 = vpack.c.bf16 %v2803, %v2801
  %v2869 = vpack.c.bf16 %v2808, %v2806
  %v2870 = vpack.c.bf16 %v2813, %v2811
  %v2871 = vpack.c.bf16 %v2818, %v2816
  %v2872 = vpack.c.bf16 %v2823, %v2821
  %v2873 = vpack.c.bf16 %v2828, %v2826
  %v2874 = vpack.c.bf16 %v2833, %v2831
  %v2875 = vpack.c.bf16 %v2838, %v2836
  %v2876 = vpack.c.bf16 %v2843, %v2841
  %v2877 = vpack.c.bf16 %v2848, %v2846
  %v2878 = vpack.c.bf16 %v2853, %v2851
  %v2879 = vpack.c.bf16 %v2858, %v2856
  %v2880 = vpack.c.bf16 %v2863, %v2861
  %2881 = vmatpush.bf16.msra.mxu0 %v2872
  %2882 = vmatpush.bf16.msra.mxu0 %v2871
  %2883 = vmatpush.bf16.msra.mxu0 %v2870
  %2884 = vmatpush.bf16.msra.mxu0 %v2869
  %2885 = vmatpush.bf16.msra.mxu0 %v2868
  %2886 = vmatpush.bf16.msra.mxu0 %v2867
  %2887 = vmatpush.bf16.msra.mxu0 %v2866
  %2888 = vmatpush.bf16.msra.mxu0 %v2865
  %2889 = vmatmul.bf16.gmra.mxu0 %v441
  %v2890 = vpop.f32.mrf.mxu0
  %v2891 = vadd.f32 0.0, %v2890
  %v2892 = vpop.f32.mrf.mxu0
  %v2893 = vadd.f32 0.0, %v2892
  %2894 = vmatmul.bf16.gmra.mxu0 %v443
  %v2895 = vpop.f32.mrf.mxu0
  %v2896 = vadd.f32 0.0, %v2895
  %v2897 = vpop.f32.mrf.mxu0
  %v2898 = vadd.f32 0.0, %v2897
  %2899 = vmatmul.bf16.gmra.mxu0 %v445
  %v2900 = vpop.f32.mrf.mxu0
  %v2901 = vadd.f32 0.0, %v2900
  %v2902 = vpop.f32.mrf.mxu0
  %v2903 = vadd.f32 0.0, %v2902
  %2904 = vmatmul.bf16.gmra.mxu0 %v447
  %v2905 = vpop.f32.mrf.mxu0
  %v2906 = vadd.f32 0.0, %v2905
  %v2907 = vpop.f32.mrf.mxu0
  %v2908 = vadd.f32 0.0, %v2907
  %2909 = vmatmul.bf16.gmra.mxu0 %v449
  %v2910 = vpop.f32.mrf.mxu0
  %v2911 = vadd.f32 0.0, %v2910
  %v2912 = vpop.f32.mrf.mxu0
  %v2913 = vadd.f32 0.0, %v2912
  %2914 = vmatmul.bf16.gmra.mxu0 %v451
  %v2915 = vpop.f32.mrf.mxu0
  %v2916 = vadd.f32 0.0, %v2915
  %v2917 = vpop.f32.mrf.mxu0
  %v2918 = vadd.f32 0.0, %v2917
  %2919 = vmatmul.bf16.gmra.mxu0 %v453
  %v2920 = vpop.f32.mrf.mxu0
  %v2921 = vadd.f32 0.0, %v2920
  %v2922 = vpop.f32.mrf.mxu0
  %v2923 = vadd.f32 0.0, %v2922
  %2924 = vmatmul.bf16.gmra.mxu0 %v455
  %v2925 = vpop.f32.mrf.mxu0
  %v2926 = vadd.f32 0.0, %v2925
  %v2927 = vpop.f32.mrf.mxu0
  %v2928 = vadd.f32 0.0, %v2927
  %2929 = vmatmul.bf16.gmra.mxu0 %v457
  %v2930 = vpop.f32.mrf.mxu0
  %v2931 = vadd.f32 0.0, %v2930
  %v2932 = vpop.f32.mrf.mxu0
  %v2933 = vadd.f32 0.0, %v2932
  %2934 = vmatmul.bf16.gmra.mxu0 %v459
  %v2935 = vpop.f32.mrf.mxu0
  %v2936 = vadd.f32 0.0, %v2935
  %v2937 = vpop.f32.mrf.mxu0
  %v2938 = vadd.f32 0.0, %v2937
  %2939 = vmatmul.bf16.gmra.mxu0 %v461
  %v2940 = vpop.f32.mrf.mxu0
  %v2941 = vadd.f32 0.0, %v2940
  %v2942 = vpop.f32.mrf.mxu0
  %v2943 = vadd.f32 0.0, %v2942
  %2944 = vmatmul.bf16.gmra.mxu0 %v463
  %v2945 = vpop.f32.mrf.mxu0
  %v2946 = vadd.f32 0.0, %v2945
  %v2947 = vpop.f32.mrf.mxu0
  %v2948 = vadd.f32 0.0, %v2947
  %2949 = vmatmul.bf16.gmra.mxu0 %v465
  %v2950 = vpop.f32.mrf.mxu0
  %v2951 = vadd.f32 0.0, %v2950
  %v2952 = vpop.f32.mrf.mxu0
  %v2953 = vadd.f32 0.0, %v2952
  %2954 = vmatmul.bf16.gmra.mxu0 %v467
  %v2955 = vpop.f32.mrf.mxu0
  %v2956 = vadd.f32 0.0, %v2955
  %v2957 = vpop.f32.mrf.mxu0
  %v2958 = vadd.f32 0.0, %v2957
  %2959 = vmatmul.bf16.gmra.mxu0 %v469
  %v2960 = vpop.f32.mrf.mxu0
  %v2961 = vadd.f32 0.0, %v2960
  %v2962 = vpop.f32.mrf.mxu0
  %v2963 = vadd.f32 0.0, %v2962
  %2964 = vmatmul.bf16.gmra.mxu0 %v471
  %v2965 = vpop.f32.mrf.mxu0
  %v2966 = vadd.f32 0.0, %v2965
  %v2967 = vpop.f32.mrf.mxu0
  %v2968 = vadd.f32 0.0, %v2967
  %2969 = vdwg.mxu0
  %2970 = vmatpush.bf16.msra.mxu0 %v2880
  %2971 = vmatpush.bf16.msra.mxu0 %v2879
  %2972 = vmatpush.bf16.msra.mxu0 %v2878
  %2973 = vmatpush.bf16.msra.mxu0 %v2877
  %2974 = vmatpush.bf16.msra.mxu0 %v2876
  %2975 = vmatpush.bf16.msra.mxu0 %v2875
  %2976 = vmatpush.bf16.msra.mxu0 %v2874
  %2977 = vmatpush.bf16.msra.mxu0 %v2873
  %2978 = vmatmul.bf16.gmra.mxu0 %v442
  %v2979 = vpop.f32.mrf.mxu0
  %v2980 = vadd.f32 %v2891, %v2979
  %v2981 = vpop.f32.mrf.mxu0
  %v2982 = vadd.f32 %v2893, %v2981
  %2983 = vmatmul.bf16.gmra.mxu0 %v444
  %v2984 = vpop.f32.mrf.mxu0
  %v2985 = vadd.f32 %v2896, %v2984
  %v2986 = vpop.f32.mrf.mxu0
  %v2987 = vadd.f32 %v2898, %v2986
  %2988 = vmatmul.bf16.gmra.mxu0 %v446
  %v2989 = vpop.f32.mrf.mxu0
  %v2990 = vadd.f32 %v2901, %v2989
  %v2991 = vpop.f32.mrf.mxu0
  %v2992 = vadd.f32 %v2903, %v2991
  %2993 = vmatmul.bf16.gmra.mxu0 %v448
  %v2994 = vpop.f32.mrf.mxu0
  %v2995 = vadd.f32 %v2906, %v2994
  %v2996 = vpop.f32.mrf.mxu0
  %v2997 = vadd.f32 %v2908, %v2996
  %2998 = vmatmul.bf16.gmra.mxu0 %v450
  %v2999 = vpop.f32.mrf.mxu0
  %v3000 = vadd.f32 %v2911, %v2999
  %v3001 = vpop.f32.mrf.mxu0
  %v3002 = vadd.f32 %v2913, %v3001
  %3003 = vmatmul.bf16.gmra.mxu0 %v452
  %v3004 = vpop.f32.mrf.mxu0
  %v3005 = vadd.f32 %v2916, %v3004
  %v3006 = vpop.f32.mrf.mxu0
  %v3007 = vadd.f32 %v2918, %v3006
  %3008 = vmatmul.bf16.gmra.mxu0 %v454
  %v3009 = vpop.f32.mrf.mxu0
  %v3010 = vadd.f32 %v2921, %v3009
  %v3011 = vpop.f32.mrf.mxu0
  %v3012 = vadd.f32 %v2923, %v3011
  %3013 = vmatmul.bf16.gmra.mxu0 %v456
  %v3014 = vpop.f32.mrf.mxu0
  %v3015 = vadd.f32 %v2926, %v3014
  %v3016 = vpop.f32.mrf.mxu0
  %v3017 = vadd.f32 %v2928, %v3016
  %3018 = vmatmul.bf16.gmra.mxu0 %v458
  %v3019 = vpop.f32.mrf.mxu0
  %v3020 = vadd.f32 %v2931, %v3019
  %v3021 = vpop.f32.mrf.mxu0
  %v3022 = vadd.f32 %v2933, %v3021
  %3023 = vmatmul.bf16.gmra.mxu0 %v460
  %v3024 = vpop.f32.mrf.mxu0
  %v3025 = vadd.f32 %v2936, %v3024
  %v3026 = vpop.f32.mrf.mxu0
  %v3027 = vadd.f32 %v2938, %v3026
  %3028 = vmatmul.bf16.gmra.mxu0 %v462
  %v3029 = vpop.f32.mrf.mxu0
  %v3030 = vadd.f32 %v2941, %v3029
  %v3031 = vpop.f32.mrf.mxu0
  %v3032 = vadd.f32 %v2943, %v3031
  %3033 = vmatmul.bf16.gmra.mxu0 %v464
  %v3034 = vpop.f32.mrf.mxu0
  %v3035 = vadd.f32 %v2946, %v3034
  %v3036 = vpop.f32.mrf.mxu0
  %v3037 = vadd.f32 %v2948, %v3036
  %3038 = vmatmul.bf16.gmra.mxu0 %v466
  %v3039 = vpop.f32.mrf.mxu0
  %v3040 = vadd.f32 %v2951, %v3039
  %v3041 = vpop.f32.mrf.mxu0
  %v3042 = vadd.f32 %v2953, %v3041
  %3043 = vmatmul.bf16.gmra.mxu0 %v468
  %v3044 = vpop.f32.mrf.mxu0
  %v3045 = vadd.f32 %v2956, %v3044
  %v3046 = vpop.f32.mrf.mxu0
  %v3047 = vadd.f32 %v2958, %v3046
  %3048 = vmatmul.bf16.gmra.mxu0 %v470
  %v3049 = vpop.f32.mrf.mxu0
  %v3050 = vadd.f32 %v2961, %v3049
  %v3051 = vpop.f32.mrf.mxu0
  %v3052 = vadd.f32 %v2963, %v3051
  %3053 = vmatmul.bf16.gmra.mxu0 %v472
  %v3054 = vpop.f32.mrf.mxu0
  %v3055 = vadd.f32 %v2966, %v3054
  %v3056 = vpop.f32.mrf.mxu0
  %v3057 = vadd.f32 %v2968, %v3056
  %3058 = vdwg.mxu0
  %v3059 = vmax.f32 %v2980, 0.0
  %v3060 = vmax.f32 %v2982, 0.0
  %v3061 = vmax.f32 %v2985, 0.0
  %v3062 = vmax.f32 %v2987, 0.0
  %v3063 = vmax.f32 %v2990, 0.0
  %v3064 = vmax.f32 %v2992, 0.0
  %v3065 = vmax.f32 %v2995, 0.0
  %v3066 = vmax.f32 %v2997, 0.0
  %v3067 = vmax.f32 %v3000, 0.0
  %v3068 = vmax.f32 %v3002, 0.0
  %v3069 = vmax.f32 %v3005, 0.0
  %v3070 = vmax.f32 %v3007, 0.0
  %v3071 = vmax.f32 %v3010, 0.0
  %v3072 = vmax.f32 %v3012, 0.0
  %v3073 = vmax.f32 %v3015, 0.0
  %v3074 = vmax.f32 %v3017, 0.0
  %v3075 = vmax.f32 %v3020, 0.0
  %v3076 = vmax.f32 %v3022, 0.0
  %v3077 = vmax.f32 %v3025, 0.0
  %v3078 = vmax.f32 %v3027, 0.0
  %v3079 = vmax.f32 %v3030, 0.0
  %v3080 = vmax.f32 %v3032, 0.0
  %v3081 = vmax.f32 %v3035, 0.0
  %v3082 = vmax.f32 %v3037, 0.0
  %v3083 = vmax.f32 %v3040, 0.0
  %v3084 = vmax.f32 %v3042, 0.0
  %v3085 = vmax.f32 %v3045, 0.0
  %v3086 = vmax.f32 %v3047, 0.0
  %v3087 = vmax.f32 %v3050, 0.0
  %v3088 = vmax.f32 %v3052, 0.0
  %v3089 = vmax.f32 %v3055, 0.0
  %v3090 = vmax.f32 %v3057, 0.0
  %v3091 = vpack.c.bf16 %v3060, %v3059
  %v3092 = vpack.c.bf16 %v3062, %v3061
  %v3093 = vpack.c.bf16 %v3064, %v3063
  %v3094 = vpack.c.bf16 %v3066, %v3065
  %v3095 = vpack.c.bf16 %v3068, %v3067
  %v3096 = vpack.c.bf16 %v3070, %v3069
  %v3097 = vpack.c.bf16 %v3072, %v3071
  %v3098 = vpack.c.bf16 %v3074, %v3073
  %v3099 = vpack.c.bf16 %v3076, %v3075
  %v3100 = vpack.c.bf16 %v3078, %v3077
  %v3101 = vpack.c.bf16 %v3080, %v3079
  %v3102 = vpack.c.bf16 %v3082, %v3081
  %v3103 = vpack.c.bf16 %v3084, %v3083
  %v3104 = vpack.c.bf16 %v3086, %v3085
  %v3105 = vpack.c.bf16 %v3088, %v3087
  %v3106 = vpack.c.bf16 %v3090, %v3089
  %s3107 = scalar_lea.vmem %s2, 448
  %v3108 = vld [vmem:[%s3107] sm:$0xf]
  %v3109 = vld [vmem:[%s3107 + $0x4] sm:$0xf]
  %v3110 = vld [vmem:[%s3107 + $0x8] sm:$0xf]
  %v3111 = vld [vmem:[%s3107 + $0xc] sm:$0xf]
  %v3112 = vld [vmem:[%s3107 + $0x10] sm:$0xf]
  %v3113 = vld [vmem:[%s3107 + $0x14] sm:$0xf]
  %v3114 = vld [vmem:[%s3107 + $0x18] sm:$0xf]
  %v3115 = vld [vmem:[%s3107 + $0x1c] sm:$0xf]
  %v3116 = vld [vmem:[%s3107 + $0x20] sm:$0xf]
  %v3117 = vld [vmem:[%s3107 + $0x24] sm:$0xf]
  %v3118 = vld [vmem:[%s3107 + $0x28] sm:$0xf]
  %v3119 = vld [vmem:[%s3107 + $0x2c] sm:$0xf]
  %v3120 = vld [vmem:[%s3107 + $0x30] sm:$0xf]
  %v3121 = vld [vmem:[%s3107 + $0x34] sm:$0xf]
  %v3122 = vld [vmem:[%s3107 + $0x38] sm:$0xf]
  %v3123 = vld [vmem:[%s3107 + $0x3c] sm:$0xf]
  %v3140 = vunpack.c.l.b16 %v3108
  %v3141 = vunpack.c.l.b16 %v3109
  %v3142 = vunpack.c.l.b16 %v3110
  %v3143 = vunpack.c.l.b16 %v3111
  %v3144 = vunpack.c.l.b16 %v3112
  %v3145 = vunpack.c.l.b16 %v3113
  %v3146 = vunpack.c.l.b16 %v3114
  %v3147 = vunpack.c.l.b16 %v3115
  %v3148 = vunpack.c.l.b16 %v3116
  %v3149 = vunpack.c.l.b16 %v3117
  %v3150 = vunpack.c.l.b16 %v3118
  %v3151 = vunpack.c.l.b16 %v3119
  %v3152 = vunpack.c.l.b16 %v3120
  %v3153 = vunpack.c.l.b16 %v3121
  %v3154 = vunpack.c.l.b16 %v3122
  %v3155 = vunpack.c.l.b16 %v3123
  %v3156 = vpack.c.b16 %v3141, %v3140
  %v3157 = vpack.c.b16 %v3143, %v3142
  %v3158 = vpack.c.b16 %v3145, %v3144
  %v3159 = vpack.c.b16 %v3147, %v3146
  %v3160 = vpack.c.b16 %v3149, %v3148
  %v3161 = vpack.c.b16 %v3151, %v3150
  %v3162 = vpack.c.b16 %v3153, %v3152
  %v3163 = vpack.c.b16 %v3155, %v3154
  %3172 = vmatpush.bf16.msra.mxu0 %v3163
  %3173 = vmatpush.bf16.msra.mxu0 %v3162
  %3174 = vmatpush.bf16.msra.mxu0 %v3161
  %3175 = vmatpush.bf16.msra.mxu0 %v3160
  %3176 = vmatpush.bf16.msra.mxu0 %v3159
  %3177 = vmatpush.bf16.msra.mxu0 %v3158
  %3178 = vmatpush.bf16.msra.mxu0 %v3157
  %3179 = vmatpush.bf16.msra.mxu0 %v3156
  %3180 = vmatmul.bf16.gmra.mxu0 %v3091
  %v3181 = vpop.f32.mrf.mxu0
  %v3182 = vadd.f32 0.0, %v3181
  %v3183 = vpop.f32.mrf.mxu0
  %v3184 = vadd.f32 0.0, %v3183
  %3185 = vmatmul.bf16.gmra.mxu0 %v3092
  %v3186 = vpop.f32.mrf.mxu0
  %v3187 = vadd.f32 0.0, %v3186
  %v3188 = vpop.f32.mrf.mxu0
  %v3189 = vadd.f32 0.0, %v3188
  %3190 = vmatmul.bf16.gmra.mxu0 %v3093
  %v3191 = vpop.f32.mrf.mxu0
  %v3192 = vadd.f32 0.0, %v3191
  %v3193 = vpop.f32.mrf.mxu0
  %v3194 = vadd.f32 0.0, %v3193
  %3195 = vmatmul.bf16.gmra.mxu0 %v3094
  %v3196 = vpop.f32.mrf.mxu0
  %v3197 = vadd.f32 0.0, %v3196
  %v3198 = vpop.f32.mrf.mxu0
  %v3199 = vadd.f32 0.0, %v3198
  %3200 = vmatmul.bf16.gmra.mxu0 %v3095
  %v3201 = vpop.f32.mrf.mxu0
  %v3202 = vadd.f32 0.0, %v3201
  %v3203 = vpop.f32.mrf.mxu0
  %v3204 = vadd.f32 0.0, %v3203
  %3205 = vmatmul.bf16.gmra.mxu0 %v3096
  %v3206 = vpop.f32.mrf.mxu0
  %v3207 = vadd.f32 0.0, %v3206
  %v3208 = vpop.f32.mrf.mxu0
  %v3209 = vadd.f32 0.0, %v3208
  %3210 = vmatmul.bf16.gmra.mxu0 %v3097
  %v3211 = vpop.f32.mrf.mxu0
  %v3212 = vadd.f32 0.0, %v3211
  %v3213 = vpop.f32.mrf.mxu0
  %v3214 = vadd.f32 0.0, %v3213
  %3215 = vmatmul.bf16.gmra.mxu0 %v3098
  %v3216 = vpop.f32.mrf.mxu0
  %v3217 = vadd.f32 0.0, %v3216
  %v3218 = vpop.f32.mrf.mxu0
  %v3219 = vadd.f32 0.0, %v3218
  %3220 = vmatmul.bf16.gmra.mxu0 %v3099
  %v3221 = vpop.f32.mrf.mxu0
  %v3222 = vadd.f32 0.0, %v3221
  %v3223 = vpop.f32.mrf.mxu0
  %v3224 = vadd.f32 0.0, %v3223
  %3225 = vmatmul.bf16.gmra.mxu0 %v3100
  %v3226 = vpop.f32.mrf.mxu0
  %v3227 = vadd.f32 0.0, %v3226
  %v3228 = vpop.f32.mrf.mxu0
  %v3229 = vadd.f32 0.0, %v3228
  %3230 = vmatmul.bf16.gmra.mxu0 %v3101
  %v3231 = vpop.f32.mrf.mxu0
  %v3232 = vadd.f32 0.0, %v3231
  %v3233 = vpop.f32.mrf.mxu0
  %v3234 = vadd.f32 0.0, %v3233
  %3235 = vmatmul.bf16.gmra.mxu0 %v3102
  %v3236 = vpop.f32.mrf.mxu0
  %v3237 = vadd.f32 0.0, %v3236
  %v3238 = vpop.f32.mrf.mxu0
  %v3239 = vadd.f32 0.0, %v3238
  %3240 = vmatmul.bf16.gmra.mxu0 %v3103
  %v3241 = vpop.f32.mrf.mxu0
  %v3242 = vadd.f32 0.0, %v3241
  %v3243 = vpop.f32.mrf.mxu0
  %v3244 = vadd.f32 0.0, %v3243
  %3245 = vmatmul.bf16.gmra.mxu0 %v3104
  %v3246 = vpop.f32.mrf.mxu0
  %v3247 = vadd.f32 0.0, %v3246
  %v3248 = vpop.f32.mrf.mxu0
  %v3249 = vadd.f32 0.0, %v3248
  %3250 = vmatmul.bf16.gmra.mxu0 %v3105
  %v3251 = vpop.f32.mrf.mxu0
  %v3252 = vadd.f32 0.0, %v3251
  %v3253 = vpop.f32.mrf.mxu0
  %v3254 = vadd.f32 0.0, %v3253
  %3255 = vmatmul.bf16.gmra.mxu0 %v3106
  %v3256 = vpop.f32.mrf.mxu0
  %v3257 = vadd.f32 0.0, %v3256
  %v3258 = vpop.f32.mrf.mxu0
  %v3259 = vadd.f32 0.0, %v3258
  %3260 = vdwg.mxu0
  %v3261 = vpack.c.bf16 %v3184, %v3182
  %v3262 = vpack.c.bf16 %v3189, %v3187
  %v3263 = vpack.c.bf16 %v3194, %v3192
  %v3264 = vpack.c.bf16 %v3199, %v3197
  %v3265 = vpack.c.bf16 %v3204, %v3202
  %v3266 = vpack.c.bf16 %v3209, %v3207
  %v3267 = vpack.c.bf16 %v3214, %v3212
  %v3268 = vpack.c.bf16 %v3219, %v3217
  %v3269 = vpack.c.bf16 %v3224, %v3222
  %v3270 = vpack.c.bf16 %v3229, %v3227
  %v3271 = vpack.c.bf16 %v3234, %v3232
  %v3272 = vpack.c.bf16 %v3239, %v3237
  %v3273 = vpack.c.bf16 %v3244, %v3242
  %v3274 = vpack.c.bf16 %v3249, %v3247
  %v3275 = vpack.c.bf16 %v3254, %v3252
  %v3276 = vpack.c.bf16 %v3259, %v3257
  %3277 = vmatpush.bf16.msra.mxu0 %v3268
  %3278 = vmatpush.bf16.msra.mxu0 %v3267
  %3279 = vmatpush.bf16.msra.mxu0 %v3266
  %3280 = vmatpush.bf16.msra.mxu0 %v3265
  %3281 = vmatpush.bf16.msra.mxu0 %v3264
  %3282 = vmatpush.bf16.msra.mxu0 %v3263
  %3283 = vmatpush.bf16.msra.mxu0 %v3262
  %3284 = vmatpush.bf16.msra.mxu0 %v3261
  %3285 = vmatmul.bf16.gmra.mxu0 %v441
  %v3286 = vpop.f32.mrf.mxu0
  %v3287 = vadd.f32 0.0, %v3286
  %v3288 = vpop.f32.mrf.mxu0
  %v3289 = vadd.f32 0.0, %v3288
  %3290 = vmatmul.bf16.gmra.mxu0 %v443
  %v3291 = vpop.f32.mrf.mxu0
  %v3292 = vadd.f32 0.0, %v3291
  %v3293 = vpop.f32.mrf.mxu0
  %v3294 = vadd.f32 0.0, %v3293
  %3295 = vmatmul.bf16.gmra.mxu0 %v445
  %v3296 = vpop.f32.mrf.mxu0
  %v3297 = vadd.f32 0.0, %v3296
  %v3298 = vpop.f32.mrf.mxu0
  %v3299 = vadd.f32 0.0, %v3298
  %3300 = vmatmul.bf16.gmra.mxu0 %v447
  %v3301 = vpop.f32.mrf.mxu0
  %v3302 = vadd.f32 0.0, %v3301
  %v3303 = vpop.f32.mrf.mxu0
  %v3304 = vadd.f32 0.0, %v3303
  %3305 = vmatmul.bf16.gmra.mxu0 %v449
  %v3306 = vpop.f32.mrf.mxu0
  %v3307 = vadd.f32 0.0, %v3306
  %v3308 = vpop.f32.mrf.mxu0
  %v3309 = vadd.f32 0.0, %v3308
  %3310 = vmatmul.bf16.gmra.mxu0 %v451
  %v3311 = vpop.f32.mrf.mxu0
  %v3312 = vadd.f32 0.0, %v3311
  %v3313 = vpop.f32.mrf.mxu0
  %v3314 = vadd.f32 0.0, %v3313
  %3315 = vmatmul.bf16.gmra.mxu0 %v453
  %v3316 = vpop.f32.mrf.mxu0
  %v3317 = vadd.f32 0.0, %v3316
  %v3318 = vpop.f32.mrf.mxu0
  %v3319 = vadd.f32 0.0, %v3318
  %3320 = vmatmul.bf16.gmra.mxu0 %v455
  %v3321 = vpop.f32.mrf.mxu0
  %v3322 = vadd.f32 0.0, %v3321
  %v3323 = vpop.f32.mrf.mxu0
  %v3324 = vadd.f32 0.0, %v3323
  %3325 = vmatmul.bf16.gmra.mxu0 %v457
  %v3326 = vpop.f32.mrf.mxu0
  %v3327 = vadd.f32 0.0, %v3326
  %v3328 = vpop.f32.mrf.mxu0
  %v3329 = vadd.f32 0.0, %v3328
  %3330 = vmatmul.bf16.gmra.mxu0 %v459
  %v3331 = vpop.f32.mrf.mxu0
  %v3332 = vadd.f32 0.0, %v3331
  %v3333 = vpop.f32.mrf.mxu0
  %v3334 = vadd.f32 0.0, %v3333
  %3335 = vmatmul.bf16.gmra.mxu0 %v461
  %v3336 = vpop.f32.mrf.mxu0
  %v3337 = vadd.f32 0.0, %v3336
  %v3338 = vpop.f32.mrf.mxu0
  %v3339 = vadd.f32 0.0, %v3338
  %3340 = vmatmul.bf16.gmra.mxu0 %v463
  %v3341 = vpop.f32.mrf.mxu0
  %v3342 = vadd.f32 0.0, %v3341
  %v3343 = vpop.f32.mrf.mxu0
  %v3344 = vadd.f32 0.0, %v3343
  %3345 = vmatmul.bf16.gmra.mxu0 %v465
  %v3346 = vpop.f32.mrf.mxu0
  %v3347 = vadd.f32 0.0, %v3346
  %v3348 = vpop.f32.mrf.mxu0
  %v3349 = vadd.f32 0.0, %v3348
  %3350 = vmatmul.bf16.gmra.mxu0 %v467
  %v3351 = vpop.f32.mrf.mxu0
  %v3352 = vadd.f32 0.0, %v3351
  %v3353 = vpop.f32.mrf.mxu0
  %v3354 = vadd.f32 0.0, %v3353
  %3355 = vmatmul.bf16.gmra.mxu0 %v469
  %v3356 = vpop.f32.mrf.mxu0
  %v3357 = vadd.f32 0.0, %v3356
  %v3358 = vpop.f32.mrf.mxu0
  %v3359 = vadd.f32 0.0, %v3358
  %3360 = vmatmul.bf16.gmra.mxu0 %v471
  %v3361 = vpop.f32.mrf.mxu0
  %v3362 = vadd.f32 0.0, %v3361
  %v3363 = vpop.f32.mrf.mxu0
  %v3364 = vadd.f32 0.0, %v3363
  %3365 = vdwg.mxu0
  %3366 = vmatpush.bf16.msra.mxu0 %v3276
  %3367 = vmatpush.bf16.msra.mxu0 %v3275
  %3368 = vmatpush.bf16.msra.mxu0 %v3274
  %3369 = vmatpush.bf16.msra.mxu0 %v3273
  %3370 = vmatpush.bf16.msra.mxu0 %v3272
  %3371 = vmatpush.bf16.msra.mxu0 %v3271
  %3372 = vmatpush.bf16.msra.mxu0 %v3270
  %3373 = vmatpush.bf16.msra.mxu0 %v3269
  %3374 = vmatmul.bf16.gmra.mxu0 %v442
  %v3375 = vpop.f32.mrf.mxu0
  %v3376 = vadd.f32 %v3287, %v3375
  %v3377 = vpop.f32.mrf.mxu0
  %v3378 = vadd.f32 %v3289, %v3377
  %3379 = vmatmul.bf16.gmra.mxu0 %v444
  %v3380 = vpop.f32.mrf.mxu0
  %v3381 = vadd.f32 %v3292, %v3380
  %v3382 = vpop.f32.mrf.mxu0
  %v3383 = vadd.f32 %v3294, %v3382
  %3384 = vmatmul.bf16.gmra.mxu0 %v446
  %v3385 = vpop.f32.mrf.mxu0
  %v3386 = vadd.f32 %v3297, %v3385
  %v3387 = vpop.f32.mrf.mxu0
  %v3388 = vadd.f32 %v3299, %v3387
  %3389 = vmatmul.bf16.gmra.mxu0 %v448
  %v3390 = vpop.f32.mrf.mxu0
  %v3391 = vadd.f32 %v3302, %v3390
  %v3392 = vpop.f32.mrf.mxu0
  %v3393 = vadd.f32 %v3304, %v3392
  %3394 = vmatmul.bf16.gmra.mxu0 %v450
  %v3395 = vpop.f32.mrf.mxu0
  %v3396 = vadd.f32 %v3307, %v3395
  %v3397 = vpop.f32.mrf.mxu0
  %v3398 = vadd.f32 %v3309, %v3397
  %3399 = vmatmul.bf16.gmra.mxu0 %v452
  %v3400 = vpop.f32.mrf.mxu0
  %v3401 = vadd.f32 %v3312, %v3400
  %v3402 = vpop.f32.mrf.mxu0
  %v3403 = vadd.f32 %v3314, %v3402
  %3404 = vmatmul.bf16.gmra.mxu0 %v454
  %v3405 = vpop.f32.mrf.mxu0
  %v3406 = vadd.f32 %v3317, %v3405
  %v3407 = vpop.f32.mrf.mxu0
  %v3408 = vadd.f32 %v3319, %v3407
  %3409 = vmatmul.bf16.gmra.mxu0 %v456
  %v3410 = vpop.f32.mrf.mxu0
  %v3411 = vadd.f32 %v3322, %v3410
  %v3412 = vpop.f32.mrf.mxu0
  %v3413 = vadd.f32 %v3324, %v3412
  %3414 = vmatmul.bf16.gmra.mxu0 %v458
  %v3415 = vpop.f32.mrf.mxu0
  %v3416 = vadd.f32 %v3327, %v3415
  %v3417 = vpop.f32.mrf.mxu0
  %v3418 = vadd.f32 %v3329, %v3417
  %3419 = vmatmul.bf16.gmra.mxu0 %v460
  %v3420 = vpop.f32.mrf.mxu0
  %v3421 = vadd.f32 %v3332, %v3420
  %v3422 = vpop.f32.mrf.mxu0
  %v3423 = vadd.f32 %v3334, %v3422
  %3424 = vmatmul.bf16.gmra.mxu0 %v462
  %v3425 = vpop.f32.mrf.mxu0
  %v3426 = vadd.f32 %v3337, %v3425
  %v3427 = vpop.f32.mrf.mxu0
  %v3428 = vadd.f32 %v3339, %v3427
  %3429 = vmatmul.bf16.gmra.mxu0 %v464
  %v3430 = vpop.f32.mrf.mxu0
  %v3431 = vadd.f32 %v3342, %v3430
  %v3432 = vpop.f32.mrf.mxu0
  %v3433 = vadd.f32 %v3344, %v3432
  %3434 = vmatmul.bf16.gmra.mxu0 %v466
  %v3435 = vpop.f32.mrf.mxu0
  %v3436 = vadd.f32 %v3347, %v3435
  %v3437 = vpop.f32.mrf.mxu0
  %v3438 = vadd.f32 %v3349, %v3437
  %3439 = vmatmul.bf16.gmra.mxu0 %v468
  %v3440 = vpop.f32.mrf.mxu0
  %v3441 = vadd.f32 %v3352, %v3440
  %v3442 = vpop.f32.mrf.mxu0
  %v3443 = vadd.f32 %v3354, %v3442
  %3444 = vmatmul.bf16.gmra.mxu0 %v470
  %v3445 = vpop.f32.mrf.mxu0
  %v3446 = vadd.f32 %v3357, %v3445
  %v3447 = vpop.f32.mrf.mxu0
  %v3448 = vadd.f32 %v3359, %v3447
  %3449 = vmatmul.bf16.gmra.mxu0 %v472
  %v3450 = vpop.f32.mrf.mxu0
  %v3451 = vadd.f32 %v3362, %v3450
  %v3452 = vpop.f32.mrf.mxu0
  %v3453 = vadd.f32 %v3364, %v3452
  %3454 = vdwg.mxu0
  %v3455 = vmax.f32 %v3376, 0.0
  %v3456 = vmax.f32 %v3378, 0.0
  %v3457 = vmax.f32 %v3381, 0.0
  %v3458 = vmax.f32 %v3383, 0.0
  %v3459 = vmax.f32 %v3386, 0.0
  %v3460 = vmax.f32 %v3388, 0.0
  %v3461 = vmax.f32 %v3391, 0.0
  %v3462 = vmax.f32 %v3393, 0.0
  %v3463 = vmax.f32 %v3396, 0.0
  %v3464 = vmax.f32 %v3398, 0.0
  %v3465 = vmax.f32 %v3401, 0.0
  %v3466 = vmax.f32 %v3403, 0.0
  %v3467 = vmax.f32 %v3406, 0.0
  %v3468 = vmax.f32 %v3408, 0.0
  %v3469 = vmax.f32 %v3411, 0.0
  %v3470 = vmax.f32 %v3413, 0.0
  %v3471 = vmax.f32 %v3416, 0.0
  %v3472 = vmax.f32 %v3418, 0.0
  %v3473 = vmax.f32 %v3421, 0.0
  %v3474 = vmax.f32 %v3423, 0.0
  %v3475 = vmax.f32 %v3426, 0.0
  %v3476 = vmax.f32 %v3428, 0.0
  %v3477 = vmax.f32 %v3431, 0.0
  %v3478 = vmax.f32 %v3433, 0.0
  %v3479 = vmax.f32 %v3436, 0.0
  %v3480 = vmax.f32 %v3438, 0.0
  %v3481 = vmax.f32 %v3441, 0.0
  %v3482 = vmax.f32 %v3443, 0.0
  %v3483 = vmax.f32 %v3446, 0.0
  %v3484 = vmax.f32 %v3448, 0.0
  %v3485 = vmax.f32 %v3451, 0.0
  %v3486 = vmax.f32 %v3453, 0.0
  %3487 = vst [vmem:[%s4] sm:$0xff] %v3455
  %3488 = vst [vmem:[%s4 + $0x8] sm:$0xff] %v3456
  %3489 = vst [vmem:[%s4 + $0x10] sm:$0xff] %v3457
  %3490 = vst [vmem:[%s4 + $0x18] sm:$0xff] %v3458
  %3491 = vst [vmem:[%s4 + $0x20] sm:$0xff] %v3459
  %3492 = vst [vmem:[%s4 + $0x28] sm:$0xff] %v3460
  %3493 = vst [vmem:[%s4 + $0x30] sm:$0xff] %v3461
  %3494 = vst [vmem:[%s4 + $0x38] sm:$0xff] %v3462
  %3495 = vst [vmem:[%s4 + $0x40] sm:$0xff] %v3463
  %3496 = vst [vmem:[%s4 + $0x48] sm:$0xff] %v3464
  %3497 = vst [vmem:[%s4 + $0x50] sm:$0xff] %v3465
  %3498 = vst [vmem:[%s4 + $0x58] sm:$0xff] %v3466
  %3499 = vst [vmem:[%s4 + $0x60] sm:$0xff] %v3467
  %3500 = vst [vmem:[%s4 + $0x68] sm:$0xff] %v3468
  %3501 = vst [vmem:[%s4 + $0x70] sm:$0xff] %v3469
  %3502 = vst [vmem:[%s4 + $0x78] sm:$0xff] %v3470
  %3503 = vst [vmem:[%s4 + $0x80] sm:$0xff] %v3471
  %3504 = vst [vmem:[%s4 + $0x88] sm:$0xff] %v3472
  %3505 = vst [vmem:[%s4 + $0x90] sm:$0xff] %v3473
  %3506 = vst [vmem:[%s4 + $0x98] sm:$0xff] %v3474
  %3507 = vst [vmem:[%s4 + $0xa0] sm:$0xff] %v3475
  %3508 = vst [vmem:[%s4 + $0xa8] sm:$0xff] %v3476
  %3509 = vst [vmem:[%s4 + $0xb0] sm:$0xff] %v3477
  %3510 = vst [vmem:[%s4 + $0xb8] sm:$0xff] %v3478
  %3511 = vst [vmem:[%s4 + $0xc0] sm:$0xff] %v3479
  %3512 = vst [vmem:[%s4 + $0xc8] sm:$0xff] %v3480
  %3513 = vst [vmem:[%s4 + $0xd0] sm:$0xff] %v3481
  %3514 = vst [vmem:[%s4 + $0xd8] sm:$0xff] %v3482
  %3515 = vst [vmem:[%s4 + $0xe0] sm:$0xff] %v3483
  %3516 = vst [vmem:[%s4 + $0xe8] sm:$0xff] %v3484
  %3517 = vst [vmem:[%s4 + $0xf0] sm:$0xff] %v3485
  %3518 = vst [vmem:[%s4 + $0xf8] sm:$0xff] %v3486
  // Predicated region
  $region14: #{gae_forward.2} parent=0 // pred_check
    _
  $region15: #{gae_forward.2} parent=0 // pred_check_branch
    %3520 = sbr.rel (0) target = $region17
  $region16: #{gae_forward.2} parent=0 // pred_region
    _
  $region17: #{gae_forward.2} parent=0 // pred_fallthru
    _
  // Predicated region
  $region18: #{gae_forward.2} parent=0 // pred_check
    _
  $region19: #{gae_forward.2} parent=0 // pred_check_branch
    %3522 = sbr.rel (0) target = $region21
  $region20: #{gae_forward.2} parent=0 // pred_region
    _
  $region21: #{gae_forward.2} parent=0 // pred_fallthru
    _
  // Predicated region
  $region22: #{gae_forward.2} parent=0 // pred_check
    _
  $region23: #{gae_forward.2} parent=0 // pred_check_branch
    %3524 = sbr.rel (0) target = $region25
  $region24: #{gae_forward.2} parent=0 // pred_region
    _
  $region25: #{gae_forward.2} parent=0 // pred_fallthru
    _
  // Predicated region
  $region26: #{gae_forward.2} parent=0 // pred_check
    _
  $region27: #{gae_forward.2} parent=0 // pred_check_branch
    %3526 = sbr.rel (0) target = $region29
  $region28: #{gae_forward.2} parent=0 // pred_region
    _
  $region29: #{gae_forward.2} parent=0 // pred_fallthru
    _

</llo_original>
